<compile_context>
chip_gen: v5e
topology: v5e:2x2
jax: 0.10.0
libtpu: 0.0.40
codegen_flags: <defaults>
</compile_context>

<pallas_src>
import jax
import jax.numpy as jnp
from jax import lax
from jax.experimental import pallas as pl
from jax.experimental.pallas import tpu as pltpu


def _head_kernel(xq_ref, xkv_ref, wq_ref, wkv_ref, o_ref,
                 q_scr, m_scr, l_scr, acc_scr):
    # xq_ref: (tq, C)   xkv_ref: (tkv, C)   wq_ref: (C, H)   wkv_ref: (C, 2H)
    # o_ref:  (tq, H)   scratch: q (tq,H) f32, m/l (tq,1) f32, acc (tq,H) f32
    qi = pl.program_id(1)
    ki = pl.program_id(2)
    tq, C = xq_ref.shape
    tkv = xkv_ref.shape[0]
    H = wq_ref.shape[1]
    in_dt = xq_ref.dtype

    q_start = qi * tq
    kv_start = ki * tkv

    @pl.when(ki == 0)
    def _init():
        # One q projection per (batch, q-tile); fold 1/sqrt(C) into q here.
        q = jnp.dot(xq_ref[...], wq_ref[...], preferred_element_type=jnp.float32)
        q_scr[...] = q * (C ** -0.5)
        m_scr[...] = jnp.full_like(m_scr, -jnp.inf)
        l_scr[...] = jnp.zeros_like(l_scr)
        acc_scr[...] = jnp.zeros_like(acc_scr)

    # Skip kv tiles that lie entirely above the causal diagonal.
    @pl.when(kv_start <= q_start + tq - 1)
    def _compute():
        # Fused K|V projection: a single (C, 2H)-wide MXU matmul, f32 accumulate.
        kv = jnp.dot(xkv_ref[...], wkv_ref[...], preferred_element_type=jnp.float32)
        k = kv[:, :H].astype(in_dt)
        v = kv[:, H:].astype(in_dt)
        q = q_scr[...].astype(in_dt)

        # Scores: contract head dims directly (no transpose), (tq, tkv) f32.
        s = lax.dot_general(q, k, (((1,), (1,)), ((), ())),
                            preferred_element_type=jnp.float32)

        # Causal mask in global coordinates.
        row = q_start + lax.broadcasted_iota(jnp.int32, (tq, tkv), 0)
        col = kv_start + lax.broadcasted_iota(jnp.int32, (tq, tkv), 1)
        s = jnp.where(col <= row, s, -jnp.inf)

        # Online softmax update (stats and accumulator stay f32).
        m_prev = m_scr[...]
        m_new = jnp.maximum(m_prev, jnp.max(s, axis=-1, keepdims=True))
        alpha = jnp.exp(m_prev - m_new)
        p = jnp.exp(s - m_new)
        l_scr[...] = alpha * l_scr[...] + jnp.sum(p, axis=-1, keepdims=True)
        acc_scr[...] = alpha * acc_scr[...] + jnp.dot(
            p.astype(in_dt), v, preferred_element_type=jnp.float32)
        m_scr[...] = m_new

    @pl.when(ki == pl.num_programs(2) - 1)
    def _finalize():
        # Normalization outside the kv hot loop; exact reciprocal keeps f32 accuracy.
        o_ref[...] = (acc_scr[...] *
                      pl.reciprocal(l_scr[...], approx=False)).astype(o_ref.dtype)


def _pick_tile(t, target=256):
    """Largest tile <= target that divides t (power-of-two steps), else full t."""
    if t <= target:
        return t
    tile = target
    while tile > 8 and t % tile:
        tile //= 2
    return tile if t % tile == 0 else t


def head_forward(x, wk, wq, wv):
    """x: (B, T, C); wk/wq/wv: (C, H)  ->  (B, T, H)."""
    B, T, C = x.shape
    H = wq.shape[1]
    tq = _pick_tile(T)
    tkv = tq
    nq = T // tq
    nkv = T // tkv

    # Fuse the K and V projection weights host-side -> one (C, 2H) matmul per kv tile.
    w_kv = jnp.concatenate([wk, wv], axis=1)

    itm = jnp.dtype(x.dtype).itemsize
    cost = pl.CostEstimate(
        flops=2 * B * T * C * (3 * H) + 4 * B * T * T * H,
        transcendentals=B * T * T,
        bytes_accessed=itm * (B * T * C + C * 3 * H + B * T * H),
    )

    return pl.pallas_call(
        _head_kernel,
        out_shape=jax.ShapeDtypeStruct((B, T, H), x.dtype),
        grid_spec=pltpu.PrefetchScalarGridSpec(
            num_scalar_prefetch=0,
            grid=(B, nq, nkv),
            in_specs=[
                # q-side view of x (squeezed batch dim -> kernel sees (tq, C)).
                pl.BlockSpec((None, tq, C), lambda b, qi, ki: (b, qi, 0)),
                # kv-side view of x.
                pl.BlockSpec((None, tkv, C), lambda b, qi, ki: (b, ki, 0)),
                # Weights: full arrays, resident in VMEM across the grid.
                pl.BlockSpec((C, H), lambda b, qi, ki: (0, 0)),
                pl.BlockSpec((C, 2 * H), lambda b, qi, ki: (0, 0)),
            ],
            out_specs=pl.BlockSpec((None, tq, H),
                                   lambda b, qi, ki: (b, qi, 0)),
            scratch_shapes=[
                pltpu.VMEM((tq, H), jnp.float32),   # scaled q
                pltpu.VMEM((tq, 1), jnp.float32),   # running max
                pltpu.VMEM((tq, 1), jnp.float32),   # running sum
                pltpu.VMEM((tq, H), jnp.float32),   # output accumulator
            ],
        ),
        compiler_params=pltpu.CompilerParams(
            dimension_semantics=("parallel", "parallel", "arbitrary"),
            # Working set (double-buffered x tiles + resident weights + scratch) is a
            # few MiB; 16 MiB stays within every generation's scoped VMEM default.
            vmem_limit_bytes=16 * 1024 * 1024,
        ),
        cost_estimate=cost,
    )(x, x, wq, w_kv)


def _reference(x, wk, wq, wv):
    """Pure-JAX reference matching the PyTorch forward (eval mode)."""
    B, T, C = x.shape
    k = x @ wk
    q = x @ wq
    v = x @ wv
    wei = (q @ jnp.swapaxes(k, -2, -1)) * (C ** -0.5)
    tril = jnp.tril(jnp.ones((T, T), dtype=bool))
    wei = jnp.where(tril, wei, -jnp.inf)
    wei = jax.nn.softmax(wei, axis=-1)
    return wei @ v


if __name__ == "__main__":
    # Shapes consistent with the module: block_size=256, n_embd=384, head_size=64.
    B, T, C, H = 2, 256, 384, 64

    key = jax.random.PRNGKey(0)
    kx, kk, kq, kv = jax.random.split(key, 4)
    x = jax.random.normal(kx, (B, T, C), dtype=jnp.float32)
    # Deterministic parameter init (roughly nn.Linear's uniform init scale).
    bound = 1.0 / (C ** 0.5)
    wk = jax.random.uniform(kk, (C, H), jnp.float32, -bound, bound)
    wq = jax.random.uniform(kq, (C, H), jnp.float32, -bound, bound)
    wv = jax.random.uniform(kv, (C, H), jnp.float32, -bound, bound)

    out = head_forward(x, wk, wq, wv)
    out = jax.block_until_ready(out)

    ref = _reference(x, wk, wq, wv)
    assert out.shape == (B, T, H)
    err = float(jnp.max(jnp.abs(out - ref)))
    assert jnp.allclose(out, ref, atol=1e-4, rtol=1e-4), f"max abs err {err}"
    print("KERNEL_OK")
</pallas_src>

<mosaic_0001>
module attributes {stable_mosaic.version = 11 : i64} {
  func.func @_head_kernel(%arg0: i32, %arg1: i32, %arg2: i32, %arg3: memref<1x256x384xf32, #tpu.memory_space<vmem>>, %arg4: memref<1x256x384xf32, #tpu.memory_space<vmem>>, %arg5: memref<384x64xf32, #tpu.memory_space<vmem>>, %arg6: memref<384x128xf32, #tpu.memory_space<vmem>>, %arg7: memref<1x256x64xf32, #tpu.memory_space<vmem>>, %arg8: memref<256x64xf32, #tpu.memory_space<vmem>>, %arg9: memref<256x1xf32, #tpu.memory_space<vmem>>, %arg10: memref<256x1xf32, #tpu.memory_space<vmem>>, %arg11: memref<256x64xf32, #tpu.memory_space<vmem>>) attributes {dimension_semantics = [#tpu.dimension_semantics<parallel>, #tpu.dimension_semantics<parallel>, #tpu.dimension_semantics<arbitrary>], iteration_bounds = array<i64: 2, 1, 1>, scalar_prefetch = 0 : i64, scratch_operands = 4 : i64, tpu.core_type = #tpu.core_type<tc>, window_params = [{transform_indices = @transform_0, window_bounds = array<i64: 1, 256, 384>}, {transform_indices = @transform_1, window_bounds = array<i64: 1, 256, 384>}, {pipeline_mode = #tpu.pipeline_mode<synchronous>, transform_indices = @transform_2, window_bounds = array<i64: 384, 64>}, {pipeline_mode = #tpu.pipeline_mode<synchronous>, transform_indices = @transform_3, window_bounds = array<i64: 384, 128>}, {transform_indices = @transform_4, window_bounds = array<i64: 1, 256, 64>}]} {
    %c256_i32 = arith.constant 256 : i32
    %0 = arith.muli %arg1, %c256_i32 : i32
    %c256_i32_0 = arith.constant 256 : i32
    %1 = arith.muli %arg2, %c256_i32_0 : i32
    %c0_i32 = arith.constant 0 : i32
    %2 = arith.cmpi eq, %arg2, %c0_i32 : i32
    %3 = arith.extui %2 : i1 to i32
    %c0_i32_1 = arith.constant 0 : i32
    %4 = arith.cmpi ne, %3, %c0_i32_1 : i32
    scf.if %4 {
      %c0 = arith.constant 0 : index
      %c0_6 = arith.constant 0 : index
      %c0_7 = arith.constant 0 : index
      %13 = vector.load %arg3[%c0, %c0_6, %c0_7] : memref<1x256x384xf32, #tpu.memory_space<vmem>>, vector<1x256x384xf32>
      %14 = vector.shape_cast %13 : vector<1x256x384xf32> to vector<256x384xf32>
      %c0_8 = arith.constant 0 : index
      %c0_9 = arith.constant 0 : index
      %15 = vector.load %arg5[%c0_8, %c0_9] : memref<384x64xf32, #tpu.memory_space<vmem>>, vector<384x64xf32>
      %cst = arith.constant dense<0.000000e+00> : vector<256x64xf32>
      %16 = tpu.matmul %14, %15, %cst {dimension_numbers = #tpu.dot_dimension_numbers<[1], [0], [0], [1], [0, 0, 1, 1], [], []>} : vector<256x384xf32>, vector<384x64xf32>, vector<256x64xf32> -> vector<256x64xf32>
      %cst_10 = arith.constant 0.0510310382 : f32
      %17 = vector.broadcast %cst_10 : f32 to vector<256x64xf32>
      %18 = arith.mulf %16, %17 : vector<256x64xf32>
      %c0_11 = arith.constant 0 : index
      %c0_12 = arith.constant 0 : index
      %19 = vector.load %arg8[%c0_11, %c0_12] : memref<256x64xf32, #tpu.memory_space<vmem>>, vector<256x64xf32>
      tpu.vector_store %arg8[%c0_11, %c0_12], %18 {strides = array<i32>} : memref<256x64xf32, #tpu.memory_space<vmem>>, vector<256x64xf32>,
      %cst_13 = arith.constant 0xFF800000 : f32
      %20 = vector.broadcast %cst_13 : f32 to vector<256x1xf32>
      %c0_14 = arith.constant 0 : index
      %c0_15 = arith.constant 0 : index
      %21 = vector.load %arg9[%c0_14, %c0_15] : memref<256x1xf32, #tpu.memory_space<vmem>>, vector<256x1xf32>
      tpu.vector_store %arg9[%c0_14, %c0_15], %20 {strides = array<i32>} : memref<256x1xf32, #tpu.memory_space<vmem>>, vector<256x1xf32>,
      %cst_16 = arith.constant 0.000000e+00 : f32
      %22 = vector.broadcast %cst_16 : f32 to vector<256x1xf32>
      %c0_17 = arith.constant 0 : index
      %c0_18 = arith.constant 0 : index
      %23 = vector.load %arg10[%c0_17, %c0_18] : memref<256x1xf32, #tpu.memory_space<vmem>>, vector<256x1xf32>
      tpu.vector_store %arg10[%c0_17, %c0_18], %22 {strides = array<i32>} : memref<256x1xf32, #tpu.memory_space<vmem>>, vector<256x1xf32>,
      %cst_19 = arith.constant 0.000000e+00 : f32
      %24 = vector.broadcast %cst_19 : f32 to vector<256x64xf32>
      %c0_20 = arith.constant 0 : index
      %c0_21 = arith.constant 0 : index
      %25 = vector.load %arg11[%c0_20, %c0_21] : memref<256x64xf32, #tpu.memory_space<vmem>>, vector<256x64xf32>
      tpu.vector_store %arg11[%c0_20, %c0_21], %24 {strides = array<i32>} : memref<256x64xf32, #tpu.memory_space<vmem>>, vector<256x64xf32>,
    } else {
    }
    %c256_i32_2 = arith.constant 256 : i32
    %5 = arith.addi %0, %c256_i32_2 : i32
    %c1_i32 = arith.constant 1 : i32
    %6 = arith.subi %5, %c1_i32 : i32
    %7 = arith.cmpi sle, %1, %6 : i32
    %8 = arith.extui %7 : i1 to i32
    %c0_i32_3 = arith.constant 0 : i32
    %9 = arith.cmpi ne, %8, %c0_i32_3 : i32
    scf.if %9 {
      %c0 = arith.constant 0 : index
      %c0_6 = arith.constant 0 : index
      %c0_7 = arith.constant 0 : index
      %13 = vector.load %arg4[%c0, %c0_6, %c0_7] : memref<1x256x384xf32, #tpu.memory_space<vmem>>, vector<1x256x384xf32>
      %14 = vector.shape_cast %13 : vector<1x256x384xf32> to vector<256x384xf32>
      %c0_8 = arith.constant 0 : index
      %c0_9 = arith.constant 0 : index
      %15 = vector.load %arg6[%c0_8, %c0_9] : memref<384x128xf32, #tpu.memory_space<vmem>>, vector<384x128xf32>
      %cst = arith.constant dense<0.000000e+00> : vector<256x128xf32>
      %16 = tpu.matmul %14, %15, %cst {dimension_numbers = #tpu.dot_dimension_numbers<[1], [0], [0], [1], [0, 0, 1, 1], [], []>} : vector<256x384xf32>, vector<384x128xf32>, vector<256x128xf32> -> vector<256x128xf32>
      %17 = vector.extract_strided_slice %16 {offsets = [0, 0], sizes = [256, 64], strides = [1, 1]} : vector<256x128xf32> to vector<256x64xf32>
      %18 = vector.extract_strided_slice %16 {offsets = [0, 64], sizes = [256, 64], strides = [1, 1]} : vector<256x128xf32> to vector<256x64xf32>
      %c0_10 = arith.constant 0 : index
      %c0_11 = arith.constant 0 : index
      %19 = vector.load %arg8[%c0_10, %c0_11] : memref<256x64xf32, #tpu.memory_space<vmem>>, vector<256x64xf32>
      %cst_12 = arith.constant dense<0.000000e+00> : vector<256x256xf32>
      %20 = tpu.matmul %19, %17, %cst_12 {dimension_numbers = #tpu.dot_dimension_numbers<[1], [1], [0], [0], [0, 0, 1, 0], [], []>} : vector<256x64xf32>, vector<256x64xf32>, vector<256x256xf32> -> vector<256x256xf32>
      %21 = tpu.iota {dimensions = array<i32: 0>} : vector<256x256xi32>
      %22 = vector.broadcast %0 : i32 to vector<256x256xi32>
      %23 = arith.addi %22, %21 : vector<256x256xi32>
      %24 = tpu.iota {dimensions = array<i32: 1>} : vector<256x256xi32>
      %25 = vector.broadcast %1 : i32 to vector<256x256xi32>
      %26 = arith.addi %25, %24 : vector<256x256xi32>
      %27 = arith.cmpi sle, %26, %23 : vector<256x256xi32>
      %cst_13 = arith.constant 0xFF800000 : f32
      %28 = vector.broadcast %cst_13 : f32 to vector<256x256xf32>
      %29 = arith.select %27, %20, %28 : vector<256x256xi1>, vector<256x256xf32>
      %c0_14 = arith.constant 0 : index
      %c0_15 = arith.constant 0 : index
      %30 = vector.load %arg9[%c0_14, %c0_15] : memref<256x1xf32, #tpu.memory_space<vmem>>, vector<256x1xf32>
      %cst_16 = arith.constant dense<0xFF800000> : vector<256xf32>
      %31 = vector.multi_reduction <maximumf>, %29, %cst_16 [1] : vector<256x256xf32> to vector<256xf32>
      %32 = vector.shape_cast %31 : vector<256xf32> to vector<256x1xf32>
      %33 = arith.maximumf %30, %32 : vector<256x1xf32>
      %34 = arith.subf %30, %33 : vector<256x1xf32>
      %35 = math.exp %34 : vector<256x1xf32>
      %36 = vector.broadcast %33 : vector<256x1xf32> to vector<256x256xf32>
      %37 = arith.subf %29, %36 : vector<256x256xf32>
      %38 = math.exp %37 : vector<256x256xf32>
      %c0_17 = arith.constant 0 : index
      %c0_18 = arith.constant 0 : index
      %39 = vector.load %arg10[%c0_17, %c0_18] : memref<256x1xf32, #tpu.memory_space<vmem>>, vector<256x1xf32>
      %40 = arith.mulf %35, %39 : vector<256x1xf32>
      %cst_19 = arith.constant dense<0.000000e+00> : vector<256xf32>
      %41 = vector.multi_reduction <add>, %38, %cst_19 [1] : vector<256x256xf32> to vector<256xf32>
      %42 = vector.shape_cast %41 : vector<256xf32> to vector<256x1xf32>
      %43 = arith.addf %40, %42 : vector<256x1xf32>
      %c0_20 = arith.constant 0 : index
      %c0_21 = arith.constant 0 : index
      %44 = vector.load %arg10[%c0_20, %c0_21] : memref<256x1xf32, #tpu.memory_space<vmem>>, vector<256x1xf32>
      tpu.vector_store %arg10[%c0_20, %c0_21], %43 {strides = array<i32>} : memref<256x1xf32, #tpu.memory_space<vmem>>, vector<256x1xf32>,
      %c0_22 = arith.constant 0 : index
      %c0_23 = arith.constant 0 : index
      %45 = vector.load %arg11[%c0_22, %c0_23] : memref<256x64xf32, #tpu.memory_space<vmem>>, vector<256x64xf32>
      %46 = vector.broadcast %35 : vector<256x1xf32> to vector<256x64xf32>
      %47 = arith.mulf %46, %45 : vector<256x64xf32>
      %cst_24 = arith.constant dense<0.000000e+00> : vector<256x64xf32>
      %48 = tpu.matmul %38, %18, %cst_24 {dimension_numbers = #tpu.dot_dimension_numbers<[1], [0], [0], [1], [0, 0, 1, 1], [], []>} : vector<256x256xf32>, vector<256x64xf32>, vector<256x64xf32> -> vector<256x64xf32>
      %49 = arith.addf %47, %48 : vector<256x64xf32>
      %c0_25 = arith.constant 0 : index
      %c0_26 = arith.constant 0 : index
      %50 = vector.load %arg11[%c0_25, %c0_26] : memref<256x64xf32, #tpu.memory_space<vmem>>, vector<256x64xf32>
      tpu.vector_store %arg11[%c0_25, %c0_26], %49 {strides = array<i32>} : memref<256x64xf32, #tpu.memory_space<vmem>>, vector<256x64xf32>,
      %c0_27 = arith.constant 0 : index
      %c0_28 = arith.constant 0 : index
      %51 = vector.load %arg9[%c0_27, %c0_28] : memref<256x1xf32, #tpu.memory_space<vmem>>, vector<256x1xf32>
      tpu.vector_store %arg9[%c0_27, %c0_28], %33 {strides = array<i32>} : memref<256x1xf32, #tpu.memory_space<vmem>>, vector<256x1xf32>,
    } else {
    }
    %c0_i32_4 = arith.constant 0 : i32
    %10 = arith.cmpi eq, %arg2, %c0_i32_4 : i32
    %11 = arith.extui %10 : i1 to i32
    %c0_i32_5 = arith.constant 0 : i32
    %12 = arith.cmpi ne, %11, %c0_i32_5 : i32
    scf.if %12 {
      %c0 = arith.constant 0 : index
      %c0_6 = arith.constant 0 : index
      %13 = vector.load %arg11[%c0, %c0_6] : memref<256x64xf32, #tpu.memory_space<vmem>>, vector<256x64xf32>
      %c0_7 = arith.constant 0 : index
      %c0_8 = arith.constant 0 : index
      %14 = vector.load %arg10[%c0_7, %c0_8] : memref<256x1xf32, #tpu.memory_space<vmem>>, vector<256x1xf32>
      %15 = tpu.reciprocal %14 : vector<256x1xf32> -> vector<256x1xf32>
      %16 = vector.broadcast %15 : vector<256x1xf32> to vector<256x64xf32>
      %17 = arith.mulf %13, %16 : vector<256x64xf32>
      %c0_9 = arith.constant 0 : index
      %c0_10 = arith.constant 0 : index
      %c0_11 = arith.constant 0 : index
      %18 = vector.load %arg7[%c0_9, %c0_10, %c0_11] : memref<1x256x64xf32, #tpu.memory_space<vmem>>, vector<1x256x64xf32>
      %19 = vector.shape_cast %18 : vector<1x256x64xf32> to vector<256x64xf32>
      %20 = vector.shape_cast %17 : vector<256x64xf32> to vector<1x256x64xf32>
      tpu.vector_store %arg7[%c0_9, %c0_10, %c0_11], %20 {strides = array<i32>} : memref<1x256x64xf32, #tpu.memory_space<vmem>>, vector<1x256x64xf32>,
    } else {
    }
    return
  }
  func.func @transform_0(%arg0: i32, %arg1: i32, %arg2: i32) -> (i32, i32, i32) {
    %c0_i32 = arith.constant 0 : i32
    %c0_i32_0 = arith.constant 0 : i32
    return %arg0, %arg1, %c0_i32 : i32, i32, i32
  }
  func.func @transform_1(%arg0: i32, %arg1: i32, %arg2: i32) -> (i32, i32, i32) {
    %c0_i32 = arith.constant 0 : i32
    %c0_i32_0 = arith.constant 0 : i32
    return %arg0, %arg2, %c0_i32 : i32, i32, i32
  }
  func.func @transform_2(%arg0: i32, %arg1: i32, %arg2: i32) -> (i32, i32) {
    %c0_i32 = arith.constant 0 : i32
    %c0_i32_0 = arith.constant 0 : i32
    %c0_i32_1 = arith.constant 0 : i32
    return %c0_i32, %c0_i32_0 : i32, i32
  }
  func.func @transform_3(%arg0: i32, %arg1: i32, %arg2: i32) -> (i32, i32) {
    %c0_i32 = arith.constant 0 : i32
    %c0_i32_0 = arith.constant 0 : i32
    %c0_i32_1 = arith.constant 0 : i32
    return %c0_i32, %c0_i32_0 : i32, i32
  }
  func.func @transform_4(%arg0: i32, %arg1: i32, %arg2: i32) -> (i32, i32, i32) {
    %c0_i32 = arith.constant 0 : i32
    %c0_i32_0 = arith.constant 0 : i32
    return %arg0, %arg1, %c0_i32 : i32, i32, i32
  }
}

</mosaic_0001>

<llo_original>
// kernel: tpu_custom_call.1
$region0: #{tpu_custom_call.1}
  #allocation0 [shape = 'u32[]', space=smem, size = 0x4, offset = 0x4, fixed_abs, tag = 'smem constant byte address 0x4 - core index']
  #allocation1 [shape = 'u32[72,128]{1,0:T(1,128)}', space=vmem, size = 0x9000, scoped, tag = 'internal scratch']
  #allocation2 [shape = 'f32[256,64]{1,0:T(8,128)}', space=vmem, size = 0x20000, scoped, tag = 'scratch operand']
  #allocation3 [shape = 'f32[256,1]{1,0:T(8,128)}', space=vmem, size = 0x20000, scoped, tag = 'scratch operand']
  #allocation4 [shape = 'f32[256,1]{1,0:T(8,128)}', space=vmem, size = 0x20000, scoped, tag = 'scratch operand']
  #allocation5 [shape = 'f32[256,64]{1,0:T(8,128)}', space=vmem, size = 0x20000, scoped, tag = 'scratch operand']
  %s0 = inlined_call_operand.hbm [shape: f32[2,256,384], index: 0, kind: input, shape index: {}]
  %s1 = inlined_call_operand.hbm [shape: f32[2,256,384], index: 1, kind: input, shape index: {}]
  %s2 = inlined_call_operand.vmem [shape: f32[384,64], index: 2, kind: input, shape index: {}]
  %s3 = inlined_call_operand.vmem [shape: f32[384,128], index: 3, kind: input, shape index: {}]
  %s4 = inlined_call_operand.vmem [shape: f32[2,256,64], index: 4, kind: output, shape index: {}]
  %s5 = sld [smem:[#allocation0]]
  $region69: #{tpu_custom_call.1} parent=0
    _
  %s7 = ssub.s32 1, %s5
  %s8 = scalar_select 0, %s7, %s5
  $region1: #{tpu_custom_call.1} parent=0
    #allocation6 [shape = 'u8[786432]{0}', space=vmem, size = 0xc0000, scoped, tag = 'input window, operand 0']
    #allocation7 [shape = 's32[2]{0}', space=sflag, size = 0x8, scoped, tag = 'scoped memory for tpu_custom_call.1']
    #allocation8 [shape = 'u8[786432]{0}', space=vmem, size = 0xc0000, scoped, tag = 'input window, operand 1']
    #allocation9 [shape = 's32[2]{0}', space=sflag, size = 0x8, scoped, tag = 'scoped memory for tpu_custom_call.1']
    %9 = vsyncpa [#allocation7], 0
    %s10 = scalar_lea.sflag [#allocation7], 1
    %11 = vsyncpa %s10, 0
    %12 = vsyncpa [#allocation9], 0
    %s13 = scalar_lea.sflag [#allocation9], 1
    %14 = vsyncpa %s13, 0
    loop: start=0, step=1, limit=4
    $region2: #{tpu_custom_call.1} parent=1 // loop_pre_header
      _
    $region3: #{tpu_custom_call.1} parent=1 // loop_header
      %s16 = sphi 0, %s20
      %p17 = scmp.ge.s32.totalorder %s16, 4
      %s23 = sphi 0, %s42
      %s24 = sphi 0, %s38
      %s25 = sphi 0, %s34
      %s26 = sphi 0, %s23
      %s27 = sphi 0, %s24
      %s28 = sphi 0, %s25
      %s29 = sphi 0, %s26
      %s30 = sphi 0, %s27
      %s31 = sphi 0, %s28
      %s47 = sphi 0, %s49
      %s50 = sphi 0, %s47
      %s51 = sphi 0, %s50
      %s67 = sphi 0, %s51
      %s75 = sphi 0, %s77
      %s78 = sphi 0, %s75
      %s79 = sphi 0, %s78
      %s95 = sphi 0, %s79
      %s99 = sphi 0, %s99
      %s101 = sphi 0, %s99
      %s102 = sphi 0, %s101
      %s116 = sphi 0, %s102
      %s120 = sphi 0, %s120
      %s122 = sphi 0, %s120
      %s123 = sphi 0, %s122
      %s137 = sphi 0, %s123
      %s145 = sphi 0, %s147
      %s148 = sphi 0, %s145
      %s149 = sphi 0, %s148
      %s165 = sphi 0, %s149
    $region4: #{tpu_custom_call.1} parent=1 // loop_header_branch
      %19 = sbr.rel (%p17) target = $region8
    $region5: #{tpu_custom_call.1} parent=1 // loop_body
      %s21 = ssub.s32 %s16, 1
      %s22 = ssub.s32 %s16, 2
      %s32 = sadd.s32 1, %s25
      %p33 = scmp.ge.s32.totalorder %s32, 1
      %s34 = scalar_select %p33, 0, %s32
      %s35 = sadd.s32 1, %s24
      %s36 = scalar_select %p33, %s35, %s24
      %p37 = scmp.ge.s32.totalorder %s36, 1
      %s38 = scalar_select %p37, 0, %s36
      %s39 = sadd.s32 1, %s23
      %s40 = scalar_select %p37, %s39, %s23
      %p41 = scmp.ge.s32.totalorder %s40, 2
      %s42 = scalar_select %p41, 0, %s40
      %s43 = ssub.s32 %s23, %s42
      %s44 = ssub.s32 %s24, %s38
      %s45 = sor.u32 %s43, %s44
      %p46 = scmp.eq.s32.totalorder %s45, 0
      %s48 = sadd.s32 %s47, 1
      %s49 = scalar_select %p46, %s47, %s48
      %p52 = pneg %p46
      %p53 = scmp.eq.s32.totalorder %s16, 1
      %p54 = por %p52, %p53
      %p55 = scmp.ne.s32.totalorder %s47, %s50
      %p56 = scmp.eq.s32.totalorder %s16, 0
      %p57 = por %p55, %p56
      %p58 = scmp.ne.s32.totalorder %s47, %s50
      %p59 = scmp.eq.s32.totalorder %s21, 1
      %p60 = por %p58, %p59
      %p61 = scmp.ne.s32.totalorder %s50, %s51
      %p62 = scmp.eq.s32.totalorder %s21, 0
      %p63 = por %p61, %p62
      %p64 = scmp.ne.s32.totalorder %s50, %s51
      %p65 = scmp.eq.s32.totalorder %s22, 1
      %p66 = por %p64, %p65
      %p68 = scmp.ne.s32.totalorder %s51, %s67
      %p69 = scmp.eq.s32.totalorder %s22, 0
      %p70 = por %p68, %p69
      %s71 = ssub.s32 %s23, %s42
      %s72 = ssub.s32 %s25, %s34
      %s73 = sor.u32 %s71, %s72
      %p74 = scmp.eq.s32.totalorder %s73, 0
      %s76 = sadd.s32 %s75, 1
      %s77 = scalar_select %p74, %s75, %s76
      %p80 = pneg %p74
      %p81 = scmp.eq.s32.totalorder %s16, 1
      %p82 = por %p80, %p81
      %p83 = scmp.ne.s32.totalorder %s75, %s78
      %p84 = scmp.eq.s32.totalorder %s16, 0
      %p85 = por %p83, %p84
      %p86 = scmp.ne.s32.totalorder %s75, %s78
      %p87 = scmp.eq.s32.totalorder %s21, 1
      %p88 = por %p86, %p87
      %p89 = scmp.ne.s32.totalorder %s78, %s79
      %p90 = scmp.eq.s32.totalorder %s21, 0
      %p91 = por %p89, %p90
      %p92 = scmp.ne.s32.totalorder %s78, %s79
      %p93 = scmp.eq.s32.totalorder %s22, 1
      %p94 = por %p92, %p93
      %p96 = scmp.ne.s32.totalorder %s79, %s95
      %p97 = scmp.eq.s32.totalorder %s22, 0
      %p98 = por %p96, %p97
      %s100 = sadd.s32 %s99, 1
      %p103 = scmp.eq.s32.totalorder %s16, 1
      %p104 = scmp.ne.s32.totalorder %s99, %s101
      %p105 = scmp.eq.s32.totalorder %s16, 0
      %p106 = por %p104, %p105
      %p107 = scmp.ne.s32.totalorder %s99, %s101
      %p108 = scmp.eq.s32.totalorder %s21, 1
      %p109 = por %p107, %p108
      %p110 = scmp.ne.s32.totalorder %s101, %s102
      %p111 = scmp.eq.s32.totalorder %s21, 0
      %p112 = por %p110, %p111
      %p113 = scmp.ne.s32.totalorder %s101, %s102
      %p114 = scmp.eq.s32.totalorder %s22, 1
      %p115 = por %p113, %p114
      %p117 = scmp.ne.s32.totalorder %s102, %s116
      %p118 = scmp.eq.s32.totalorder %s22, 0
      %p119 = por %p117, %p118
      %s121 = sadd.s32 %s120, 1
      %p124 = scmp.eq.s32.totalorder %s16, 1
      %p125 = scmp.ne.s32.totalorder %s120, %s122
      %p126 = scmp.eq.s32.totalorder %s16, 0
      %p127 = por %p125, %p126
      %p128 = scmp.ne.s32.totalorder %s120, %s122
      %p129 = scmp.eq.s32.totalorder %s21, 1
      %p130 = por %p128, %p129
      %p131 = scmp.ne.s32.totalorder %s122, %s123
      %p132 = scmp.eq.s32.totalorder %s21, 0
      %p133 = por %p131, %p132
      %p134 = scmp.ne.s32.totalorder %s122, %s123
      %p135 = scmp.eq.s32.totalorder %s22, 1
      %p136 = por %p134, %p135
      %p138 = scmp.ne.s32.totalorder %s123, %s137
      %p139 = scmp.eq.s32.totalorder %s22, 0
      %p140 = por %p138, %p139
      %s141 = ssub.s32 %s23, %s42
      %s142 = ssub.s32 %s24, %s38
      %s143 = sor.u32 %s141, %s142
      %p144 = scmp.eq.s32.totalorder %s143, 0
      %s146 = sadd.s32 %s145, 1
      %s147 = scalar_select %p144, %s145, %s146
      %p150 = pneg %p144
      %p151 = scmp.eq.s32.totalorder %s16, 1
      %p152 = por %p150, %p151
      %p153 = scmp.ne.s32.totalorder %s145, %s148
      %p154 = scmp.eq.s32.totalorder %s16, 0
      %p155 = por %p153, %p154
      %p156 = scmp.ne.s32.totalorder %s145, %s148
      %p157 = scmp.eq.s32.totalorder %s21, 1
      %p158 = por %p156, %p157
      %p159 = scmp.ne.s32.totalorder %s148, %s149
      %p160 = scmp.eq.s32.totalorder %s21, 0
      %p161 = por %p159, %p160
      %p162 = scmp.ne.s32.totalorder %s148, %s149
      %p163 = scmp.eq.s32.totalorder %s22, 1
      %p164 = por %p162, %p163
      %p166 = scmp.ne.s32.totalorder %s149, %s165
      %p167 = scmp.eq.s32.totalorder %s22, 0
      %p168 = por %p166, %p167
      %p169 = scmp.le.s32.totalorder 1, %s16
      %p170 = scmp.lt.s32.totalorder %s16, 3
      %p171 = pnand %p169, %p170
      %p172 = pneg %p171
      // Predicated region
      $region9: #{tpu_custom_call.1} parent=5 // pred_check
        _
      $region10: #{tpu_custom_call.1} parent=5 // pred_check_branch
        %174 = sbr.rel (%p171) target = $region12
      $region11: #{tpu_custom_call.1} parent=5 // pred_region
        %s175 = ssub.s32 %s16, 1
        // Predicated region
        $region13: #{tpu_custom_call.1} parent=11 // pred_check
          %p176 = pneg %p112
        $region14: #{tpu_custom_call.1} parent=11 // pred_check_branch
          %178 = sbr.rel (%p176) target = $region16
        $region15: #{tpu_custom_call.1} parent=11 // pred_region
          _
        $region16: #{tpu_custom_call.1} parent=11 // pred_fallthru
          _
        // Predicated region
        $region17: #{tpu_custom_call.1} parent=11 // pred_check
          %p179 = pneg %p133
        $region18: #{tpu_custom_call.1} parent=11 // pred_check_branch
          %181 = sbr.rel (%p179) target = $region20
        $region19: #{tpu_custom_call.1} parent=11 // pred_region
          _
        $region20: #{tpu_custom_call.1} parent=11 // pred_fallthru
          _
      $region12: #{tpu_custom_call.1} parent=5 // pred_fallthru
        _
      %p182 = scmp.lt.s32.totalorder %s16, 2
      // Predicated region
      $region21: #{tpu_custom_call.1} parent=5 // pred_check
        %p183 = pneg %p182
      $region22: #{tpu_custom_call.1} parent=5 // pred_check_branch
        %185 = sbr.rel (%p183) target = $region24
      $region23: #{tpu_custom_call.1} parent=5 // pred_region
        // Predicated region
        $region25: #{tpu_custom_call.1} parent=23 // pred_check
          %p186 = pneg %p57
        $region26: #{tpu_custom_call.1} parent=23 // pred_check_branch
          %188 = sbr.rel (%p186) target = $region28
        $region27: #{tpu_custom_call.1} parent=23 // pred_region
          %s189 = sand.u32 %s47, 1
          %s190 = scalar_lea.sflag [#allocation7], %s189
          %s191 = sand.u32 %s47, 1
          %s192 = smul.addr %s191, 768
          %s193 = scalar_lea.vmem [#allocation6], %s192
          %s194 = smul.u32 32, %s24
          %196 = vsyncadd %s190, 0
          %s197 = smul.addr %s194, 3
          %s198 = smul.addr %s23, 96
          %s199 = sadd.s32 %s197, %s198
          %s200 = smul.addr %s199, 8
          %s201 = scalar_lea.hbm %s0, %s200
          %s202 = sshll.u32 %s201, 4
          %s203 = int_to_ptr.hbm [resolvable:$true] %s202
          %s204 = sshll.u32 %s193, 4
          %s205 = int_to_ptr.vmem [resolvable:$true] %s204
          %210 = dma.hbm_to_vmem [thread:$0]  %s203, 12288, %s205, %s190, 384, 384, 24
        $region28: #{tpu_custom_call.1} parent=23 // pred_fallthru
          _
        // Predicated region
        $region29: #{tpu_custom_call.1} parent=23 // pred_check
          %p211 = pneg %p85
        $region30: #{tpu_custom_call.1} parent=23 // pred_check_branch
          %213 = sbr.rel (%p211) target = $region32
        $region31: #{tpu_custom_call.1} parent=23 // pred_region
          %s214 = sand.u32 %s75, 1
          %s215 = scalar_lea.sflag [#allocation9], %s214
          %s216 = sand.u32 %s75, 1
          %s217 = smul.addr %s216, 768
          %s218 = scalar_lea.vmem [#allocation8], %s217
          %s219 = smul.u32 32, %s25
          %221 = vsyncadd %s215, 0
          %s222 = smul.addr %s219, 3
          %s223 = smul.addr %s23, 96
          %s224 = sadd.s32 %s222, %s223
          %s225 = smul.addr %s224, 8
          %s226 = scalar_lea.hbm %s1, %s225
          %s227 = sshll.u32 %s226, 4
          %s228 = int_to_ptr.hbm [resolvable:$true] %s227
          %s229 = sshll.u32 %s218, 4
          %s230 = int_to_ptr.vmem [resolvable:$true] %s229
          %235 = dma.hbm_to_vmem [thread:$0]  %s228, 12288, %s230, %s215, 384, 384, 24
        $region32: #{tpu_custom_call.1} parent=23 // pred_fallthru
          _
      $region24: #{tpu_custom_call.1} parent=5 // pred_fallthru
        _
      %p236 = scmp.le.s32.totalorder 1, %s16
      %p237 = scmp.lt.s32.totalorder %s16, 3
      %p238 = pnand %p236, %p237
      %p239 = pneg %p238
      // Predicated region
      $region33: #{tpu_custom_call.1} parent=5 // pred_check
        _
      $region34: #{tpu_custom_call.1} parent=5 // pred_check_branch
        %241 = sbr.rel (%p238) target = $region36
      $region35: #{tpu_custom_call.1} parent=5 // pred_region
        %s242 = ssub.s32 %s16, 1
        %s243 = sand.u32 %s50, 1
        %s244 = scalar_lea.sflag [#allocation7], %s243
        %s245 = sand.u32 %s50, 1
        %s246 = smul.addr %s245, 768
        %s247 = scalar_lea.vmem [#allocation6], %s246
        // Predicated region
        $region37: #{tpu_custom_call.1} parent=35 // pred_check
          %p248 = pneg %p63
        $region38: #{tpu_custom_call.1} parent=35 // pred_check_branch
          %250 = sbr.rel (%p248) target = $region40
        $region39: #{tpu_custom_call.1} parent=35 // pred_region
          %252 = dma.done %s244, 12288
        $region40: #{tpu_custom_call.1} parent=35 // pred_fallthru
          _
        %s253 = sand.u32 %s78, 1
        %s254 = scalar_lea.sflag [#allocation9], %s253
        %s255 = sand.u32 %s78, 1
        %s256 = smul.addr %s255, 768
        %s257 = scalar_lea.vmem [#allocation8], %s256
        // Predicated region
        $region41: #{tpu_custom_call.1} parent=35 // pred_check
          %p258 = pneg %p91
        $region42: #{tpu_custom_call.1} parent=35 // pred_check_branch
          %260 = sbr.rel (%p258) target = $region44
        $region43: #{tpu_custom_call.1} parent=35 // pred_region
          %262 = dma.done %s254, 12288
        $region44: #{tpu_custom_call.1} parent=35 // pred_fallthru
          _
        %s263 = sand.u32 %s50, 1
        %s264 = scalar_lea.sflag [#allocation7], %s263
        %s265 = sand.u32 %s50, 1
        %s266 = smul.addr %s265, 768
        %s267 = scalar_lea.vmem [#allocation6], %s266
        %p268 = pneg %p63
        %p269 = pneg %p60
        %s270 = sand.u32 %s78, 1
        %s271 = scalar_lea.sflag [#allocation9], %s270
        %s272 = sand.u32 %s78, 1
        %s273 = smul.addr %s272, 768
        %s274 = scalar_lea.vmem [#allocation8], %s273
        %p275 = pneg %p91
        %p276 = pneg %p88
        %p277 = pneg %p112
        %p278 = pneg %p109
        %p279 = pneg %p133
        %p280 = pneg %p130
        %p281 = pneg %p161
        %p282 = pneg %p158
        %s283 = smul.u32 32, %s27
        %p284 = scmp.lt.s32.totalorder %s26, 1
        %s285 = scalar_select %p284, %s26, 1
        %p286 = scmp.lt.s32.totalorder %s283, 31
        %s287 = scalar_select %p286, %s283, 31
        %s288 = smul.addr %s285, 32
        %s289 = sadd.s32 %s287, %s288
        %s290 = smul.addr %s289, 8
        %s291 = scalar_lea.vmem %s4, %s290
        %s292 = smul.u32 32, %s27
        %s293 = smul.u32 32, %s28
        %s294 = smul.u32 32, %s27
        %p295 = scmp.lt.s32.totalorder %s26, 1
        %s296 = scalar_select %p295, %s26, 1
        %p297 = scmp.lt.s32.totalorder %s294, 31
        %s298 = scalar_select %p297, %s294, 31
        %s299 = smul.addr %s296, 32
        %s300 = sadd.s32 %s298, %s299
        %s301 = smul.addr %s300, 8
        %s302 = scalar_lea.vmem %s4, %s301
        %s303 = smul.u32 32, %s27
        %s304 = smul.u32 %s27, 256
        %s305 = smul.u32 %s28, 256
        %p306 = scmp.eq.s32.totalorder %s28, 0
        // Predicated region
        $region45: #{tpu_custom_call.1} parent=35 // pred_check
          %p307 = pneg %p306
        $region46: #{tpu_custom_call.1} parent=35 // pred_check_branch
          %309 = sbr.rel (%p307) target = $region48
        $region47: #{tpu_custom_call.1} parent=35 // pred_region
          %v310 = vld [vmem:[%s247] sm:$0xff]
          %v311 = vld [vmem:[%s247 + $0x8] sm:$0xff]
          %v312 = vld [vmem:[%s247 + $0x10] sm:$0xff]
          %v313 = vld [vmem:[%s247 + $0x18] sm:$0xff]
          %v314 = vld [vmem:[%s247 + $0x20] sm:$0xff]
          %v315 = vld [vmem:[%s247 + $0x28] sm:$0xff]
          %v316 = vld [vmem:[%s247 + $0x30] sm:$0xff]
          %v317 = vld [vmem:[%s247 + $0x38] sm:$0xff]
          %v318 = vld [vmem:[%s247 + $0x40] sm:$0xff]
          %v319 = vld [vmem:[%s247 + $0x48] sm:$0xff]
          %v320 = vld [vmem:[%s247 + $0x50] sm:$0xff]
          %v321 = vld [vmem:[%s247 + $0x58] sm:$0xff]
          %v322 = vld [vmem:[%s247 + $0x60] sm:$0xff]
          %v323 = vld [vmem:[%s247 + $0x68] sm:$0xff]
          %v324 = vld [vmem:[%s247 + $0x70] sm:$0xff]
          %v325 = vld [vmem:[%s247 + $0x78] sm:$0xff]
          %v326 = vld [vmem:[%s247 + $0x80] sm:$0xff]
          %v327 = vld [vmem:[%s247 + $0x88] sm:$0xff]
          %v328 = vld [vmem:[%s247 + $0x90] sm:$0xff]
          %v329 = vld [vmem:[%s247 + $0x98] sm:$0xff]
          %v330 = vld [vmem:[%s247 + $0xa0] sm:$0xff]
          %v331 = vld [vmem:[%s247 + $0xa8] sm:$0xff]
          %v332 = vld [vmem:[%s247 + $0xb0] sm:$0xff]
          %v333 = vld [vmem:[%s247 + $0xb8] sm:$0xff]
          %v334 = vld [vmem:[%s247 + $0xc0] sm:$0xff]
          %v335 = vld [vmem:[%s247 + $0xc8] sm:$0xff]
          %v336 = vld [vmem:[%s247 + $0xd0] sm:$0xff]
          %v337 = vld [vmem:[%s247 + $0xd8] sm:$0xff]
          %v338 = vld [vmem:[%s247 + $0xe0] sm:$0xff]
          %v339 = vld [vmem:[%s247 + $0xe8] sm:$0xff]
          %v340 = vld [vmem:[%s247 + $0xf0] sm:$0xff]
          %v341 = vld [vmem:[%s247 + $0xf8] sm:$0xff]
          %v342 = vld [vmem:[%s247 + $0x100] sm:$0xff]
          %v343 = vld [vmem:[%s247 + $0x108] sm:$0xff]
          %v344 = vld [vmem:[%s247 + $0x110] sm:$0xff]
          %v345 = vld [vmem:[%s247 + $0x118] sm:$0xff]
          %v346 = vld [vmem:[%s247 + $0x120] sm:$0xff]
          %v347 = vld [vmem:[%s247 + $0x128] sm:$0xff]
          %v348 = vld [vmem:[%s247 + $0x130] sm:$0xff]
          %v349 = vld [vmem:[%s247 + $0x138] sm:$0xff]
          %v350 = vld [vmem:[%s247 + $0x140] sm:$0xff]
          %v351 = vld [vmem:[%s247 + $0x148] sm:$0xff]
          %v352 = vld [vmem:[%s247 + $0x150] sm:$0xff]
          %v353 = vld [vmem:[%s247 + $0x158] sm:$0xff]
          %v354 = vld [vmem:[%s247 + $0x160] sm:$0xff]
          %v355 = vld [vmem:[%s247 + $0x168] sm:$0xff]
          %v356 = vld [vmem:[%s247 + $0x170] sm:$0xff]
          %v357 = vld [vmem:[%s247 + $0x178] sm:$0xff]
          %v358 = vld [vmem:[%s247 + $0x180] sm:$0xff]
          %v359 = vld [vmem:[%s247 + $0x188] sm:$0xff]
          %v360 = vld [vmem:[%s247 + $0x190] sm:$0xff]
          %v361 = vld [vmem:[%s247 + $0x198] sm:$0xff]
          %v362 = vld [vmem:[%s247 + $0x1a0] sm:$0xff]
          %v363 = vld [vmem:[%s247 + $0x1a8] sm:$0xff]
          %v364 = vld [vmem:[%s247 + $0x1b0] sm:$0xff]
          %v365 = vld [vmem:[%s247 + $0x1b8] sm:$0xff]
          %v366 = vld [vmem:[%s247 + $0x1c0] sm:$0xff]
          %v367 = vld [vmem:[%s247 + $0x1c8] sm:$0xff]
          %v368 = vld [vmem:[%s247 + $0x1d0] sm:$0xff]
          %v369 = vld [vmem:[%s247 + $0x1d8] sm:$0xff]
          %v370 = vld [vmem:[%s247 + $0x1e0] sm:$0xff]
          %v371 = vld [vmem:[%s247 + $0x1e8] sm:$0xff]
          %v372 = vld [vmem:[%s247 + $0x1f0] sm:$0xff]
          %v373 = vld [vmem:[%s247 + $0x1f8] sm:$0xff]
          %v374 = vld [vmem:[%s247 + $0x200] sm:$0xff]
          %v375 = vld [vmem:[%s247 + $0x208] sm:$0xff]
          %v376 = vld [vmem:[%s247 + $0x210] sm:$0xff]
          %v377 = vld [vmem:[%s247 + $0x218] sm:$0xff]
          %v378 = vld [vmem:[%s247 + $0x220] sm:$0xff]
          %v379 = vld [vmem:[%s247 + $0x228] sm:$0xff]
          %v380 = vld [vmem:[%s247 + $0x230] sm:$0xff]
          %v381 = vld [vmem:[%s247 + $0x238] sm:$0xff]
          %v382 = vld [vmem:[%s247 + $0x240] sm:$0xff]
          %v383 = vld [vmem:[%s247 + $0x248] sm:$0xff]
          %v384 = vld [vmem:[%s247 + $0x250] sm:$0xff]
          %v385 = vld [vmem:[%s247 + $0x258] sm:$0xff]
          %v386 = vld [vmem:[%s247 + $0x260] sm:$0xff]
          %v387 = vld [vmem:[%s247 + $0x268] sm:$0xff]
          %v388 = vld [vmem:[%s247 + $0x270] sm:$0xff]
          %v389 = vld [vmem:[%s247 + $0x278] sm:$0xff]
          %v390 = vld [vmem:[%s247 + $0x280] sm:$0xff]
          %v391 = vld [vmem:[%s247 + $0x288] sm:$0xff]
          %v392 = vld [vmem:[%s247 + $0x290] sm:$0xff]
          %v393 = vld [vmem:[%s247 + $0x298] sm:$0xff]
          %v394 = vld [vmem:[%s247 + $0x2a0] sm:$0xff]
          %v395 = vld [vmem:[%s247 + $0x2a8] sm:$0xff]
          %v396 = vld [vmem:[%s247 + $0x2b0] sm:$0xff]
          %v397 = vld [vmem:[%s247 + $0x2b8] sm:$0xff]
          %v398 = vld [vmem:[%s247 + $0x2c0] sm:$0xff]
          %v399 = vld [vmem:[%s247 + $0x2c8] sm:$0xff]
          %v400 = vld [vmem:[%s247 + $0x2d0] sm:$0xff]
          %v401 = vld [vmem:[%s247 + $0x2d8] sm:$0xff]
          %v402 = vld [vmem:[%s247 + $0x2e0] sm:$0xff]
          %v403 = vld [vmem:[%s247 + $0x2e8] sm:$0xff]
          %v404 = vld [vmem:[%s247 + $0x2f0] sm:$0xff]
          %v405 = vld [vmem:[%s247 + $0x2f8] sm:$0xff]
          %v406 = vld [vmem:[%s2] sm:$0xff]
          %v407 = vld [vmem:[%s2 + $0x8] sm:$0xff]
          %v408 = vld [vmem:[%s2 + $0x10] sm:$0xff]
          %v409 = vld [vmem:[%s2 + $0x18] sm:$0xff]
          %v410 = vld [vmem:[%s2 + $0x20] sm:$0xff]
          %v411 = vld [vmem:[%s2 + $0x28] sm:$0xff]
          %v412 = vld [vmem:[%s2 + $0x30] sm:$0xff]
          %v413 = vld [vmem:[%s2 + $0x38] sm:$0xff]
          %v414 = vld [vmem:[%s2 + $0x40] sm:$0xff]
          %v415 = vld [vmem:[%s2 + $0x48] sm:$0xff]
          %v416 = vld [vmem:[%s2 + $0x50] sm:$0xff]
          %v417 = vld [vmem:[%s2 + $0x58] sm:$0xff]
          %v418 = vld [vmem:[%s2 + $0x60] sm:$0xff]
          %v419 = vld [vmem:[%s2 + $0x68] sm:$0xff]
          %v420 = vld [vmem:[%s2 + $0x70] sm:$0xff]
          %v421 = vld [vmem:[%s2 + $0x78] sm:$0xff]
          %v422 = vld [vmem:[%s2 + $0x80] sm:$0xff]
          %v423 = vld [vmem:[%s2 + $0x88] sm:$0xff]
          %v424 = vld [vmem:[%s2 + $0x90] sm:$0xff]
          %v425 = vld [vmem:[%s2 + $0x98] sm:$0xff]
          %v426 = vld [vmem:[%s2 + $0xa0] sm:$0xff]
          %v427 = vld [vmem:[%s2 + $0xa8] sm:$0xff]
          %v428 = vld [vmem:[%s2 + $0xb0] sm:$0xff]
          %v429 = vld [vmem:[%s2 + $0xb8] sm:$0xff]
          %v430 = vld [vmem:[%s2 + $0xc0] sm:$0xff]
          %v431 = vld [vmem:[%s2 + $0xc8] sm:$0xff]
          %v432 = vld [vmem:[%s2 + $0xd0] sm:$0xff]
          %v433 = vld [vmem:[%s2 + $0xd8] sm:$0xff]
          %v434 = vld [vmem:[%s2 + $0xe0] sm:$0xff]
          %v435 = vld [vmem:[%s2 + $0xe8] sm:$0xff]
          %v436 = vld [vmem:[%s2 + $0xf0] sm:$0xff]
          %v437 = vld [vmem:[%s2 + $0xf8] sm:$0xff]
          %v438 = vld [vmem:[%s2 + $0x100] sm:$0xff]
          %v439 = vld [vmem:[%s2 + $0x108] sm:$0xff]
          %v440 = vld [vmem:[%s2 + $0x110] sm:$0xff]
          %v441 = vld [vmem:[%s2 + $0x118] sm:$0xff]
          %v442 = vld [vmem:[%s2 + $0x120] sm:$0xff]
          %v443 = vld [vmem:[%s2 + $0x128] sm:$0xff]
          %v444 = vld [vmem:[%s2 + $0x130] sm:$0xff]
          %v445 = vld [vmem:[%s2 + $0x138] sm:$0xff]
          %v446 = vld [vmem:[%s2 + $0x140] sm:$0xff]
          %v447 = vld [vmem:[%s2 + $0x148] sm:$0xff]
          %v448 = vld [vmem:[%s2 + $0x150] sm:$0xff]
          %v449 = vld [vmem:[%s2 + $0x158] sm:$0xff]
          %v450 = vld [vmem:[%s2 + $0x160] sm:$0xff]
          %v451 = vld [vmem:[%s2 + $0x168] sm:$0xff]
          %v452 = vld [vmem:[%s2 + $0x170] sm:$0xff]
          %v453 = vld [vmem:[%s2 + $0x178] sm:$0xff]
          %454 = vmatpush.msra.mxu0 %v421
          %455 = vmatpush.msra.mxu0 %v420
          %456 = vmatpush.msra.mxu0 %v419
          %457 = vmatpush.msra.mxu0 %v418
          %458 = vmatpush.msra.mxu0 %v417
          %459 = vmatpush.msra.mxu0 %v416
          %460 = vmatpush.msra.mxu0 %v415
          %461 = vmatpush.msra.mxu0 %v414
          %462 = vmatpush.msra.mxu0 %v413
          %463 = vmatpush.msra.mxu0 %v412
          %464 = vmatpush.msra.mxu0 %v411
          %465 = vmatpush.msra.mxu0 %v410
          %466 = vmatpush.msra.mxu0 %v409
          %467 = vmatpush.msra.mxu0 %v408
          %468 = vmatpush.msra.mxu0 %v407
          %469 = vmatpush.msra.mxu0 %v406
          %470 = vmatmul.f32.gmra.mxu0 %v310
          %v471 = vpop.f32.mrf.mxu0
          %v472 = vadd.f32 0.0, %v471
          %473 = vmatmul.f32.gmra.mxu0 %v313
          %v474 = vpop.f32.mrf.mxu0
          %v475 = vadd.f32 0.0, %v474
          %476 = vmatmul.f32.gmra.mxu0 %v316
          %v477 = vpop.f32.mrf.mxu0
          %v478 = vadd.f32 0.0, %v477
          %479 = vmatmul.f32.gmra.mxu0 %v319
          %v480 = vpop.f32.mrf.mxu0
          %v481 = vadd.f32 0.0, %v480
          %482 = vmatmul.f32.gmra.mxu0 %v322
          %v483 = vpop.f32.mrf.mxu0
          %v484 = vadd.f32 0.0, %v483
          %485 = vmatmul.f32.gmra.mxu0 %v325
          %v486 = vpop.f32.mrf.mxu0
          %v487 = vadd.f32 0.0, %v486
          %488 = vmatmul.f32.gmra.mxu0 %v328
          %v489 = vpop.f32.mrf.mxu0
          %v490 = vadd.f32 0.0, %v489
          %491 = vmatmul.f32.gmra.mxu0 %v331
          %v492 = vpop.f32.mrf.mxu0
          %v493 = vadd.f32 0.0, %v492
          %494 = vmatmul.f32.gmra.mxu0 %v334
          %v495 = vpop.f32.mrf.mxu0
          %v496 = vadd.f32 0.0, %v495
          %497 = vmatmul.f32.gmra.mxu0 %v337
          %v498 = vpop.f32.mrf.mxu0
          %v499 = vadd.f32 0.0, %v498
          %500 = vmatmul.f32.gmra.mxu0 %v340
          %v501 = vpop.f32.mrf.mxu0
          %v502 = vadd.f32 0.0, %v501
          %503 = vmatmul.f32.gmra.mxu0 %v343
          %v504 = vpop.f32.mrf.mxu0
          %v505 = vadd.f32 0.0, %v504
          %506 = vmatmul.f32.gmra.mxu0 %v346
          %v507 = vpop.f32.mrf.mxu0
          %v508 = vadd.f32 0.0, %v507
          %509 = vmatmul.f32.gmra.mxu0 %v349
          %v510 = vpop.f32.mrf.mxu0
          %v511 = vadd.f32 0.0, %v510
          %512 = vmatmul.f32.gmra.mxu0 %v352
          %v513 = vpop.f32.mrf.mxu0
          %v514 = vadd.f32 0.0, %v513
          %515 = vmatmul.f32.gmra.mxu0 %v355
          %v516 = vpop.f32.mrf.mxu0
          %v517 = vadd.f32 0.0, %v516
          %518 = vmatmul.f32.gmra.mxu0 %v358
          %v519 = vpop.f32.mrf.mxu0
          %v520 = vadd.f32 0.0, %v519
          %521 = vmatmul.f32.gmra.mxu0 %v361
          %v522 = vpop.f32.mrf.mxu0
          %v523 = vadd.f32 0.0, %v522
          %524 = vmatmul.f32.gmra.mxu0 %v364
          %v525 = vpop.f32.mrf.mxu0
          %v526 = vadd.f32 0.0, %v525
          %527 = vmatmul.f32.gmra.mxu0 %v367
          %v528 = vpop.f32.mrf.mxu0
          %v529 = vadd.f32 0.0, %v528
          %530 = vmatmul.f32.gmra.mxu0 %v370
          %v531 = vpop.f32.mrf.mxu0
          %v532 = vadd.f32 0.0, %v531
          %533 = vmatmul.f32.gmra.mxu0 %v373
          %v534 = vpop.f32.mrf.mxu0
          %v535 = vadd.f32 0.0, %v534
          %536 = vmatmul.f32.gmra.mxu0 %v376
          %v537 = vpop.f32.mrf.mxu0
          %v538 = vadd.f32 0.0, %v537
          %539 = vmatmul.f32.gmra.mxu0 %v379
          %v540 = vpop.f32.mrf.mxu0
          %v541 = vadd.f32 0.0, %v540
          %542 = vmatmul.f32.gmra.mxu0 %v382
          %v543 = vpop.f32.mrf.mxu0
          %v544 = vadd.f32 0.0, %v543
          %545 = vmatmul.f32.gmra.mxu0 %v385
          %v546 = vpop.f32.mrf.mxu0
          %v547 = vadd.f32 0.0, %v546
          %548 = vmatmul.f32.gmra.mxu0 %v388
          %v549 = vpop.f32.mrf.mxu0
          %v550 = vadd.f32 0.0, %v549
          %551 = vmatmul.f32.gmra.mxu0 %v391
          %v552 = vpop.f32.mrf.mxu0
          %v553 = vadd.f32 0.0, %v552
          %554 = vmatmul.f32.gmra.mxu0 %v394
          %v555 = vpop.f32.mrf.mxu0
          %v556 = vadd.f32 0.0, %v555
          %557 = vmatmul.f32.gmra.mxu0 %v397
          %v558 = vpop.f32.mrf.mxu0
          %v559 = vadd.f32 0.0, %v558
          %560 = vmatmul.f32.gmra.mxu0 %v400
          %v561 = vpop.f32.mrf.mxu0
          %v562 = vadd.f32 0.0, %v561
          %563 = vmatmul.f32.gmra.mxu0 %v403
          %v564 = vpop.f32.mrf.mxu0
          %v565 = vadd.f32 0.0, %v564
          %566 = vdwg.mxu0
          %567 = vmatpush.msra.mxu0 %v437
          %568 = vmatpush.msra.mxu0 %v436
          %569 = vmatpush.msra.mxu0 %v435
          %570 = vmatpush.msra.mxu0 %v434
          %571 = vmatpush.msra.mxu0 %v433
          %572 = vmatpush.msra.mxu0 %v432
          %573 = vmatpush.msra.mxu0 %v431
          %574 = vmatpush.msra.mxu0 %v430
          %575 = vmatpush.msra.mxu0 %v429
          %576 = vmatpush.msra.mxu0 %v428
          %577 = vmatpush.msra.mxu0 %v427
          %578 = vmatpush.msra.mxu0 %v426
          %579 = vmatpush.msra.mxu0 %v425
          %580 = vmatpush.msra.mxu0 %v424
          %581 = vmatpush.msra.mxu0 %v423
          %582 = vmatpush.msra.mxu0 %v422
          %583 = vmatmul.f32.gmra.mxu0 %v311
          %v584 = vpop.f32.mrf.mxu0
          %v585 = vadd.f32 %v472, %v584
          %586 = vmatmul.f32.gmra.mxu0 %v314
          %v587 = vpop.f32.mrf.mxu0
          %v588 = vadd.f32 %v475, %v587
          %589 = vmatmul.f32.gmra.mxu0 %v317
          %v590 = vpop.f32.mrf.mxu0
          %v591 = vadd.f32 %v478, %v590
          %592 = vmatmul.f32.gmra.mxu0 %v320
          %v593 = vpop.f32.mrf.mxu0
          %v594 = vadd.f32 %v481, %v593
          %595 = vmatmul.f32.gmra.mxu0 %v323
          %v596 = vpop.f32.mrf.mxu0
          %v597 = vadd.f32 %v484, %v596
          %598 = vmatmul.f32.gmra.mxu0 %v326
          %v599 = vpop.f32.mrf.mxu0
          %v600 = vadd.f32 %v487, %v599
          %601 = vmatmul.f32.gmra.mxu0 %v329
          %v602 = vpop.f32.mrf.mxu0
          %v603 = vadd.f32 %v490, %v602
          %604 = vmatmul.f32.gmra.mxu0 %v332
          %v605 = vpop.f32.mrf.mxu0
          %v606 = vadd.f32 %v493, %v605
          %607 = vmatmul.f32.gmra.mxu0 %v335
          %v608 = vpop.f32.mrf.mxu0
          %v609 = vadd.f32 %v496, %v608
          %610 = vmatmul.f32.gmra.mxu0 %v338
          %v611 = vpop.f32.mrf.mxu0
          %v612 = vadd.f32 %v499, %v611
          %613 = vmatmul.f32.gmra.mxu0 %v341
          %v614 = vpop.f32.mrf.mxu0
          %v615 = vadd.f32 %v502, %v614
          %616 = vmatmul.f32.gmra.mxu0 %v344
          %v617 = vpop.f32.mrf.mxu0
          %v618 = vadd.f32 %v505, %v617
          %619 = vmatmul.f32.gmra.mxu0 %v347
          %v620 = vpop.f32.mrf.mxu0
          %v621 = vadd.f32 %v508, %v620
          %622 = vmatmul.f32.gmra.mxu0 %v350
          %v623 = vpop.f32.mrf.mxu0
          %v624 = vadd.f32 %v511, %v623
          %625 = vmatmul.f32.gmra.mxu0 %v353
          %v626 = vpop.f32.mrf.mxu0
          %v627 = vadd.f32 %v514, %v626
          %628 = vmatmul.f32.gmra.mxu0 %v356
          %v629 = vpop.f32.mrf.mxu0
          %v630 = vadd.f32 %v517, %v629
          %631 = vmatmul.f32.gmra.mxu0 %v359
          %v632 = vpop.f32.mrf.mxu0
          %v633 = vadd.f32 %v520, %v632
          %634 = vmatmul.f32.gmra.mxu0 %v362
          %v635 = vpop.f32.mrf.mxu0
          %v636 = vadd.f32 %v523, %v635
          %637 = vmatmul.f32.gmra.mxu0 %v365
          %v638 = vpop.f32.mrf.mxu0
          %v639 = vadd.f32 %v526, %v638
          %640 = vmatmul.f32.gmra.mxu0 %v368
          %v641 = vpop.f32.mrf.mxu0
          %v642 = vadd.f32 %v529, %v641
          %643 = vmatmul.f32.gmra.mxu0 %v371
          %v644 = vpop.f32.mrf.mxu0
          %v645 = vadd.f32 %v532, %v644
          %646 = vmatmul.f32.gmra.mxu0 %v374
          %v647 = vpop.f32.mrf.mxu0
          %v648 = vadd.f32 %v535, %v647
          %649 = vmatmul.f32.gmra.mxu0 %v377
          %v650 = vpop.f32.mrf.mxu0
          %v651 = vadd.f32 %v538, %v650
          %652 = vmatmul.f32.gmra.mxu0 %v380
          %v653 = vpop.f32.mrf.mxu0
          %v654 = vadd.f32 %v541, %v653
          %655 = vmatmul.f32.gmra.mxu0 %v383
          %v656 = vpop.f32.mrf.mxu0
          %v657 = vadd.f32 %v544, %v656
          %658 = vmatmul.f32.gmra.mxu0 %v386
          %v659 = vpop.f32.mrf.mxu0
          %v660 = vadd.f32 %v547, %v659
          %661 = vmatmul.f32.gmra.mxu0 %v389
          %v662 = vpop.f32.mrf.mxu0
          %v663 = vadd.f32 %v550, %v662
          %664 = vmatmul.f32.gmra.mxu0 %v392
          %v665 = vpop.f32.mrf.mxu0
          %v666 = vadd.f32 %v553, %v665
          %667 = vmatmul.f32.gmra.mxu0 %v395
          %v668 = vpop.f32.mrf.mxu0
          %v669 = vadd.f32 %v556, %v668
          %670 = vmatmul.f32.gmra.mxu0 %v398
          %v671 = vpop.f32.mrf.mxu0
          %v672 = vadd.f32 %v559, %v671
          %673 = vmatmul.f32.gmra.mxu0 %v401
          %v674 = vpop.f32.mrf.mxu0
          %v675 = vadd.f32 %v562, %v674
          %676 = vmatmul.f32.gmra.mxu0 %v404
          %v677 = vpop.f32.mrf.mxu0
          %v678 = vadd.f32 %v565, %v677
          %679 = vdwg.mxu0
          %680 = vmatpush.msra.mxu0 %v453
          %681 = vmatpush.msra.mxu0 %v452
          %682 = vmatpush.msra.mxu0 %v451
          %683 = vmatpush.msra.mxu0 %v450
          %684 = vmatpush.msra.mxu0 %v449
          %685 = vmatpush.msra.mxu0 %v448
          %686 = vmatpush.msra.mxu0 %v447
          %687 = vmatpush.msra.mxu0 %v446
          %688 = vmatpush.msra.mxu0 %v445
          %689 = vmatpush.msra.mxu0 %v444
          %690 = vmatpush.msra.mxu0 %v443
          %691 = vmatpush.msra.mxu0 %v442
          %692 = vmatpush.msra.mxu0 %v441
          %693 = vmatpush.msra.mxu0 %v440
          %694 = vmatpush.msra.mxu0 %v439
          %695 = vmatpush.msra.mxu0 %v438
          %696 = vmatmul.f32.gmra.mxu0 %v312
          %v697 = vpop.f32.mrf.mxu0
          %v698 = vadd.f32 %v585, %v697
          %699 = vmatmul.f32.gmra.mxu0 %v315
          %v700 = vpop.f32.mrf.mxu0
          %v701 = vadd.f32 %v588, %v700
          %702 = vmatmul.f32.gmra.mxu0 %v318
          %v703 = vpop.f32.mrf.mxu0
          %v704 = vadd.f32 %v591, %v703
          %705 = vmatmul.f32.gmra.mxu0 %v321
          %v706 = vpop.f32.mrf.mxu0
          %v707 = vadd.f32 %v594, %v706
          %708 = vmatmul.f32.gmra.mxu0 %v324
          %v709 = vpop.f32.mrf.mxu0
          %v710 = vadd.f32 %v597, %v709
          %711 = vmatmul.f32.gmra.mxu0 %v327
          %v712 = vpop.f32.mrf.mxu0
          %v713 = vadd.f32 %v600, %v712
          %714 = vmatmul.f32.gmra.mxu0 %v330
          %v715 = vpop.f32.mrf.mxu0
          %v716 = vadd.f32 %v603, %v715
          %717 = vmatmul.f32.gmra.mxu0 %v333
          %v718 = vpop.f32.mrf.mxu0
          %v719 = vadd.f32 %v606, %v718
          %720 = vmatmul.f32.gmra.mxu0 %v336
          %v721 = vpop.f32.mrf.mxu0
          %v722 = vadd.f32 %v609, %v721
          %723 = vmatmul.f32.gmra.mxu0 %v339
          %v724 = vpop.f32.mrf.mxu0
          %v725 = vadd.f32 %v612, %v724
          %726 = vmatmul.f32.gmra.mxu0 %v342
          %v727 = vpop.f32.mrf.mxu0
          %v728 = vadd.f32 %v615, %v727
          %729 = vmatmul.f32.gmra.mxu0 %v345
          %v730 = vpop.f32.mrf.mxu0
          %v731 = vadd.f32 %v618, %v730
          %732 = vmatmul.f32.gmra.mxu0 %v348
          %v733 = vpop.f32.mrf.mxu0
          %v734 = vadd.f32 %v621, %v733
          %735 = vmatmul.f32.gmra.mxu0 %v351
          %v736 = vpop.f32.mrf.mxu0
          %v737 = vadd.f32 %v624, %v736
          %738 = vmatmul.f32.gmra.mxu0 %v354
          %v739 = vpop.f32.mrf.mxu0
          %v740 = vadd.f32 %v627, %v739
          %741 = vmatmul.f32.gmra.mxu0 %v357
          %v742 = vpop.f32.mrf.mxu0
          %v743 = vadd.f32 %v630, %v742
          %744 = vmatmul.f32.gmra.mxu0 %v360
          %v745 = vpop.f32.mrf.mxu0
          %v746 = vadd.f32 %v633, %v745
          %747 = vmatmul.f32.gmra.mxu0 %v363
          %v748 = vpop.f32.mrf.mxu0
          %v749 = vadd.f32 %v636, %v748
          %750 = vmatmul.f32.gmra.mxu0 %v366
          %v751 = vpop.f32.mrf.mxu0
          %v752 = vadd.f32 %v639, %v751
          %753 = vmatmul.f32.gmra.mxu0 %v369
          %v754 = vpop.f32.mrf.mxu0
          %v755 = vadd.f32 %v642, %v754
          %756 = vmatmul.f32.gmra.mxu0 %v372
          %v757 = vpop.f32.mrf.mxu0
          %v758 = vadd.f32 %v645, %v757
          %759 = vmatmul.f32.gmra.mxu0 %v375
          %v760 = vpop.f32.mrf.mxu0
          %v761 = vadd.f32 %v648, %v760
          %762 = vmatmul.f32.gmra.mxu0 %v378
          %v763 = vpop.f32.mrf.mxu0
          %v764 = vadd.f32 %v651, %v763
          %765 = vmatmul.f32.gmra.mxu0 %v381
          %v766 = vpop.f32.mrf.mxu0
          %v767 = vadd.f32 %v654, %v766
          %768 = vmatmul.f32.gmra.mxu0 %v384
          %v769 = vpop.f32.mrf.mxu0
          %v770 = vadd.f32 %v657, %v769
          %771 = vmatmul.f32.gmra.mxu0 %v387
          %v772 = vpop.f32.mrf.mxu0
          %v773 = vadd.f32 %v660, %v772
          %774 = vmatmul.f32.gmra.mxu0 %v390
          %v775 = vpop.f32.mrf.mxu0
          %v776 = vadd.f32 %v663, %v775
          %777 = vmatmul.f32.gmra.mxu0 %v393
          %v778 = vpop.f32.mrf.mxu0
          %v779 = vadd.f32 %v666, %v778
          %780 = vmatmul.f32.gmra.mxu0 %v396
          %v781 = vpop.f32.mrf.mxu0
          %v782 = vadd.f32 %v669, %v781
          %783 = vmatmul.f32.gmra.mxu0 %v399
          %v784 = vpop.f32.mrf.mxu0
          %v785 = vadd.f32 %v672, %v784
          %786 = vmatmul.f32.gmra.mxu0 %v402
          %v787 = vpop.f32.mrf.mxu0
          %v788 = vadd.f32 %v675, %v787
          %789 = vmatmul.f32.gmra.mxu0 %v405
          %v790 = vpop.f32.mrf.mxu0
          %v791 = vadd.f32 %v678, %v790
          %792 = vdwg.mxu0
          %v793 = vmul.f32 %v698, 0.05103104
          %v794 = vmul.f32 %v701, 0.05103104
          %v795 = vmul.f32 %v704, 0.05103104
          %v796 = vmul.f32 %v707, 0.05103104
          %v797 = vmul.f32 %v710, 0.05103104
          %v798 = vmul.f32 %v713, 0.05103104
          %v799 = vmul.f32 %v716, 0.05103104
          %v800 = vmul.f32 %v719, 0.05103104
          %v801 = vmul.f32 %v722, 0.05103104
          %v802 = vmul.f32 %v725, 0.05103104
          %v803 = vmul.f32 %v728, 0.05103104
          %v804 = vmul.f32 %v731, 0.05103104
          %v805 = vmul.f32 %v734, 0.05103104
          %v806 = vmul.f32 %v737, 0.05103104
          %v807 = vmul.f32 %v740, 0.05103104
          %v808 = vmul.f32 %v743, 0.05103104
          %v809 = vmul.f32 %v746, 0.05103104
          %v810 = vmul.f32 %v749, 0.05103104
          %v811 = vmul.f32 %v752, 0.05103104
          %v812 = vmul.f32 %v755, 0.05103104
          %v813 = vmul.f32 %v758, 0.05103104
          %v814 = vmul.f32 %v761, 0.05103104
          %v815 = vmul.f32 %v764, 0.05103104
          %v816 = vmul.f32 %v767, 0.05103104
          %v817 = vmul.f32 %v770, 0.05103104
          %v818 = vmul.f32 %v773, 0.05103104
          %v819 = vmul.f32 %v776, 0.05103104
          %v820 = vmul.f32 %v779, 0.05103104
          %v821 = vmul.f32 %v782, 0.05103104
          %v822 = vmul.f32 %v785, 0.05103104
          %v823 = vmul.f32 %v788, 0.05103104
          %v824 = vmul.f32 %v791, 0.05103104
          %vm825 = vcmask 523264
          %826 = vst.msk [vmem:[#allocation2] sm:$0xff] %vm825, %v793
          %827 = vst.msk [vmem:[#allocation2 + $0x8] sm:$0xff] %vm825, %v794
          %828 = vst.msk [vmem:[#allocation2 + $0x10] sm:$0xff] %vm825, %v795
          %829 = vst.msk [vmem:[#allocation2 + $0x18] sm:$0xff] %vm825, %v796
          %830 = vst.msk [vmem:[#allocation2 + $0x20] sm:$0xff] %vm825, %v797
          %831 = vst.msk [vmem:[#allocation2 + $0x28] sm:$0xff] %vm825, %v798
          %832 = vst.msk [vmem:[#allocation2 + $0x30] sm:$0xff] %vm825, %v799
          %833 = vst.msk [vmem:[#allocation2 + $0x38] sm:$0xff] %vm825, %v800
          %834 = vst.msk [vmem:[#allocation2 + $0x40] sm:$0xff] %vm825, %v801
          %835 = vst.msk [vmem:[#allocation2 + $0x48] sm:$0xff] %vm825, %v802
          %836 = vst.msk [vmem:[#allocation2 + $0x50] sm:$0xff] %vm825, %v803
          %837 = vst.msk [vmem:[#allocation2 + $0x58] sm:$0xff] %vm825, %v804
          %838 = vst.msk [vmem:[#allocation2 + $0x60] sm:$0xff] %vm825, %v805
          %839 = vst.msk [vmem:[#allocation2 + $0x68] sm:$0xff] %vm825, %v806
          %840 = vst.msk [vmem:[#allocation2 + $0x70] sm:$0xff] %vm825, %v807
          %841 = vst.msk [vmem:[#allocation2 + $0x78] sm:$0xff] %vm825, %v808
          %842 = vst.msk [vmem:[#allocation2 + $0x80] sm:$0xff] %vm825, %v809
          %843 = vst.msk [vmem:[#allocation2 + $0x88] sm:$0xff] %vm825, %v810
          %844 = vst.msk [vmem:[#allocation2 + $0x90] sm:$0xff] %vm825, %v811
          %845 = vst.msk [vmem:[#allocation2 + $0x98] sm:$0xff] %vm825, %v812
          %846 = vst.msk [vmem:[#allocation2 + $0xa0] sm:$0xff] %vm825, %v813
          %847 = vst.msk [vmem:[#allocation2 + $0xa8] sm:$0xff] %vm825, %v814
          %848 = vst.msk [vmem:[#allocation2 + $0xb0] sm:$0xff] %vm825, %v815
          %849 = vst.msk [vmem:[#allocation2 + $0xb8] sm:$0xff] %vm825, %v816
          %850 = vst.msk [vmem:[#allocation2 + $0xc0] sm:$0xff] %vm825, %v817
          %851 = vst.msk [vmem:[#allocation2 + $0xc8] sm:$0xff] %vm825, %v818
          %852 = vst.msk [vmem:[#allocation2 + $0xd0] sm:$0xff] %vm825, %v819
          %853 = vst.msk [vmem:[#allocation2 + $0xd8] sm:$0xff] %vm825, %v820
          %854 = vst.msk [vmem:[#allocation2 + $0xe0] sm:$0xff] %vm825, %v821
          %855 = vst.msk [vmem:[#allocation2 + $0xe8] sm:$0xff] %vm825, %v822
          %856 = vst.msk [vmem:[#allocation2 + $0xf0] sm:$0xff] %vm825, %v823
          %857 = vst.msk [vmem:[#allocation2 + $0xf8] sm:$0xff] %vm825, %v824
          %vm858 = vcmask 7168
          %859 = vst.msk [vmem:[#allocation3] sm:$0xff] %vm858, -inf
          %860 = vst.msk [vmem:[#allocation3 + $0x8] sm:$0xff] %vm858, -inf
          %861 = vst.msk [vmem:[#allocation3 + $0x10] sm:$0xff] %vm858, -inf
          %862 = vst.msk [vmem:[#allocation3 + $0x18] sm:$0xff] %vm858, -inf
          %863 = vst.msk [vmem:[#allocation3 + $0x20] sm:$0xff] %vm858, -inf
          %864 = vst.msk [vmem:[#allocation3 + $0x28] sm:$0xff] %vm858, -inf
          %865 = vst.msk [vmem:[#allocation3 + $0x30] sm:$0xff] %vm858, -inf
          %866 = vst.msk [vmem:[#allocation3 + $0x38] sm:$0xff] %vm858, -inf
          %867 = vst.msk [vmem:[#allocation3 + $0x40] sm:$0xff] %vm858, -inf
          %868 = vst.msk [vmem:[#allocation3 + $0x48] sm:$0xff] %vm858, -inf
          %869 = vst.msk [vmem:[#allocation3 + $0x50] sm:$0xff] %vm858, -inf
          %870 = vst.msk [vmem:[#allocation3 + $0x58] sm:$0xff] %vm858, -inf
          %871 = vst.msk [vmem:[#allocation3 + $0x60] sm:$0xff] %vm858, -inf
          %872 = vst.msk [vmem:[#allocation3 + $0x68] sm:$0xff] %vm858, -inf
          %873 = vst.msk [vmem:[#allocation3 + $0x70] sm:$0xff] %vm858, -inf
          %874 = vst.msk [vmem:[#allocation3 + $0x78] sm:$0xff] %vm858, -inf
          %875 = vst.msk [vmem:[#allocation3 + $0x80] sm:$0xff] %vm858, -inf
          %876 = vst.msk [vmem:[#allocation3 + $0x88] sm:$0xff] %vm858, -inf
          %877 = vst.msk [vmem:[#allocation3 + $0x90] sm:$0xff] %vm858, -inf
          %878 = vst.msk [vmem:[#allocation3 + $0x98] sm:$0xff] %vm858, -inf
          %879 = vst.msk [vmem:[#allocation3 + $0xa0] sm:$0xff] %vm858, -inf
          %880 = vst.msk [vmem:[#allocation3 + $0xa8] sm:$0xff] %vm858, -inf
          %881 = vst.msk [vmem:[#allocation3 + $0xb0] sm:$0xff] %vm858, -inf
          %882 = vst.msk [vmem:[#allocation3 + $0xb8] sm:$0xff] %vm858, -inf
          %883 = vst.msk [vmem:[#allocation3 + $0xc0] sm:$0xff] %vm858, -inf
          %884 = vst.msk [vmem:[#allocation3 + $0xc8] sm:$0xff] %vm858, -inf
          %885 = vst.msk [vmem:[#allocation3 + $0xd0] sm:$0xff] %vm858, -inf
          %886 = vst.msk [vmem:[#allocation3 + $0xd8] sm:$0xff] %vm858, -inf
          %887 = vst.msk [vmem:[#allocation3 + $0xe0] sm:$0xff] %vm858, -inf
          %888 = vst.msk [vmem:[#allocation3 + $0xe8] sm:$0xff] %vm858, -inf
          %889 = vst.msk [vmem:[#allocation3 + $0xf0] sm:$0xff] %vm858, -inf
          %890 = vst.msk [vmem:[#allocation3 + $0xf8] sm:$0xff] %vm858, -inf
          %891 = vst.msk [vmem:[#allocation4] sm:$0xff] %vm858, 0.0
          %892 = vst.msk [vmem:[#allocation4 + $0x8] sm:$0xff] %vm858, 0.0
          %893 = vst.msk [vmem:[#allocation4 + $0x10] sm:$0xff] %vm858, 0.0
          %894 = vst.msk [vmem:[#allocation4 + $0x18] sm:$0xff] %vm858, 0.0
          %895 = vst.msk [vmem:[#allocation4 + $0x20] sm:$0xff] %vm858, 0.0
          %896 = vst.msk [vmem:[#allocation4 + $0x28] sm:$0xff] %vm858, 0.0
          %897 = vst.msk [vmem:[#allocation4 + $0x30] sm:$0xff] %vm858, 0.0
          %898 = vst.msk [vmem:[#allocation4 + $0x38] sm:$0xff] %vm858, 0.0
          %899 = vst.msk [vmem:[#allocation4 + $0x40] sm:$0xff] %vm858, 0.0
          %900 = vst.msk [vmem:[#allocation4 + $0x48] sm:$0xff] %vm858, 0.0
          %901 = vst.msk [vmem:[#allocation4 + $0x50] sm:$0xff] %vm858, 0.0
          %902 = vst.msk [vmem:[#allocation4 + $0x58] sm:$0xff] %vm858, 0.0
          %903 = vst.msk [vmem:[#allocation4 + $0x60] sm:$0xff] %vm858, 0.0
          %904 = vst.msk [vmem:[#allocation4 + $0x68] sm:$0xff] %vm858, 0.0
          %905 = vst.msk [vmem:[#allocation4 + $0x70] sm:$0xff] %vm858, 0.0
          %906 = vst.msk [vmem:[#allocation4 + $0x78] sm:$0xff] %vm858, 0.0
          %907 = vst.msk [vmem:[#allocation4 + $0x80] sm:$0xff] %vm858, 0.0
          %908 = vst.msk [vmem:[#allocation4 + $0x88] sm:$0xff] %vm858, 0.0
          %909 = vst.msk [vmem:[#allocation4 + $0x90] sm:$0xff] %vm858, 0.0
          %910 = vst.msk [vmem:[#allocation4 + $0x98] sm:$0xff] %vm858, 0.0
          %911 = vst.msk [vmem:[#allocation4 + $0xa0] sm:$0xff] %vm858, 0.0
          %912 = vst.msk [vmem:[#allocation4 + $0xa8] sm:$0xff] %vm858, 0.0
          %913 = vst.msk [vmem:[#allocation4 + $0xb0] sm:$0xff] %vm858, 0.0
          %914 = vst.msk [vmem:[#allocation4 + $0xb8] sm:$0xff] %vm858, 0.0
          %915 = vst.msk [vmem:[#allocation4 + $0xc0] sm:$0xff] %vm858, 0.0
          %916 = vst.msk [vmem:[#allocation4 + $0xc8] sm:$0xff] %vm858, 0.0
          %917 = vst.msk [vmem:[#allocation4 + $0xd0] sm:$0xff] %vm858, 0.0
          %918 = vst.msk [vmem:[#allocation4 + $0xd8] sm:$0xff] %vm858, 0.0
          %919 = vst.msk [vmem:[#allocation4 + $0xe0] sm:$0xff] %vm858, 0.0
          %920 = vst.msk [vmem:[#allocation4 + $0xe8] sm:$0xff] %vm858, 0.0
          %921 = vst.msk [vmem:[#allocation4 + $0xf0] sm:$0xff] %vm858, 0.0
          %922 = vst.msk [vmem:[#allocation4 + $0xf8] sm:$0xff] %vm858, 0.0
          %923 = vst.msk [vmem:[#allocation5] sm:$0xff] %vm825, 0.0
          %924 = vst.msk [vmem:[#allocation5 + $0x8] sm:$0xff] %vm825, 0.0
          %925 = vst.msk [vmem:[#allocation5 + $0x10] sm:$0xff] %vm825, 0.0
          %926 = vst.msk [vmem:[#allocation5 + $0x18] sm:$0xff] %vm825, 0.0
          %927 = vst.msk [vmem:[#allocation5 + $0x20] sm:$0xff] %vm825, 0.0
          %928 = vst.msk [vmem:[#allocation5 + $0x28] sm:$0xff] %vm825, 0.0
          %929 = vst.msk [vmem:[#allocation5 + $0x30] sm:$0xff] %vm825, 0.0
          %930 = vst.msk [vmem:[#allocation5 + $0x38] sm:$0xff] %vm825, 0.0
          %931 = vst.msk [vmem:[#allocation5 + $0x40] sm:$0xff] %vm825, 0.0
          %932 = vst.msk [vmem:[#allocation5 + $0x48] sm:$0xff] %vm825, 0.0
          %933 = vst.msk [vmem:[#allocation5 + $0x50] sm:$0xff] %vm825, 0.0
          %934 = vst.msk [vmem:[#allocation5 + $0x58] sm:$0xff] %vm825, 0.0
          %935 = vst.msk [vmem:[#allocation5 + $0x60] sm:$0xff] %vm825, 0.0
          %936 = vst.msk [vmem:[#allocation5 + $0x68] sm:$0xff] %vm825, 0.0
          %937 = vst.msk [vmem:[#allocation5 + $0x70] sm:$0xff] %vm825, 0.0
          %938 = vst.msk [vmem:[#allocation5 + $0x78] sm:$0xff] %vm825, 0.0
          %939 = vst.msk [vmem:[#allocation5 + $0x80] sm:$0xff] %vm825, 0.0
          %940 = vst.msk [vmem:[#allocation5 + $0x88] sm:$0xff] %vm825, 0.0
          %941 = vst.msk [vmem:[#allocation5 + $0x90] sm:$0xff] %vm825, 0.0
          %942 = vst.msk [vmem:[#allocation5 + $0x98] sm:$0xff] %vm825, 0.0
          %943 = vst.msk [vmem:[#allocation5 + $0xa0] sm:$0xff] %vm825, 0.0
          %944 = vst.msk [vmem:[#allocation5 + $0xa8] sm:$0xff] %vm825, 0.0
          %945 = vst.msk [vmem:[#allocation5 + $0xb0] sm:$0xff] %vm825, 0.0
          %946 = vst.msk [vmem:[#allocation5 + $0xb8] sm:$0xff] %vm825, 0.0
          %947 = vst.msk [vmem:[#allocation5 + $0xc0] sm:$0xff] %vm825, 0.0
          %948 = vst.msk [vmem:[#allocation5 + $0xc8] sm:$0xff] %vm825, 0.0
          %949 = vst.msk [vmem:[#allocation5 + $0xd0] sm:$0xff] %vm825, 0.0
          %950 = vst.msk [vmem:[#allocation5 + $0xd8] sm:$0xff] %vm825, 0.0
          %951 = vst.msk [vmem:[#allocation5 + $0xe0] sm:$0xff] %vm825, 0.0
          %952 = vst.msk [vmem:[#allocation5 + $0xe8] sm:$0xff] %vm825, 0.0
          %953 = vst.msk [vmem:[#allocation5 + $0xf0] sm:$0xff] %vm825, 0.0
          %954 = vst.msk [vmem:[#allocation5 + $0xf8] sm:$0xff] %vm825, 0.0
        $region48: #{tpu_custom_call.1} parent=35 // pred_fallthru
          _
        %s955 = sadd.s32 %s304, 255
        %p956 = scmp.le.s32.totalorder %s305, %s955
        // Predicated region
        $region49: #{tpu_custom_call.1} parent=35 // pred_check
          %p957 = pneg %p956
        $region50: #{tpu_custom_call.1} parent=35 // pred_check_branch
          %959 = sbr.rel (%p957) target = $region52
        $region51: #{tpu_custom_call.1} parent=35 // pred_region
          %v960 = vld [vmem:[%s257] sm:$0xff]
          %v961 = vld [vmem:[%s257 + $0x8] sm:$0xff]
          %v962 = vld [vmem:[%s257 + $0x10] sm:$0xff]
          %v963 = vld [vmem:[%s257 + $0x18] sm:$0xff]
          %v964 = vld [vmem:[%s257 + $0x20] sm:$0xff]
          %v965 = vld [vmem:[%s257 + $0x28] sm:$0xff]
          %v966 = vld [vmem:[%s257 + $0x30] sm:$0xff]
          %v967 = vld [vmem:[%s257 + $0x38] sm:$0xff]
          %v968 = vld [vmem:[%s257 + $0x40] sm:$0xff]
          %v969 = vld [vmem:[%s257 + $0x48] sm:$0xff]
          %v970 = vld [vmem:[%s257 + $0x50] sm:$0xff]
          %v971 = vld [vmem:[%s257 + $0x58] sm:$0xff]
          %v972 = vld [vmem:[%s257 + $0x60] sm:$0xff]
          %v973 = vld [vmem:[%s257 + $0x68] sm:$0xff]
          %v974 = vld [vmem:[%s257 + $0x70] sm:$0xff]
          %v975 = vld [vmem:[%s257 + $0x78] sm:$0xff]
          %v976 = vld [vmem:[%s257 + $0x80] sm:$0xff]
          %v977 = vld [vmem:[%s257 + $0x88] sm:$0xff]
          %v978 = vld [vmem:[%s257 + $0x90] sm:$0xff]
          %v979 = vld [vmem:[%s257 + $0x98] sm:$0xff]
          %v980 = vld [vmem:[%s257 + $0xa0] sm:$0xff]
          %v981 = vld [vmem:[%s257 + $0xa8] sm:$0xff]
          %v982 = vld [vmem:[%s257 + $0xb0] sm:$0xff]
          %v983 = vld [vmem:[%s257 + $0xb8] sm:$0xff]
          %v984 = vld [vmem:[%s257 + $0xc0] sm:$0xff]
          %v985 = vld [vmem:[%s257 + $0xc8] sm:$0xff]
          %v986 = vld [vmem:[%s257 + $0xd0] sm:$0xff]
          %v987 = vld [vmem:[%s257 + $0xd8] sm:$0xff]
          %v988 = vld [vmem:[%s257 + $0xe0] sm:$0xff]
          %v989 = vld [vmem:[%s257 + $0xe8] sm:$0xff]
          %v990 = vld [vmem:[%s257 + $0xf0] sm:$0xff]
          %v991 = vld [vmem:[%s257 + $0xf8] sm:$0xff]
          %v992 = vld [vmem:[%s257 + $0x100] sm:$0xff]
          %v993 = vld [vmem:[%s257 + $0x108] sm:$0xff]
          %v994 = vld [vmem:[%s257 + $0x110] sm:$0xff]
          %v995 = vld [vmem:[%s257 + $0x118] sm:$0xff]
          %v996 = vld [vmem:[%s257 + $0x120] sm:$0xff]
          %v997 = vld [vmem:[%s257 + $0x128] sm:$0xff]
          %v998 = vld [vmem:[%s257 + $0x130] sm:$0xff]
          %v999 = vld [vmem:[%s257 + $0x138] sm:$0xff]
          %v1000 = vld [vmem:[%s257 + $0x140] sm:$0xff]
          %v1001 = vld [vmem:[%s257 + $0x148] sm:$0xff]
          %v1002 = vld [vmem:[%s257 + $0x150] sm:$0xff]
          %v1003 = vld [vmem:[%s257 + $0x158] sm:$0xff]
          %v1004 = vld [vmem:[%s257 + $0x160] sm:$0xff]
          %v1005 = vld [vmem:[%s257 + $0x168] sm:$0xff]
          %v1006 = vld [vmem:[%s257 + $0x170] sm:$0xff]
          %v1007 = vld [vmem:[%s257 + $0x178] sm:$0xff]
          %v1008 = vld [vmem:[%s257 + $0x180] sm:$0xff]
          %v1009 = vld [vmem:[%s257 + $0x188] sm:$0xff]
          %v1010 = vld [vmem:[%s257 + $0x190] sm:$0xff]
          %v1011 = vld [vmem:[%s257 + $0x198] sm:$0xff]
          %v1012 = vld [vmem:[%s257 + $0x1a0] sm:$0xff]
          %v1013 = vld [vmem:[%s257 + $0x1a8] sm:$0xff]
          %v1014 = vld [vmem:[%s257 + $0x1b0] sm:$0xff]
          %v1015 = vld [vmem:[%s257 + $0x1b8] sm:$0xff]
          %v1016 = vld [vmem:[%s257 + $0x1c0] sm:$0xff]
          %v1017 = vld [vmem:[%s257 + $0x1c8] sm:$0xff]
          %v1018 = vld [vmem:[%s257 + $0x1d0] sm:$0xff]
          %v1019 = vld [vmem:[%s257 + $0x1d8] sm:$0xff]
          %v1020 = vld [vmem:[%s257 + $0x1e0] sm:$0xff]
          %v1021 = vld [vmem:[%s257 + $0x1e8] sm:$0xff]
          %v1022 = vld [vmem:[%s257 + $0x1f0] sm:$0xff]
          %v1023 = vld [vmem:[%s257 + $0x1f8] sm:$0xff]
          %v1024 = vld [vmem:[%s257 + $0x200] sm:$0xff]
          %v1025 = vld [vmem:[%s257 + $0x208] sm:$0xff]
          %v1026 = vld [vmem:[%s257 + $0x210] sm:$0xff]
          %v1027 = vld [vmem:[%s257 + $0x218] sm:$0xff]
          %v1028 = vld [vmem:[%s257 + $0x220] sm:$0xff]
          %v1029 = vld [vmem:[%s257 + $0x228] sm:$0xff]
          %v1030 = vld [vmem:[%s257 + $0x230] sm:$0xff]
          %v1031 = vld [vmem:[%s257 + $0x238] sm:$0xff]
          %v1032 = vld [vmem:[%s257 + $0x240] sm:$0xff]
          %v1033 = vld [vmem:[%s257 + $0x248] sm:$0xff]
          %v1034 = vld [vmem:[%s257 + $0x250] sm:$0xff]
          %v1035 = vld [vmem:[%s257 + $0x258] sm:$0xff]
          %v1036 = vld [vmem:[%s257 + $0x260] sm:$0xff]
          %v1037 = vld [vmem:[%s257 + $0x268] sm:$0xff]
          %v1038 = vld [vmem:[%s257 + $0x270] sm:$0xff]
          %v1039 = vld [vmem:[%s257 + $0x278] sm:$0xff]
          %v1040 = vld [vmem:[%s257 + $0x280] sm:$0xff]
          %v1041 = vld [vmem:[%s257 + $0x288] sm:$0xff]
          %v1042 = vld [vmem:[%s257 + $0x290] sm:$0xff]
          %v1043 = vld [vmem:[%s257 + $0x298] sm:$0xff]
          %v1044 = vld [vmem:[%s257 + $0x2a0] sm:$0xff]
          %v1045 = vld [vmem:[%s257 + $0x2a8] sm:$0xff]
          %v1046 = vld [vmem:[%s257 + $0x2b0] sm:$0xff]
          %v1047 = vld [vmem:[%s257 + $0x2b8] sm:$0xff]
          %v1048 = vld [vmem:[%s257 + $0x2c0] sm:$0xff]
          %v1049 = vld [vmem:[%s257 + $0x2c8] sm:$0xff]
          %v1050 = vld [vmem:[%s257 + $0x2d0] sm:$0xff]
          %v1051 = vld [vmem:[%s257 + $0x2d8] sm:$0xff]
          %v1052 = vld [vmem:[%s257 + $0x2e0] sm:$0xff]
          %v1053 = vld [vmem:[%s257 + $0x2e8] sm:$0xff]
          %v1054 = vld [vmem:[%s257 + $0x2f0] sm:$0xff]
          %v1055 = vld [vmem:[%s257 + $0x2f8] sm:$0xff]
          %v1056 = vld [vmem:[%s3] sm:$0xff]
          %v1057 = vld [vmem:[%s3 + $0x8] sm:$0xff]
          %v1058 = vld [vmem:[%s3 + $0x10] sm:$0xff]
          %v1059 = vld [vmem:[%s3 + $0x18] sm:$0xff]
          %v1060 = vld [vmem:[%s3 + $0x20] sm:$0xff]
          %v1061 = vld [vmem:[%s3 + $0x28] sm:$0xff]
          %v1062 = vld [vmem:[%s3 + $0x30] sm:$0xff]
          %v1063 = vld [vmem:[%s3 + $0x38] sm:$0xff]
          %v1064 = vld [vmem:[%s3 + $0x40] sm:$0xff]
          %v1065 = vld [vmem:[%s3 + $0x48] sm:$0xff]
          %v1066 = vld [vmem:[%s3 + $0x50] sm:$0xff]
          %v1067 = vld [vmem:[%s3 + $0x58] sm:$0xff]
          %v1068 = vld [vmem:[%s3 + $0x60] sm:$0xff]
          %v1069 = vld [vmem:[%s3 + $0x68] sm:$0xff]
          %v1070 = vld [vmem:[%s3 + $0x70] sm:$0xff]
          %v1071 = vld [vmem:[%s3 + $0x78] sm:$0xff]
          %v1072 = vld [vmem:[%s3 + $0x80] sm:$0xff]
          %v1073 = vld [vmem:[%s3 + $0x88] sm:$0xff]
          %v1074 = vld [vmem:[%s3 + $0x90] sm:$0xff]
          %v1075 = vld [vmem:[%s3 + $0x98] sm:$0xff]
          %v1076 = vld [vmem:[%s3 + $0xa0] sm:$0xff]
          %v1077 = vld [vmem:[%s3 + $0xa8] sm:$0xff]
          %v1078 = vld [vmem:[%s3 + $0xb0] sm:$0xff]
          %v1079 = vld [vmem:[%s3 + $0xb8] sm:$0xff]
          %v1080 = vld [vmem:[%s3 + $0xc0] sm:$0xff]
          %v1081 = vld [vmem:[%s3 + $0xc8] sm:$0xff]
          %v1082 = vld [vmem:[%s3 + $0xd0] sm:$0xff]
          %v1083 = vld [vmem:[%s3 + $0xd8] sm:$0xff]
          %v1084 = vld [vmem:[%s3 + $0xe0] sm:$0xff]
          %v1085 = vld [vmem:[%s3 + $0xe8] sm:$0xff]
          %v1086 = vld [vmem:[%s3 + $0xf0] sm:$0xff]
          %v1087 = vld [vmem:[%s3 + $0xf8] sm:$0xff]
          %v1088 = vld [vmem:[%s3 + $0x100] sm:$0xff]
          %v1089 = vld [vmem:[%s3 + $0x108] sm:$0xff]
          %v1090 = vld [vmem:[%s3 + $0x110] sm:$0xff]
          %v1091 = vld [vmem:[%s3 + $0x118] sm:$0xff]
          %v1092 = vld [vmem:[%s3 + $0x120] sm:$0xff]
          %v1093 = vld [vmem:[%s3 + $0x128] sm:$0xff]
          %v1094 = vld [vmem:[%s3 + $0x130] sm:$0xff]
          %v1095 = vld [vmem:[%s3 + $0x138] sm:$0xff]
          %v1096 = vld [vmem:[%s3 + $0x140] sm:$0xff]
          %v1097 = vld [vmem:[%s3 + $0x148] sm:$0xff]
          %v1098 = vld [vmem:[%s3 + $0x150] sm:$0xff]
          %v1099 = vld [vmem:[%s3 + $0x158] sm:$0xff]
          %v1100 = vld [vmem:[%s3 + $0x160] sm:$0xff]
          %v1101 = vld [vmem:[%s3 + $0x168] sm:$0xff]
          %v1102 = vld [vmem:[%s3 + $0x170] sm:$0xff]
          %v1103 = vld [vmem:[%s3 + $0x178] sm:$0xff]
          %1104 = vmatpush.msra.mxu0 %v1071
          %1105 = vmatpush.msra.mxu0 %v1070
          %1106 = vmatpush.msra.mxu0 %v1069
          %1107 = vmatpush.msra.mxu0 %v1068
          %1108 = vmatpush.msra.mxu0 %v1067
          %1109 = vmatpush.msra.mxu0 %v1066
          %1110 = vmatpush.msra.mxu0 %v1065
          %1111 = vmatpush.msra.mxu0 %v1064
          %1112 = vmatpush.msra.mxu0 %v1063
          %1113 = vmatpush.msra.mxu0 %v1062
          %1114 = vmatpush.msra.mxu0 %v1061
          %1115 = vmatpush.msra.mxu0 %v1060
          %1116 = vmatpush.msra.mxu0 %v1059
          %1117 = vmatpush.msra.mxu0 %v1058
          %1118 = vmatpush.msra.mxu0 %v1057
          %1119 = vmatpush.msra.mxu0 %v1056
          %1120 = vmatmul.f32.gmra.mxu0 %v960
          %v1121 = vpop.f32.mrf.mxu0
          %v1122 = vadd.f32 0.0, %v1121
          %1123 = vmatmul.f32.gmra.mxu0 %v963
          %v1124 = vpop.f32.mrf.mxu0
          %v1125 = vadd.f32 0.0, %v1124
          %1126 = vmatmul.f32.gmra.mxu0 %v966
          %v1127 = vpop.f32.mrf.mxu0
          %v1128 = vadd.f32 0.0, %v1127
          %1129 = vmatmul.f32.gmra.mxu0 %v969
          %v1130 = vpop.f32.mrf.mxu0
          %v1131 = vadd.f32 0.0, %v1130
          %1132 = vmatmul.f32.gmra.mxu0 %v972
          %v1133 = vpop.f32.mrf.mxu0
          %v1134 = vadd.f32 0.0, %v1133
          %1135 = vmatmul.f32.gmra.mxu0 %v975
          %v1136 = vpop.f32.mrf.mxu0
          %v1137 = vadd.f32 0.0, %v1136
          %1138 = vmatmul.f32.gmra.mxu0 %v978
          %v1139 = vpop.f32.mrf.mxu0
          %v1140 = vadd.f32 0.0, %v1139
          %1141 = vmatmul.f32.gmra.mxu0 %v981
          %v1142 = vpop.f32.mrf.mxu0
          %v1143 = vadd.f32 0.0, %v1142
          %1144 = vmatmul.f32.gmra.mxu0 %v984
          %v1145 = vpop.f32.mrf.mxu0
          %v1146 = vadd.f32 0.0, %v1145
          %1147 = vmatmul.f32.gmra.mxu0 %v987
          %v1148 = vpop.f32.mrf.mxu0
          %v1149 = vadd.f32 0.0, %v1148
          %1150 = vmatmul.f32.gmra.mxu0 %v990
          %v1151 = vpop.f32.mrf.mxu0
          %v1152 = vadd.f32 0.0, %v1151
          %1153 = vmatmul.f32.gmra.mxu0 %v993
          %v1154 = vpop.f32.mrf.mxu0
          %v1155 = vadd.f32 0.0, %v1154
          %1156 = vmatmul.f32.gmra.mxu0 %v996
          %v1157 = vpop.f32.mrf.mxu0
          %v1158 = vadd.f32 0.0, %v1157
          %1159 = vmatmul.f32.gmra.mxu0 %v999
          %v1160 = vpop.f32.mrf.mxu0
          %v1161 = vadd.f32 0.0, %v1160
          %1162 = vmatmul.f32.gmra.mxu0 %v1002
          %v1163 = vpop.f32.mrf.mxu0
          %v1164 = vadd.f32 0.0, %v1163
          %1165 = vmatmul.f32.gmra.mxu0 %v1005
          %v1166 = vpop.f32.mrf.mxu0
          %v1167 = vadd.f32 0.0, %v1166
          %1168 = vmatmul.f32.gmra.mxu0 %v1008
          %v1169 = vpop.f32.mrf.mxu0
          %v1170 = vadd.f32 0.0, %v1169
          %1171 = vmatmul.f32.gmra.mxu0 %v1011
          %v1172 = vpop.f32.mrf.mxu0
          %v1173 = vadd.f32 0.0, %v1172
          %1174 = vmatmul.f32.gmra.mxu0 %v1014
          %v1175 = vpop.f32.mrf.mxu0
          %v1176 = vadd.f32 0.0, %v1175
          %1177 = vmatmul.f32.gmra.mxu0 %v1017
          %v1178 = vpop.f32.mrf.mxu0
          %v1179 = vadd.f32 0.0, %v1178
          %1180 = vmatmul.f32.gmra.mxu0 %v1020
          %v1181 = vpop.f32.mrf.mxu0
          %v1182 = vadd.f32 0.0, %v1181
          %1183 = vmatmul.f32.gmra.mxu0 %v1023
          %v1184 = vpop.f32.mrf.mxu0
          %v1185 = vadd.f32 0.0, %v1184
          %1186 = vmatmul.f32.gmra.mxu0 %v1026
          %v1187 = vpop.f32.mrf.mxu0
          %v1188 = vadd.f32 0.0, %v1187
          %1189 = vmatmul.f32.gmra.mxu0 %v1029
          %v1190 = vpop.f32.mrf.mxu0
          %v1191 = vadd.f32 0.0, %v1190
          %1192 = vmatmul.f32.gmra.mxu0 %v1032
          %v1193 = vpop.f32.mrf.mxu0
          %v1194 = vadd.f32 0.0, %v1193
          %1195 = vmatmul.f32.gmra.mxu0 %v1035
          %v1196 = vpop.f32.mrf.mxu0
          %v1197 = vadd.f32 0.0, %v1196
          %1198 = vmatmul.f32.gmra.mxu0 %v1038
          %v1199 = vpop.f32.mrf.mxu0
          %v1200 = vadd.f32 0.0, %v1199
          %1201 = vmatmul.f32.gmra.mxu0 %v1041
          %v1202 = vpop.f32.mrf.mxu0
          %v1203 = vadd.f32 0.0, %v1202
          %1204 = vmatmul.f32.gmra.mxu0 %v1044
          %v1205 = vpop.f32.mrf.mxu0
          %v1206 = vadd.f32 0.0, %v1205
          %1207 = vmatmul.f32.gmra.mxu0 %v1047
          %v1208 = vpop.f32.mrf.mxu0
          %v1209 = vadd.f32 0.0, %v1208
          %1210 = vmatmul.f32.gmra.mxu0 %v1050
          %v1211 = vpop.f32.mrf.mxu0
          %v1212 = vadd.f32 0.0, %v1211
          %1213 = vmatmul.f32.gmra.mxu0 %v1053
          %v1214 = vpop.f32.mrf.mxu0
          %v1215 = vadd.f32 0.0, %v1214
          %1216 = vdwg.mxu0
          %1217 = vmatpush.msra.mxu0 %v1087
          %1218 = vmatpush.msra.mxu0 %v1086
          %1219 = vmatpush.msra.mxu0 %v1085
          %1220 = vmatpush.msra.mxu0 %v1084
          %1221 = vmatpush.msra.mxu0 %v1083
          %1222 = vmatpush.msra.mxu0 %v1082
          %1223 = vmatpush.msra.mxu0 %v1081
          %1224 = vmatpush.msra.mxu0 %v1080
          %1225 = vmatpush.msra.mxu0 %v1079
          %1226 = vmatpush.msra.mxu0 %v1078
          %1227 = vmatpush.msra.mxu0 %v1077
          %1228 = vmatpush.msra.mxu0 %v1076
          %1229 = vmatpush.msra.mxu0 %v1075
          %1230 = vmatpush.msra.mxu0 %v1074
          %1231 = vmatpush.msra.mxu0 %v1073
          %1232 = vmatpush.msra.mxu0 %v1072
          %1233 = vmatmul.f32.gmra.mxu0 %v961
          %v1234 = vpop.f32.mrf.mxu0
          %v1235 = vadd.f32 %v1122, %v1234
          %1236 = vmatmul.f32.gmra.mxu0 %v964
          %v1237 = vpop.f32.mrf.mxu0
          %v1238 = vadd.f32 %v1125, %v1237
          %1239 = vmatmul.f32.gmra.mxu0 %v967
          %v1240 = vpop.f32.mrf.mxu0
          %v1241 = vadd.f32 %v1128, %v1240
          %1242 = vmatmul.f32.gmra.mxu0 %v970
          %v1243 = vpop.f32.mrf.mxu0
          %v1244 = vadd.f32 %v1131, %v1243
          %1245 = vmatmul.f32.gmra.mxu0 %v973
          %v1246 = vpop.f32.mrf.mxu0
          %v1247 = vadd.f32 %v1134, %v1246
          %1248 = vmatmul.f32.gmra.mxu0 %v976
          %v1249 = vpop.f32.mrf.mxu0
          %v1250 = vadd.f32 %v1137, %v1249
          %1251 = vmatmul.f32.gmra.mxu0 %v979
          %v1252 = vpop.f32.mrf.mxu0
          %v1253 = vadd.f32 %v1140, %v1252
          %1254 = vmatmul.f32.gmra.mxu0 %v982
          %v1255 = vpop.f32.mrf.mxu0
          %v1256 = vadd.f32 %v1143, %v1255
          %1257 = vmatmul.f32.gmra.mxu0 %v985
          %v1258 = vpop.f32.mrf.mxu0
          %v1259 = vadd.f32 %v1146, %v1258
          %1260 = vmatmul.f32.gmra.mxu0 %v988
          %v1261 = vpop.f32.mrf.mxu0
          %v1262 = vadd.f32 %v1149, %v1261
          %1263 = vmatmul.f32.gmra.mxu0 %v991
          %v1264 = vpop.f32.mrf.mxu0
          %v1265 = vadd.f32 %v1152, %v1264
          %1266 = vmatmul.f32.gmra.mxu0 %v994
          %v1267 = vpop.f32.mrf.mxu0
          %v1268 = vadd.f32 %v1155, %v1267
          %1269 = vmatmul.f32.gmra.mxu0 %v997
          %v1270 = vpop.f32.mrf.mxu0
          %v1271 = vadd.f32 %v1158, %v1270
          %1272 = vmatmul.f32.gmra.mxu0 %v1000
          %v1273 = vpop.f32.mrf.mxu0
          %v1274 = vadd.f32 %v1161, %v1273
          %1275 = vmatmul.f32.gmra.mxu0 %v1003
          %v1276 = vpop.f32.mrf.mxu0
          %v1277 = vadd.f32 %v1164, %v1276
          %1278 = vmatmul.f32.gmra.mxu0 %v1006
          %v1279 = vpop.f32.mrf.mxu0
          %v1280 = vadd.f32 %v1167, %v1279
          %1281 = vmatmul.f32.gmra.mxu0 %v1009
          %v1282 = vpop.f32.mrf.mxu0
          %v1283 = vadd.f32 %v1170, %v1282
          %1284 = vmatmul.f32.gmra.mxu0 %v1012
          %v1285 = vpop.f32.mrf.mxu0
          %v1286 = vadd.f32 %v1173, %v1285
          %1287 = vmatmul.f32.gmra.mxu0 %v1015
          %v1288 = vpop.f32.mrf.mxu0
          %v1289 = vadd.f32 %v1176, %v1288
          %1290 = vmatmul.f32.gmra.mxu0 %v1018
          %v1291 = vpop.f32.mrf.mxu0
          %v1292 = vadd.f32 %v1179, %v1291
          %1293 = vmatmul.f32.gmra.mxu0 %v1021
          %v1294 = vpop.f32.mrf.mxu0
          %v1295 = vadd.f32 %v1182, %v1294
          %1296 = vmatmul.f32.gmra.mxu0 %v1024
          %v1297 = vpop.f32.mrf.mxu0
          %v1298 = vadd.f32 %v1185, %v1297
          %1299 = vmatmul.f32.gmra.mxu0 %v1027
          %v1300 = vpop.f32.mrf.mxu0
          %v1301 = vadd.f32 %v1188, %v1300
          %1302 = vmatmul.f32.gmra.mxu0 %v1030
          %v1303 = vpop.f32.mrf.mxu0
          %v1304 = vadd.f32 %v1191, %v1303
          %1305 = vmatmul.f32.gmra.mxu0 %v1033
          %v1306 = vpop.f32.mrf.mxu0
          %v1307 = vadd.f32 %v1194, %v1306
          %1308 = vmatmul.f32.gmra.mxu0 %v1036
          %v1309 = vpop.f32.mrf.mxu0
          %v1310 = vadd.f32 %v1197, %v1309
          %1311 = vmatmul.f32.gmra.mxu0 %v1039
          %v1312 = vpop.f32.mrf.mxu0
          %v1313 = vadd.f32 %v1200, %v1312
          %1314 = vmatmul.f32.gmra.mxu0 %v1042
          %v1315 = vpop.f32.mrf.mxu0
          %v1316 = vadd.f32 %v1203, %v1315
          %1317 = vmatmul.f32.gmra.mxu0 %v1045
          %v1318 = vpop.f32.mrf.mxu0
          %v1319 = vadd.f32 %v1206, %v1318
          %1320 = vmatmul.f32.gmra.mxu0 %v1048
          %v1321 = vpop.f32.mrf.mxu0
          %v1322 = vadd.f32 %v1209, %v1321
          %1323 = vmatmul.f32.gmra.mxu0 %v1051
          %v1324 = vpop.f32.mrf.mxu0
          %v1325 = vadd.f32 %v1212, %v1324
          %1326 = vmatmul.f32.gmra.mxu0 %v1054
          %v1327 = vpop.f32.mrf.mxu0
          %v1328 = vadd.f32 %v1215, %v1327
          %1329 = vdwg.mxu0
          %1330 = vmatpush.msra.mxu0 %v1103
          %1331 = vmatpush.msra.mxu0 %v1102
          %1332 = vmatpush.msra.mxu0 %v1101
          %1333 = vmatpush.msra.mxu0 %v1100
          %1334 = vmatpush.msra.mxu0 %v1099
          %1335 = vmatpush.msra.mxu0 %v1098
          %1336 = vmatpush.msra.mxu0 %v1097
          %1337 = vmatpush.msra.mxu0 %v1096
          %1338 = vmatpush.msra.mxu0 %v1095
          %1339 = vmatpush.msra.mxu0 %v1094
          %1340 = vmatpush.msra.mxu0 %v1093
          %1341 = vmatpush.msra.mxu0 %v1092
          %1342 = vmatpush.msra.mxu0 %v1091
          %1343 = vmatpush.msra.mxu0 %v1090
          %1344 = vmatpush.msra.mxu0 %v1089
          %1345 = vmatpush.msra.mxu0 %v1088
          %1346 = vmatmul.f32.gmra.mxu0 %v962
          %v1347 = vpop.f32.mrf.mxu0
          %v1348 = vadd.f32 %v1235, %v1347
          %1349 = vmatmul.f32.gmra.mxu0 %v965
          %v1350 = vpop.f32.mrf.mxu0
          %v1351 = vadd.f32 %v1238, %v1350
          %1352 = vmatmul.f32.gmra.mxu0 %v968
          %v1353 = vpop.f32.mrf.mxu0
          %v1354 = vadd.f32 %v1241, %v1353
          %1355 = vmatmul.f32.gmra.mxu0 %v971
          %v1356 = vpop.f32.mrf.mxu0
          %v1357 = vadd.f32 %v1244, %v1356
          %1358 = vmatmul.f32.gmra.mxu0 %v974
          %v1359 = vpop.f32.mrf.mxu0
          %v1360 = vadd.f32 %v1247, %v1359
          %1361 = vmatmul.f32.gmra.mxu0 %v977
          %v1362 = vpop.f32.mrf.mxu0
          %v1363 = vadd.f32 %v1250, %v1362
          %1364 = vmatmul.f32.gmra.mxu0 %v980
          %v1365 = vpop.f32.mrf.mxu0
          %v1366 = vadd.f32 %v1253, %v1365
          %1367 = vmatmul.f32.gmra.mxu0 %v983
          %v1368 = vpop.f32.mrf.mxu0
          %v1369 = vadd.f32 %v1256, %v1368
          %1370 = vmatmul.f32.gmra.mxu0 %v986
          %v1371 = vpop.f32.mrf.mxu0
          %v1372 = vadd.f32 %v1259, %v1371
          %1373 = vmatmul.f32.gmra.mxu0 %v989
          %v1374 = vpop.f32.mrf.mxu0
          %v1375 = vadd.f32 %v1262, %v1374
          %1376 = vmatmul.f32.gmra.mxu0 %v992
          %v1377 = vpop.f32.mrf.mxu0
          %v1378 = vadd.f32 %v1265, %v1377
          %1379 = vmatmul.f32.gmra.mxu0 %v995
          %v1380 = vpop.f32.mrf.mxu0
          %v1381 = vadd.f32 %v1268, %v1380
          %1382 = vmatmul.f32.gmra.mxu0 %v998
          %v1383 = vpop.f32.mrf.mxu0
          %v1384 = vadd.f32 %v1271, %v1383
          %1385 = vmatmul.f32.gmra.mxu0 %v1001
          %v1386 = vpop.f32.mrf.mxu0
          %v1387 = vadd.f32 %v1274, %v1386
          %1388 = vmatmul.f32.gmra.mxu0 %v1004
          %v1389 = vpop.f32.mrf.mxu0
          %v1390 = vadd.f32 %v1277, %v1389
          %1391 = vmatmul.f32.gmra.mxu0 %v1007
          %v1392 = vpop.f32.mrf.mxu0
          %v1393 = vadd.f32 %v1280, %v1392
          %1394 = vmatmul.f32.gmra.mxu0 %v1010
          %v1395 = vpop.f32.mrf.mxu0
          %v1396 = vadd.f32 %v1283, %v1395
          %1397 = vmatmul.f32.gmra.mxu0 %v1013
          %v1398 = vpop.f32.mrf.mxu0
          %v1399 = vadd.f32 %v1286, %v1398
          %1400 = vmatmul.f32.gmra.mxu0 %v1016
          %v1401 = vpop.f32.mrf.mxu0
          %v1402 = vadd.f32 %v1289, %v1401
          %1403 = vmatmul.f32.gmra.mxu0 %v1019
          %v1404 = vpop.f32.mrf.mxu0
          %v1405 = vadd.f32 %v1292, %v1404
          %1406 = vmatmul.f32.gmra.mxu0 %v1022
          %v1407 = vpop.f32.mrf.mxu0
          %v1408 = vadd.f32 %v1295, %v1407
          %1409 = vmatmul.f32.gmra.mxu0 %v1025
          %v1410 = vpop.f32.mrf.mxu0
          %v1411 = vadd.f32 %v1298, %v1410
          %1412 = vmatmul.f32.gmra.mxu0 %v1028
          %v1413 = vpop.f32.mrf.mxu0
          %v1414 = vadd.f32 %v1301, %v1413
          %1415 = vmatmul.f32.gmra.mxu0 %v1031
          %v1416 = vpop.f32.mrf.mxu0
          %v1417 = vadd.f32 %v1304, %v1416
          %1418 = vmatmul.f32.gmra.mxu0 %v1034
          %v1419 = vpop.f32.mrf.mxu0
          %v1420 = vadd.f32 %v1307, %v1419
          %1421 = vmatmul.f32.gmra.mxu0 %v1037
          %v1422 = vpop.f32.mrf.mxu0
          %v1423 = vadd.f32 %v1310, %v1422
          %1424 = vmatmul.f32.gmra.mxu0 %v1040
          %v1425 = vpop.f32.mrf.mxu0
          %v1426 = vadd.f32 %v1313, %v1425
          %1427 = vmatmul.f32.gmra.mxu0 %v1043
          %v1428 = vpop.f32.mrf.mxu0
          %v1429 = vadd.f32 %v1316, %v1428
          %1430 = vmatmul.f32.gmra.mxu0 %v1046
          %v1431 = vpop.f32.mrf.mxu0
          %v1432 = vadd.f32 %v1319, %v1431
          %1433 = vmatmul.f32.gmra.mxu0 %v1049
          %v1434 = vpop.f32.mrf.mxu0
          %v1435 = vadd.f32 %v1322, %v1434
          %1436 = vmatmul.f32.gmra.mxu0 %v1052
          %v1437 = vpop.f32.mrf.mxu0
          %v1438 = vadd.f32 %v1325, %v1437
          %1439 = vmatmul.f32.gmra.mxu0 %v1055
          %v1440 = vpop.f32.mrf.mxu0
          %v1441 = vadd.f32 %v1328, %v1440
          %1442 = vdwg.mxu0
          %v1443 = vld [vmem:[#allocation2] sm:$0xff]
          %v1444 = vld [vmem:[#allocation2 + $0x8] sm:$0xff]
          %v1445 = vld [vmem:[#allocation2 + $0x10] sm:$0xff]
          %v1446 = vld [vmem:[#allocation2 + $0x18] sm:$0xff]
          %v1447 = vld [vmem:[#allocation2 + $0x20] sm:$0xff]
          %v1448 = vld [vmem:[#allocation2 + $0x28] sm:$0xff]
          %v1449 = vld [vmem:[#allocation2 + $0x30] sm:$0xff]
          %v1450 = vld [vmem:[#allocation2 + $0x38] sm:$0xff]
          %v1451 = vld [vmem:[#allocation2 + $0x40] sm:$0xff]
          %v1452 = vld [vmem:[#allocation2 + $0x48] sm:$0xff]
          %v1453 = vld [vmem:[#allocation2 + $0x50] sm:$0xff]
          %v1454 = vld [vmem:[#allocation2 + $0x58] sm:$0xff]
          %v1455 = vld [vmem:[#allocation2 + $0x60] sm:$0xff]
          %v1456 = vld [vmem:[#allocation2 + $0x68] sm:$0xff]
          %v1457 = vld [vmem:[#allocation2 + $0x70] sm:$0xff]
          %v1458 = vld [vmem:[#allocation2 + $0x78] sm:$0xff]
          %v1459 = vld [vmem:[#allocation2 + $0x80] sm:$0xff]
          %v1460 = vld [vmem:[#allocation2 + $0x88] sm:$0xff]
          %v1461 = vld [vmem:[#allocation2 + $0x90] sm:$0xff]
          %v1462 = vld [vmem:[#allocation2 + $0x98] sm:$0xff]
          %v1463 = vld [vmem:[#allocation2 + $0xa0] sm:$0xff]
          %v1464 = vld [vmem:[#allocation2 + $0xa8] sm:$0xff]
          %v1465 = vld [vmem:[#allocation2 + $0xb0] sm:$0xff]
          %v1466 = vld [vmem:[#allocation2 + $0xb8] sm:$0xff]
          %v1467 = vld [vmem:[#allocation2 + $0xc0] sm:$0xff]
          %v1468 = vld [vmem:[#allocation2 + $0xc8] sm:$0xff]
          %v1469 = vld [vmem:[#allocation2 + $0xd0] sm:$0xff]
          %v1470 = vld [vmem:[#allocation2 + $0xd8] sm:$0xff]
          %v1471 = vld [vmem:[#allocation2 + $0xe0] sm:$0xff]
          %v1472 = vld [vmem:[#allocation2 + $0xe8] sm:$0xff]
          %v1473 = vld [vmem:[#allocation2 + $0xf0] sm:$0xff]
          %v1474 = vld [vmem:[#allocation2 + $0xf8] sm:$0xff]
          %vm1475 = vcmask 523264
          %v1477 = vsel %vm1475, %v1443, 0
          %v1480 = vsel %vm1475, %v1444, 0
          %v1483 = vsel %vm1475, %v1445, 0
          %v1486 = vsel %vm1475, %v1446, 0
          %v1489 = vsel %vm1475, %v1447, 0
          %v1492 = vsel %vm1475, %v1448, 0
          %v1495 = vsel %vm1475, %v1449, 0
          %v1498 = vsel %vm1475, %v1450, 0
          %v1501 = vsel %vm1475, %v1451, 0
          %v1504 = vsel %vm1475, %v1452, 0
          %v1507 = vsel %vm1475, %v1453, 0
          %v1510 = vsel %vm1475, %v1454, 0
          %v1513 = vsel %vm1475, %v1455, 0
          %v1516 = vsel %vm1475, %v1456, 0
          %v1519 = vsel %vm1475, %v1457, 0
          %v1522 = vsel %vm1475, %v1458, 0
          %v1525 = vsel %vm1475, %v1459, 0
          %v1528 = vsel %vm1475, %v1460, 0
          %v1531 = vsel %vm1475, %v1461, 0
          %v1534 = vsel %vm1475, %v1462, 0
          %v1537 = vsel %vm1475, %v1463, 0
          %v1540 = vsel %vm1475, %v1464, 0
          %v1543 = vsel %vm1475, %v1465, 0
          %v1546 = vsel %vm1475, %v1466, 0
          %v1549 = vsel %vm1475, %v1467, 0
          %v1552 = vsel %vm1475, %v1468, 0
          %v1555 = vsel %vm1475, %v1469, 0
          %v1558 = vsel %vm1475, %v1470, 0
          %v1561 = vsel %vm1475, %v1471, 0
          %v1564 = vsel %vm1475, %v1472, 0
          %v1567 = vsel %vm1475, %v1473, 0
          %v1570 = vsel %vm1475, %v1474, 0
          %v1573 = vsel %vm1475, %v1348, 0
          %v1576 = vsel %vm1475, %v1351, 0
          %v1579 = vsel %vm1475, %v1354, 0
          %v1582 = vsel %vm1475, %v1357, 0
          %v1585 = vsel %vm1475, %v1360, 0
          %v1588 = vsel %vm1475, %v1363, 0
          %v1591 = vsel %vm1475, %v1366, 0
          %v1594 = vsel %vm1475, %v1369, 0
          %v1597 = vsel %vm1475, %v1372, 0
          %v1600 = vsel %vm1475, %v1375, 0
          %v1603 = vsel %vm1475, %v1378, 0
          %v1606 = vsel %vm1475, %v1381, 0
          %v1609 = vsel %vm1475, %v1384, 0
          %v1612 = vsel %vm1475, %v1387, 0
          %v1615 = vsel %vm1475, %v1390, 0
          %v1618 = vsel %vm1475, %v1393, 0
          %v1621 = vsel %vm1475, %v1396, 0
          %v1624 = vsel %vm1475, %v1399, 0
          %v1627 = vsel %vm1475, %v1402, 0
          %v1630 = vsel %vm1475, %v1405, 0
          %v1633 = vsel %vm1475, %v1408, 0
          %v1636 = vsel %vm1475, %v1411, 0
          %v1639 = vsel %vm1475, %v1414, 0
          %v1642 = vsel %vm1475, %v1417, 0
          %v1645 = vsel %vm1475, %v1420, 0
          %v1648 = vsel %vm1475, %v1423, 0
          %v1651 = vsel %vm1475, %v1426, 0
          %v1654 = vsel %vm1475, %v1429, 0
          %v1657 = vsel %vm1475, %v1432, 0
          %v1660 = vsel %vm1475, %v1435, 0
          %v1663 = vsel %vm1475, %v1438, 0
          %v1666 = vsel %vm1475, %v1441, 0
          %1668 = vmatpush.xpose.msra.mxu0 %v1618
          %1669 = vmatpush.xpose.msra.mxu0 %v1615
          %1670 = vmatpush.xpose.msra.mxu0 %v1612
          %1671 = vmatpush.xpose.msra.mxu0 %v1609
          %1672 = vmatpush.xpose.msra.mxu0 %v1606
          %1673 = vmatpush.xpose.msra.mxu0 %v1603
          %1674 = vmatpush.xpose.msra.mxu0 %v1600
          %1675 = vmatpush.xpose.msra.mxu0 %v1597
          %1676 = vmatpush.xpose.msra.mxu0 %v1594
          %1677 = vmatpush.xpose.msra.mxu0 %v1591
          %1678 = vmatpush.xpose.msra.mxu0 %v1588
          %1679 = vmatpush.xpose.msra.mxu0 %v1585
          %1680 = vmatpush.xpose.msra.mxu0 %v1582
          %1681 = vmatpush.xpose.msra.mxu0 %v1579
          %1682 = vmatpush.xpose.msra.mxu0 %v1576
          %1683 = vmatpush.xpose.msra.mxu0 %v1573
          %1684 = vmatmul.f32.gmra.mxu0 %v1477
          %v1685 = vpop.f32.mrf.mxu0
          %v1686 = vadd.f32 0.0, %v1685
          %1687 = vmatmul.f32.gmra.mxu0 %v1480
          %v1688 = vpop.f32.mrf.mxu0
          %v1689 = vadd.f32 0.0, %v1688
          %1690 = vmatmul.f32.gmra.mxu0 %v1483
          %v1691 = vpop.f32.mrf.mxu0
          %v1692 = vadd.f32 0.0, %v1691
          %1693 = vmatmul.f32.gmra.mxu0 %v1486
          %v1694 = vpop.f32.mrf.mxu0
          %v1695 = vadd.f32 0.0, %v1694
          %1696 = vmatmul.f32.gmra.mxu0 %v1489
          %v1697 = vpop.f32.mrf.mxu0
          %v1698 = vadd.f32 0.0, %v1697
          %1699 = vmatmul.f32.gmra.mxu0 %v1492
          %v1700 = vpop.f32.mrf.mxu0
          %v1701 = vadd.f32 0.0, %v1700
          %1702 = vmatmul.f32.gmra.mxu0 %v1495
          %v1703 = vpop.f32.mrf.mxu0
          %v1704 = vadd.f32 0.0, %v1703
          %1705 = vmatmul.f32.gmra.mxu0 %v1498
          %v1706 = vpop.f32.mrf.mxu0
          %v1707 = vadd.f32 0.0, %v1706
          %1708 = vmatmul.f32.gmra.mxu0 %v1501
          %v1709 = vpop.f32.mrf.mxu0
          %v1710 = vadd.f32 0.0, %v1709
          %1711 = vmatmul.f32.gmra.mxu0 %v1504
          %v1712 = vpop.f32.mrf.mxu0
          %v1713 = vadd.f32 0.0, %v1712
          %1714 = vmatmul.f32.gmra.mxu0 %v1507
          %v1715 = vpop.f32.mrf.mxu0
          %v1716 = vadd.f32 0.0, %v1715
          %1717 = vmatmul.f32.gmra.mxu0 %v1510
          %v1718 = vpop.f32.mrf.mxu0
          %v1719 = vadd.f32 0.0, %v1718
          %1720 = vmatmul.f32.gmra.mxu0 %v1513
          %v1721 = vpop.f32.mrf.mxu0
          %v1722 = vadd.f32 0.0, %v1721
          %1723 = vmatmul.f32.gmra.mxu0 %v1516
          %v1724 = vpop.f32.mrf.mxu0
          %v1725 = vadd.f32 0.0, %v1724
          %1726 = vmatmul.f32.gmra.mxu0 %v1519
          %v1727 = vpop.f32.mrf.mxu0
          %v1728 = vadd.f32 0.0, %v1727
          %1729 = vmatmul.f32.gmra.mxu0 %v1522
          %v1730 = vpop.f32.mrf.mxu0
          %v1731 = vadd.f32 0.0, %v1730
          %1732 = vmatmul.f32.gmra.mxu0 %v1525
          %v1733 = vpop.f32.mrf.mxu0
          %v1734 = vadd.f32 0.0, %v1733
          %1735 = vmatmul.f32.gmra.mxu0 %v1528
          %v1736 = vpop.f32.mrf.mxu0
          %v1737 = vadd.f32 0.0, %v1736
          %1738 = vmatmul.f32.gmra.mxu0 %v1531
          %v1739 = vpop.f32.mrf.mxu0
          %v1740 = vadd.f32 0.0, %v1739
          %1741 = vmatmul.f32.gmra.mxu0 %v1534
          %v1742 = vpop.f32.mrf.mxu0
          %v1743 = vadd.f32 0.0, %v1742
          %1744 = vmatmul.f32.gmra.mxu0 %v1537
          %v1745 = vpop.f32.mrf.mxu0
          %v1746 = vadd.f32 0.0, %v1745
          %1747 = vmatmul.f32.gmra.mxu0 %v1540
          %v1748 = vpop.f32.mrf.mxu0
          %v1749 = vadd.f32 0.0, %v1748
          %1750 = vmatmul.f32.gmra.mxu0 %v1543
          %v1751 = vpop.f32.mrf.mxu0
          %v1752 = vadd.f32 0.0, %v1751
          %1753 = vmatmul.f32.gmra.mxu0 %v1546
          %v1754 = vpop.f32.mrf.mxu0
          %v1755 = vadd.f32 0.0, %v1754
          %1756 = vmatmul.f32.gmra.mxu0 %v1549
          %v1757 = vpop.f32.mrf.mxu0
          %v1758 = vadd.f32 0.0, %v1757
          %1759 = vmatmul.f32.gmra.mxu0 %v1552
          %v1760 = vpop.f32.mrf.mxu0
          %v1761 = vadd.f32 0.0, %v1760
          %1762 = vmatmul.f32.gmra.mxu0 %v1555
          %v1763 = vpop.f32.mrf.mxu0
          %v1764 = vadd.f32 0.0, %v1763
          %1765 = vmatmul.f32.gmra.mxu0 %v1558
          %v1766 = vpop.f32.mrf.mxu0
          %v1767 = vadd.f32 0.0, %v1766
          %1768 = vmatmul.f32.gmra.mxu0 %v1561
          %v1769 = vpop.f32.mrf.mxu0
          %v1770 = vadd.f32 0.0, %v1769
          %1771 = vmatmul.f32.gmra.mxu0 %v1564
          %v1772 = vpop.f32.mrf.mxu0
          %v1773 = vadd.f32 0.0, %v1772
          %1774 = vmatmul.f32.gmra.mxu0 %v1567
          %v1775 = vpop.f32.mrf.mxu0
          %v1776 = vadd.f32 0.0, %v1775
          %1777 = vmatmul.f32.gmra.mxu0 %v1570
          %v1778 = vpop.f32.mrf.mxu0
          %v1779 = vadd.f32 0.0, %v1778
          %1780 = vdwg.mxu0
          %1781 = vmatpush.xpose.msra.mxu0 %v1666
          %1782 = vmatpush.xpose.msra.mxu0 %v1663
          %1783 = vmatpush.xpose.msra.mxu0 %v1660
          %1784 = vmatpush.xpose.msra.mxu0 %v1657
          %1785 = vmatpush.xpose.msra.mxu0 %v1654
          %1786 = vmatpush.xpose.msra.mxu0 %v1651
          %1787 = vmatpush.xpose.msra.mxu0 %v1648
          %1788 = vmatpush.xpose.msra.mxu0 %v1645
          %1789 = vmatpush.xpose.msra.mxu0 %v1642
          %1790 = vmatpush.xpose.msra.mxu0 %v1639
          %1791 = vmatpush.xpose.msra.mxu0 %v1636
          %1792 = vmatpush.xpose.msra.mxu0 %v1633
          %1793 = vmatpush.xpose.msra.mxu0 %v1630
          %1794 = vmatpush.xpose.msra.mxu0 %v1627
          %1795 = vmatpush.xpose.msra.mxu0 %v1624
          %1796 = vmatpush.xpose.msra.mxu0 %v1621
          %1797 = vmatmul.f32.gmra.mxu0 %v1477
          %v1798 = vpop.f32.mrf.mxu0
          %v1799 = vadd.f32 0.0, %v1798
          %1800 = vmatmul.f32.gmra.mxu0 %v1480
          %v1801 = vpop.f32.mrf.mxu0
          %v1802 = vadd.f32 0.0, %v1801
          %1803 = vmatmul.f32.gmra.mxu0 %v1483
          %v1804 = vpop.f32.mrf.mxu0
          %v1805 = vadd.f32 0.0, %v1804
          %1806 = vmatmul.f32.gmra.mxu0 %v1486
          %v1807 = vpop.f32.mrf.mxu0
          %v1808 = vadd.f32 0.0, %v1807
          %1809 = vmatmul.f32.gmra.mxu0 %v1489
          %v1810 = vpop.f32.mrf.mxu0
          %v1811 = vadd.f32 0.0, %v1810
          %1812 = vmatmul.f32.gmra.mxu0 %v1492
          %v1813 = vpop.f32.mrf.mxu0
          %v1814 = vadd.f32 0.0, %v1813
          %1815 = vmatmul.f32.gmra.mxu0 %v1495
          %v1816 = vpop.f32.mrf.mxu0
          %v1817 = vadd.f32 0.0, %v1816
          %1818 = vmatmul.f32.gmra.mxu0 %v1498
          %v1819 = vpop.f32.mrf.mxu0
          %v1820 = vadd.f32 0.0, %v1819
          %1821 = vmatmul.f32.gmra.mxu0 %v1501
          %v1822 = vpop.f32.mrf.mxu0
          %v1823 = vadd.f32 0.0, %v1822
          %1824 = vmatmul.f32.gmra.mxu0 %v1504
          %v1825 = vpop.f32.mrf.mxu0
          %v1826 = vadd.f32 0.0, %v1825
          %1827 = vmatmul.f32.gmra.mxu0 %v1507
          %v1828 = vpop.f32.mrf.mxu0
          %v1829 = vadd.f32 0.0, %v1828
          %1830 = vmatmul.f32.gmra.mxu0 %v1510
          %v1831 = vpop.f32.mrf.mxu0
          %v1832 = vadd.f32 0.0, %v1831
          %1833 = vmatmul.f32.gmra.mxu0 %v1513
          %v1834 = vpop.f32.mrf.mxu0
          %v1835 = vadd.f32 0.0, %v1834
          %1836 = vmatmul.f32.gmra.mxu0 %v1516
          %v1837 = vpop.f32.mrf.mxu0
          %v1838 = vadd.f32 0.0, %v1837
          %1839 = vmatmul.f32.gmra.mxu0 %v1519
          %v1840 = vpop.f32.mrf.mxu0
          %v1841 = vadd.f32 0.0, %v1840
          %1842 = vmatmul.f32.gmra.mxu0 %v1522
          %v1843 = vpop.f32.mrf.mxu0
          %v1844 = vadd.f32 0.0, %v1843
          %1845 = vmatmul.f32.gmra.mxu0 %v1525
          %v1846 = vpop.f32.mrf.mxu0
          %v1847 = vadd.f32 0.0, %v1846
          %1848 = vmatmul.f32.gmra.mxu0 %v1528
          %v1849 = vpop.f32.mrf.mxu0
          %v1850 = vadd.f32 0.0, %v1849
          %1851 = vmatmul.f32.gmra.mxu0 %v1531
          %v1852 = vpop.f32.mrf.mxu0
          %v1853 = vadd.f32 0.0, %v1852
          %1854 = vmatmul.f32.gmra.mxu0 %v1534
          %v1855 = vpop.f32.mrf.mxu0
          %v1856 = vadd.f32 0.0, %v1855
          %1857 = vmatmul.f32.gmra.mxu0 %v1537
          %v1858 = vpop.f32.mrf.mxu0
          %v1859 = vadd.f32 0.0, %v1858
          %1860 = vmatmul.f32.gmra.mxu0 %v1540
          %v1861 = vpop.f32.mrf.mxu0
          %v1862 = vadd.f32 0.0, %v1861
          %1863 = vmatmul.f32.gmra.mxu0 %v1543
          %v1864 = vpop.f32.mrf.mxu0
          %v1865 = vadd.f32 0.0, %v1864
          %1866 = vmatmul.f32.gmra.mxu0 %v1546
          %v1867 = vpop.f32.mrf.mxu0
          %v1868 = vadd.f32 0.0, %v1867
          %1869 = vmatmul.f32.gmra.mxu0 %v1549
          %v1870 = vpop.f32.mrf.mxu0
          %v1871 = vadd.f32 0.0, %v1870
          %1872 = vmatmul.f32.gmra.mxu0 %v1552
          %v1873 = vpop.f32.mrf.mxu0
          %v1874 = vadd.f32 0.0, %v1873
          %1875 = vmatmul.f32.gmra.mxu0 %v1555
          %v1876 = vpop.f32.mrf.mxu0
          %v1877 = vadd.f32 0.0, %v1876
          %1878 = vmatmul.f32.gmra.mxu0 %v1558
          %v1879 = vpop.f32.mrf.mxu0
          %v1880 = vadd.f32 0.0, %v1879
          %1881 = vmatmul.f32.gmra.mxu0 %v1561
          %v1882 = vpop.f32.mrf.mxu0
          %v1883 = vadd.f32 0.0, %v1882
          %1884 = vmatmul.f32.gmra.mxu0 %v1564
          %v1885 = vpop.f32.mrf.mxu0
          %v1886 = vadd.f32 0.0, %v1885
          %1887 = vmatmul.f32.gmra.mxu0 %v1567
          %v1888 = vpop.f32.mrf.mxu0
          %v1889 = vadd.f32 0.0, %v1888
          %1890 = vmatmul.f32.gmra.mxu0 %v1570
          %v1891 = vpop.f32.mrf.mxu0
          %v1892 = vadd.f32 0.0, %v1891
          %1893 = vdwg.mxu0
          %v1894 = vlaneseq
          %v1895 = vshrl.u32 %v1894, 7
          %v1896 = vadd.s32 %v1895, 8
          %v1897 = vadd.s32 %v1895, 16
          %v1898 = vadd.s32 %v1895, 24
          %v1899 = vadd.s32 %v1895, 32
          %v1900 = vadd.s32 %v1895, 40
          %v1901 = vadd.s32 %v1895, 48
          %v1902 = vadd.s32 %v1895, 56
          %v1903 = vadd.s32 %v1895, 64
          %v1904 = vadd.s32 %v1895, 72
          %v1905 = vadd.s32 %v1895, 80
          %v1906 = vadd.s32 %v1895, 88
          %v1907 = vadd.s32 %v1895, 96
          %v1908 = vadd.s32 %v1895, 104
          %v1909 = vadd.s32 %v1895, 112
          %v1910 = vadd.s32 %v1895, 120
          %v1911 = vadd.s32 %v1895, 128
          %v1912 = vadd.s32 %v1895, 136
          %v1913 = vadd.s32 %v1895, 144
          %v1914 = vadd.s32 %v1895, 152
          %v1915 = vadd.s32 %v1895, 160
          %v1916 = vadd.s32 %v1895, 168
          %v1917 = vadd.s32 %v1895, 176
          %v1918 = vadd.s32 %v1895, 184
          %v1919 = vadd.s32 %v1895, 192
          %v1920 = vadd.s32 %v1895, 200
          %v1921 = vadd.s32 %v1895, 208
          %v1922 = vadd.s32 %v1895, 216
          %v1923 = vadd.s32 %v1895, 224
          %v1924 = vadd.s32 %v1895, 232
          %v1925 = vadd.s32 %v1895, 240
          %v1926 = vadd.s32 %v1895, 248
          %v1927 = vstv %s304
          %v1928 = vadd.s32 %v1927, %v1895
          %v1929 = vadd.s32 %v1927, %v1896
          %v1930 = vadd.s32 %v1927, %v1897
          %v1931 = vadd.s32 %v1927, %v1898
          %v1932 = vadd.s32 %v1927, %v1899
          %v1933 = vadd.s32 %v1927, %v1900
          %v1934 = vadd.s32 %v1927, %v1901
          %v1935 = vadd.s32 %v1927, %v1902
          %v1936 = vadd.s32 %v1927, %v1903
          %v1937 = vadd.s32 %v1927, %v1904
          %v1938 = vadd.s32 %v1927, %v1905
          %v1939 = vadd.s32 %v1927, %v1906
          %v1940 = vadd.s32 %v1927, %v1907
          %v1941 = vadd.s32 %v1927, %v1908
          %v1942 = vadd.s32 %v1927, %v1909
          %v1943 = vadd.s32 %v1927, %v1910
          %v1944 = vadd.s32 %v1927, %v1911
          %v1945 = vadd.s32 %v1927, %v1912
          %v1946 = vadd.s32 %v1927, %v1913
          %v1947 = vadd.s32 %v1927, %v1914
          %v1948 = vadd.s32 %v1927, %v1915
          %v1949 = vadd.s32 %v1927, %v1916
          %v1950 = vadd.s32 %v1927, %v1917
          %v1951 = vadd.s32 %v1927, %v1918
          %v1952 = vadd.s32 %v1927, %v1919
          %v1953 = vadd.s32 %v1927, %v1920
          %v1954 = vadd.s32 %v1927, %v1921
          %v1955 = vadd.s32 %v1927, %v1922
          %v1956 = vadd.s32 %v1927, %v1923
          %v1957 = vadd.s32 %v1927, %v1924
          %v1958 = vadd.s32 %v1927, %v1925
          %v1959 = vadd.s32 %v1927, %v1926
          %v1960 = vlaneseq
          %v1961 = vand.u32 %v1960, 127
          %v1962 = vadd.s32 %v1961, 128
          %v1963 = vstv %s305
          %v1964 = vadd.s32 %v1963, %v1961
          %v1965 = vadd.s32 %v1963, %v1962
          %vm1966 = vcmp.le.s32.totalorder %v1964, %v1928
          %vm1967 = vcmp.le.s32.totalorder %v1965, %v1928
          %vm1968 = vcmp.le.s32.totalorder %v1964, %v1929
          %vm1969 = vcmp.le.s32.totalorder %v1965, %v1929
          %vm1970 = vcmp.le.s32.totalorder %v1964, %v1930
          %vm1971 = vcmp.le.s32.totalorder %v1965, %v1930
          %vm1972 = vcmp.le.s32.totalorder %v1964, %v1931
          %vm1973 = vcmp.le.s32.totalorder %v1965, %v1931
          %vm1974 = vcmp.le.s32.totalorder %v1964, %v1932
          %vm1975 = vcmp.le.s32.totalorder %v1965, %v1932
          %vm1976 = vcmp.le.s32.totalorder %v1964, %v1933
          %vm1977 = vcmp.le.s32.totalorder %v1965, %v1933
          %vm1978 = vcmp.le.s32.totalorder %v1964, %v1934
          %vm1979 = vcmp.le.s32.totalorder %v1965, %v1934
          %vm1980 = vcmp.le.s32.totalorder %v1964, %v1935
          %vm1981 = vcmp.le.s32.totalorder %v1965, %v1935
          %vm1982 = vcmp.le.s32.totalorder %v1964, %v1936
          %vm1983 = vcmp.le.s32.totalorder %v1965, %v1936
          %vm1984 = vcmp.le.s32.totalorder %v1964, %v1937
          %vm1985 = vcmp.le.s32.totalorder %v1965, %v1937
          %vm1986 = vcmp.le.s32.totalorder %v1964, %v1938
          %vm1987 = vcmp.le.s32.totalorder %v1965, %v1938
          %vm1988 = vcmp.le.s32.totalorder %v1964, %v1939
          %vm1989 = vcmp.le.s32.totalorder %v1965, %v1939
          %vm1990 = vcmp.le.s32.totalorder %v1964, %v1940
          %vm1991 = vcmp.le.s32.totalorder %v1965, %v1940
          %vm1992 = vcmp.le.s32.totalorder %v1964, %v1941
          %vm1993 = vcmp.le.s32.totalorder %v1965, %v1941
          %vm1994 = vcmp.le.s32.totalorder %v1964, %v1942
          %vm1995 = vcmp.le.s32.totalorder %v1965, %v1942
          %vm1996 = vcmp.le.s32.totalorder %v1964, %v1943
          %vm1997 = vcmp.le.s32.totalorder %v1965, %v1943
          %vm1998 = vcmp.le.s32.totalorder %v1964, %v1944
          %vm1999 = vcmp.le.s32.totalorder %v1965, %v1944
          %vm2000 = vcmp.le.s32.totalorder %v1964, %v1945
          %vm2001 = vcmp.le.s32.totalorder %v1965, %v1945
          %vm2002 = vcmp.le.s32.totalorder %v1964, %v1946
          %vm2003 = vcmp.le.s32.totalorder %v1965, %v1946
          %vm2004 = vcmp.le.s32.totalorder %v1964, %v1947
          %vm2005 = vcmp.le.s32.totalorder %v1965, %v1947
          %vm2006 = vcmp.le.s32.totalorder %v1964, %v1948
          %vm2007 = vcmp.le.s32.totalorder %v1965, %v1948
          %vm2008 = vcmp.le.s32.totalorder %v1964, %v1949
          %vm2009 = vcmp.le.s32.totalorder %v1965, %v1949
          %vm2010 = vcmp.le.s32.totalorder %v1964, %v1950
          %vm2011 = vcmp.le.s32.totalorder %v1965, %v1950
          %vm2012 = vcmp.le.s32.totalorder %v1964, %v1951
          %vm2013 = vcmp.le.s32.totalorder %v1965, %v1951
          %vm2014 = vcmp.le.s32.totalorder %v1964, %v1952
          %vm2015 = vcmp.le.s32.totalorder %v1965, %v1952
          %vm2016 = vcmp.le.s32.totalorder %v1964, %v1953
          %vm2017 = vcmp.le.s32.totalorder %v1965, %v1953
          %vm2018 = vcmp.le.s32.totalorder %v1964, %v1954
          %vm2019 = vcmp.le.s32.totalorder %v1965, %v1954
          %vm2020 = vcmp.le.s32.totalorder %v1964, %v1955
          %vm2021 = vcmp.le.s32.totalorder %v1965, %v1955
          %vm2022 = vcmp.le.s32.totalorder %v1964, %v1956
          %vm2023 = vcmp.le.s32.totalorder %v1965, %v1956
          %vm2024 = vcmp.le.s32.totalorder %v1964, %v1957
          %vm2025 = vcmp.le.s32.totalorder %v1965, %v1957
          %vm2026 = vcmp.le.s32.totalorder %v1964, %v1958
          %vm2027 = vcmp.le.s32.totalorder %v1965, %v1958
          %vm2028 = vcmp.le.s32.totalorder %v1964, %v1959
          %vm2029 = vcmp.le.s32.totalorder %v1965, %v1959
          %v2030 = vsel %vm1966, %v1686, -inf
          %v2031 = vsel %vm1967, %v1799, -inf
          %v2032 = vsel %vm1968, %v1689, -inf
          %v2033 = vsel %vm1969, %v1802, -inf
          %v2034 = vsel %vm1970, %v1692, -inf
          %v2035 = vsel %vm1971, %v1805, -inf
          %v2036 = vsel %vm1972, %v1695, -inf
          %v2037 = vsel %vm1973, %v1808, -inf
          %v2038 = vsel %vm1974, %v1698, -inf
          %v2039 = vsel %vm1975, %v1811, -inf
          %v2040 = vsel %vm1976, %v1701, -inf
          %v2041 = vsel %vm1977, %v1814, -inf
          %v2042 = vsel %vm1978, %v1704, -inf
          %v2043 = vsel %vm1979, %v1817, -inf
          %v2044 = vsel %vm1980, %v1707, -inf
          %v2045 = vsel %vm1981, %v1820, -inf
          %v2046 = vsel %vm1982, %v1710, -inf
          %v2047 = vsel %vm1983, %v1823, -inf
          %v2048 = vsel %vm1984, %v1713, -inf
          %v2049 = vsel %vm1985, %v1826, -inf
          %v2050 = vsel %vm1986, %v1716, -inf
          %v2051 = vsel %vm1987, %v1829, -inf
          %v2052 = vsel %vm1988, %v1719, -inf
          %v2053 = vsel %vm1989, %v1832, -inf
          %v2054 = vsel %vm1990, %v1722, -inf
          %v2055 = vsel %vm1991, %v1835, -inf
          %v2056 = vsel %vm1992, %v1725, -inf
          %v2057 = vsel %vm1993, %v1838, -inf
          %v2058 = vsel %vm1994, %v1728, -inf
          %v2059 = vsel %vm1995, %v1841, -inf
          %v2060 = vsel %vm1996, %v1731, -inf
          %v2061 = vsel %vm1997, %v1844, -inf
          %v2062 = vsel %vm1998, %v1734, -inf
          %v2063 = vsel %vm1999, %v1847, -inf
          %v2064 = vsel %vm2000, %v1737, -inf
          %v2065 = vsel %vm2001, %v1850, -inf
          %v2066 = vsel %vm2002, %v1740, -inf
          %v2067 = vsel %vm2003, %v1853, -inf
          %v2068 = vsel %vm2004, %v1743, -inf
          %v2069 = vsel %vm2005, %v1856, -inf
          %v2070 = vsel %vm2006, %v1746, -inf
          %v2071 = vsel %vm2007, %v1859, -inf
          %v2072 = vsel %vm2008, %v1749, -inf
          %v2073 = vsel %vm2009, %v1862, -inf
          %v2074 = vsel %vm2010, %v1752, -inf
          %v2075 = vsel %vm2011, %v1865, -inf
          %v2076 = vsel %vm2012, %v1755, -inf
          %v2077 = vsel %vm2013, %v1868, -inf
          %v2078 = vsel %vm2014, %v1758, -inf
          %v2079 = vsel %vm2015, %v1871, -inf
          %v2080 = vsel %vm2016, %v1761, -inf
          %v2081 = vsel %vm2017, %v1874, -inf
          %v2082 = vsel %vm2018, %v1764, -inf
          %v2083 = vsel %vm2019, %v1877, -inf
          %v2084 = vsel %vm2020, %v1767, -inf
          %v2085 = vsel %vm2021, %v1880, -inf
          %v2086 = vsel %vm2022, %v1770, -inf
          %v2087 = vsel %vm2023, %v1883, -inf
          %v2088 = vsel %vm2024, %v1773, -inf
          %v2089 = vsel %vm2025, %v1886, -inf
          %v2090 = vsel %vm2026, %v1776, -inf
          %v2091 = vsel %vm2027, %v1889, -inf
          %v2092 = vsel %vm2028, %v1779, -inf
          %v2093 = vsel %vm2029, %v1892, -inf
          %v2094 = vld [vmem:[#allocation3] sm:$0xff]
          %v2095 = vld [vmem:[#allocation3 + $0x8] sm:$0xff]
          %v2096 = vld [vmem:[#allocation3 + $0x10] sm:$0xff]
          %v2097 = vld [vmem:[#allocation3 + $0x18] sm:$0xff]
          %v2098 = vld [vmem:[#allocation3 + $0x20] sm:$0xff]
          %v2099 = vld [vmem:[#allocation3 + $0x28] sm:$0xff]
          %v2100 = vld [vmem:[#allocation3 + $0x30] sm:$0xff]
          %v2101 = vld [vmem:[#allocation3 + $0x38] sm:$0xff]
          %v2102 = vld [vmem:[#allocation3 + $0x40] sm:$0xff]
          %v2103 = vld [vmem:[#allocation3 + $0x48] sm:$0xff]
          %v2104 = vld [vmem:[#allocation3 + $0x50] sm:$0xff]
          %v2105 = vld [vmem:[#allocation3 + $0x58] sm:$0xff]
          %v2106 = vld [vmem:[#allocation3 + $0x60] sm:$0xff]
          %v2107 = vld [vmem:[#allocation3 + $0x68] sm:$0xff]
          %v2108 = vld [vmem:[#allocation3 + $0x70] sm:$0xff]
          %v2109 = vld [vmem:[#allocation3 + $0x78] sm:$0xff]
          %v2110 = vld [vmem:[#allocation3 + $0x80] sm:$0xff]
          %v2111 = vld [vmem:[#allocation3 + $0x88] sm:$0xff]
          %v2112 = vld [vmem:[#allocation3 + $0x90] sm:$0xff]
          %v2113 = vld [vmem:[#allocation3 + $0x98] sm:$0xff]
          %v2114 = vld [vmem:[#allocation3 + $0xa0] sm:$0xff]
          %v2115 = vld [vmem:[#allocation3 + $0xa8] sm:$0xff]
          %v2116 = vld [vmem:[#allocation3 + $0xb0] sm:$0xff]
          %v2117 = vld [vmem:[#allocation3 + $0xb8] sm:$0xff]
          %v2118 = vld [vmem:[#allocation3 + $0xc0] sm:$0xff]
          %v2119 = vld [vmem:[#allocation3 + $0xc8] sm:$0xff]
          %v2120 = vld [vmem:[#allocation3 + $0xd0] sm:$0xff]
          %v2121 = vld [vmem:[#allocation3 + $0xd8] sm:$0xff]
          %v2122 = vld [vmem:[#allocation3 + $0xe0] sm:$0xff]
          %v2123 = vld [vmem:[#allocation3 + $0xe8] sm:$0xff]
          %v2124 = vld [vmem:[#allocation3 + $0xf0] sm:$0xff]
          %v2125 = vld [vmem:[#allocation3 + $0xf8] sm:$0xff]
          %v2126 = vmax.f32 %v2030, %v2031
          %2127 = vmax.xlane.f32.xlu0 %v2126
          %v2128 = vpop.xlane.xlu0 %2127
          %v2129 = vmax.f32 %v2032, %v2033
          %2130 = vmax.xlane.f32.xlu0 %v2129
          %v2131 = vpop.xlane.xlu0 %2130
          %v2132 = vmax.f32 %v2034, %v2035
          %2133 = vmax.xlane.f32.xlu0 %v2132
          %v2134 = vpop.xlane.xlu0 %2133
          %v2135 = vmax.f32 %v2036, %v2037
          %2136 = vmax.xlane.f32.xlu0 %v2135
          %v2137 = vpop.xlane.xlu0 %2136
          %v2138 = vmax.f32 %v2038, %v2039
          %2139 = vmax.xlane.f32.xlu0 %v2138
          %v2140 = vpop.xlane.xlu0 %2139
          %v2141 = vmax.f32 %v2040, %v2041
          %2142 = vmax.xlane.f32.xlu0 %v2141
          %v2143 = vpop.xlane.xlu0 %2142
          %v2144 = vmax.f32 %v2042, %v2043
          %2145 = vmax.xlane.f32.xlu0 %v2144
          %v2146 = vpop.xlane.xlu0 %2145
          %v2147 = vmax.f32 %v2044, %v2045
          %2148 = vmax.xlane.f32.xlu0 %v2147
          %v2149 = vpop.xlane.xlu0 %2148
          %v2150 = vmax.f32 %v2046, %v2047
          %2151 = vmax.xlane.f32.xlu0 %v2150
          %v2152 = vpop.xlane.xlu0 %2151
          %v2153 = vmax.f32 %v2048, %v2049
          %2154 = vmax.xlane.f32.xlu0 %v2153
          %v2155 = vpop.xlane.xlu0 %2154
          %v2156 = vmax.f32 %v2050, %v2051
          %2157 = vmax.xlane.f32.xlu0 %v2156
          %v2158 = vpop.xlane.xlu0 %2157
          %v2159 = vmax.f32 %v2052, %v2053
          %2160 = vmax.xlane.f32.xlu0 %v2159
          %v2161 = vpop.xlane.xlu0 %2160
          %v2162 = vmax.f32 %v2054, %v2055
          %2163 = vmax.xlane.f32.xlu0 %v2162
          %v2164 = vpop.xlane.xlu0 %2163
          %v2165 = vmax.f32 %v2056, %v2057
          %2166 = vmax.xlane.f32.xlu0 %v2165
          %v2167 = vpop.xlane.xlu0 %2166
          %v2168 = vmax.f32 %v2058, %v2059
          %2169 = vmax.xlane.f32.xlu0 %v2168
          %v2170 = vpop.xlane.xlu0 %2169
          %v2171 = vmax.f32 %v2060, %v2061
          %2172 = vmax.xlane.f32.xlu0 %v2171
          %v2173 = vpop.xlane.xlu0 %2172
          %v2174 = vmax.f32 %v2062, %v2063
          %2175 = vmax.xlane.f32.xlu0 %v2174
          %v2176 = vpop.xlane.xlu0 %2175
          %v2177 = vmax.f32 %v2064, %v2065
          %2178 = vmax.xlane.f32.xlu0 %v2177
          %v2179 = vpop.xlane.xlu0 %2178
          %v2180 = vmax.f32 %v2066, %v2067
          %2181 = vmax.xlane.f32.xlu0 %v2180
          %v2182 = vpop.xlane.xlu0 %2181
          %v2183 = vmax.f32 %v2068, %v2069
          %2184 = vmax.xlane.f32.xlu0 %v2183
          %v2185 = vpop.xlane.xlu0 %2184
          %v2186 = vmax.f32 %v2070, %v2071
          %2187 = vmax.xlane.f32.xlu0 %v2186
          %v2188 = vpop.xlane.xlu0 %2187
          %v2189 = vmax.f32 %v2072, %v2073
          %2190 = vmax.xlane.f32.xlu0 %v2189
          %v2191 = vpop.xlane.xlu0 %2190
          %v2192 = vmax.f32 %v2074, %v2075
          %2193 = vmax.xlane.f32.xlu0 %v2192
          %v2194 = vpop.xlane.xlu0 %2193
          %v2195 = vmax.f32 %v2076, %v2077
          %2196 = vmax.xlane.f32.xlu0 %v2195
          %v2197 = vpop.xlane.xlu0 %2196
          %v2198 = vmax.f32 %v2078, %v2079
          %2199 = vmax.xlane.f32.xlu0 %v2198
          %v2200 = vpop.xlane.xlu0 %2199
          %v2201 = vmax.f32 %v2080, %v2081
          %2202 = vmax.xlane.f32.xlu0 %v2201
          %v2203 = vpop.xlane.xlu0 %2202
          %v2204 = vmax.f32 %v2082, %v2083
          %2205 = vmax.xlane.f32.xlu0 %v2204
          %v2206 = vpop.xlane.xlu0 %2205
          %v2207 = vmax.f32 %v2084, %v2085
          %2208 = vmax.xlane.f32.xlu0 %v2207
          %v2209 = vpop.xlane.xlu0 %2208
          %v2210 = vmax.f32 %v2086, %v2087
          %2211 = vmax.xlane.f32.xlu0 %v2210
          %v2212 = vpop.xlane.xlu0 %2211
          %v2213 = vmax.f32 %v2088, %v2089
          %2214 = vmax.xlane.f32.xlu0 %v2213
          %v2215 = vpop.xlane.xlu0 %2214
          %v2216 = vmax.f32 %v2090, %v2091
          %2217 = vmax.xlane.f32.xlu0 %v2216
          %v2218 = vpop.xlane.xlu0 %2217
          %v2219 = vmax.f32 %v2092, %v2093
          %2220 = vmax.xlane.f32.xlu0 %v2219
          %v2221 = vpop.xlane.xlu0 %2220
          %v2222 = vmax.f32 %v2094, %v2128
          %v2223 = vmax.f32 %v2095, %v2131
          %v2224 = vmax.f32 %v2096, %v2134
          %v2225 = vmax.f32 %v2097, %v2137
          %v2226 = vmax.f32 %v2098, %v2140
          %v2227 = vmax.f32 %v2099, %v2143
          %v2228 = vmax.f32 %v2100, %v2146
          %v2229 = vmax.f32 %v2101, %v2149
          %v2230 = vmax.f32 %v2102, %v2152
          %v2231 = vmax.f32 %v2103, %v2155
          %v2232 = vmax.f32 %v2104, %v2158
          %v2233 = vmax.f32 %v2105, %v2161
          %v2234 = vmax.f32 %v2106, %v2164
          %v2235 = vmax.f32 %v2107, %v2167
          %v2236 = vmax.f32 %v2108, %v2170
          %v2237 = vmax.f32 %v2109, %v2173
          %v2238 = vmax.f32 %v2110, %v2176
          %v2239 = vmax.f32 %v2111, %v2179
          %v2240 = vmax.f32 %v2112, %v2182
          %v2241 = vmax.f32 %v2113, %v2185
          %v2242 = vmax.f32 %v2114, %v2188
          %v2243 = vmax.f32 %v2115, %v2191
          %v2244 = vmax.f32 %v2116, %v2194
          %v2245 = vmax.f32 %v2117, %v2197
          %v2246 = vmax.f32 %v2118, %v2200
          %v2247 = vmax.f32 %v2119, %v2203
          %v2248 = vmax.f32 %v2120, %v2206
          %v2249 = vmax.f32 %v2121, %v2209
          %v2250 = vmax.f32 %v2122, %v2212
          %v2251 = vmax.f32 %v2123, %v2215
          %v2252 = vmax.f32 %v2124, %v2218
          %v2253 = vmax.f32 %v2125, %v2221
          %v2254 = vsub.f32 %v2094, %v2222
          %v2255 = vsub.f32 %v2095, %v2223
          %v2256 = vsub.f32 %v2096, %v2224
          %v2257 = vsub.f32 %v2097, %v2225
          %v2258 = vsub.f32 %v2098, %v2226
          %v2259 = vsub.f32 %v2099, %v2227
          %v2260 = vsub.f32 %v2100, %v2228
          %v2261 = vsub.f32 %v2101, %v2229
          %v2262 = vsub.f32 %v2102, %v2230
          %v2263 = vsub.f32 %v2103, %v2231
          %v2264 = vsub.f32 %v2104, %v2232
          %v2265 = vsub.f32 %v2105, %v2233
          %v2266 = vsub.f32 %v2106, %v2234
          %v2267 = vsub.f32 %v2107, %v2235
          %v2268 = vsub.f32 %v2108, %v2236
          %v2269 = vsub.f32 %v2109, %v2237
          %v2270 = vsub.f32 %v2110, %v2238
          %v2271 = vsub.f32 %v2111, %v2239
          %v2272 = vsub.f32 %v2112, %v2240
          %v2273 = vsub.f32 %v2113, %v2241
          %v2274 = vsub.f32 %v2114, %v2242
          %v2275 = vsub.f32 %v2115, %v2243
          %v2276 = vsub.f32 %v2116, %v2244
          %v2277 = vsub.f32 %v2117, %v2245
          %v2278 = vsub.f32 %v2118, %v2246
          %v2279 = vsub.f32 %v2119, %v2247
          %v2280 = vsub.f32 %v2120, %v2248
          %v2281 = vsub.f32 %v2121, %v2249
          %v2282 = vsub.f32 %v2122, %v2250
          %v2283 = vsub.f32 %v2123, %v2251
          %v2284 = vsub.f32 %v2124, %v2252
          %v2285 = vsub.f32 %v2125, %v2253
          %v2286 = vmul.f32 %v2254, 1.442695
          %v2287 = vpow.pop %v2286
          %v2288 = vmul.f32 %v2255, 1.442695
          %v2289 = vpow.pop %v2288
          %v2290 = vmul.f32 %v2256, 1.442695
          %v2291 = vpow.pop %v2290
          %v2292 = vmul.f32 %v2257, 1.442695
          %v2293 = vpow.pop %v2292
          %v2294 = vmul.f32 %v2258, 1.442695
          %v2295 = vpow.pop %v2294
          %v2296 = vmul.f32 %v2259, 1.442695
          %v2297 = vpow.pop %v2296
          %v2298 = vmul.f32 %v2260, 1.442695
          %v2299 = vpow.pop %v2298
          %v2300 = vmul.f32 %v2261, 1.442695
          %v2301 = vpow.pop %v2300
          %v2302 = vmul.f32 %v2262, 1.442695
          %v2303 = vpow.pop %v2302
          %v2304 = vmul.f32 %v2263, 1.442695
          %v2305 = vpow.pop %v2304
          %v2306 = vmul.f32 %v2264, 1.442695
          %v2307 = vpow.pop %v2306
          %v2308 = vmul.f32 %v2265, 1.442695
          %v2309 = vpow.pop %v2308
          %v2310 = vmul.f32 %v2266, 1.442695
          %v2311 = vpow.pop %v2310
          %v2312 = vmul.f32 %v2267, 1.442695
          %v2313 = vpow.pop %v2312
          %v2314 = vmul.f32 %v2268, 1.442695
          %v2315 = vpow.pop %v2314
          %v2316 = vmul.f32 %v2269, 1.442695
          %v2317 = vpow.pop %v2316
          %v2318 = vmul.f32 %v2270, 1.442695
          %v2319 = vpow.pop %v2318
          %v2320 = vmul.f32 %v2271, 1.442695
          %v2321 = vpow.pop %v2320
          %v2322 = vmul.f32 %v2272, 1.442695
          %v2323 = vpow.pop %v2322
          %v2324 = vmul.f32 %v2273, 1.442695
          %v2325 = vpow.pop %v2324
          %v2326 = vmul.f32 %v2274, 1.442695
          %v2327 = vpow.pop %v2326
          %v2328 = vmul.f32 %v2275, 1.442695
          %v2329 = vpow.pop %v2328
          %v2330 = vmul.f32 %v2276, 1.442695
          %v2331 = vpow.pop %v2330
          %v2332 = vmul.f32 %v2277, 1.442695
          %v2333 = vpow.pop %v2332
          %v2334 = vmul.f32 %v2278, 1.442695
          %v2335 = vpow.pop %v2334
          %v2336 = vmul.f32 %v2279, 1.442695
          %v2337 = vpow.pop %v2336
          %v2338 = vmul.f32 %v2280, 1.442695
          %v2339 = vpow.pop %v2338
          %v2340 = vmul.f32 %v2281, 1.442695
          %v2341 = vpow.pop %v2340
          %v2342 = vmul.f32 %v2282, 1.442695
          %v2343 = vpow.pop %v2342
          %v2344 = vmul.f32 %v2283, 1.442695
          %v2345 = vpow.pop %v2344
          %v2346 = vmul.f32 %v2284, 1.442695
          %v2347 = vpow.pop %v2346
          %v2348 = vmul.f32 %v2285, 1.442695
          %v2349 = vpow.pop %v2348
          %2351 = vset.pattern.permute.xlu0 0
          %2352 = vperm.xlu0 %2351, %v2222
          %v2353 = vpop.permute.xlu0 %2352
          %2356 = vset.pattern.permute.xlu0 0
          %2357 = vperm.xlu0 %2356, %v2223
          %v2358 = vpop.permute.xlu0 %2357
          %2361 = vset.pattern.permute.xlu0 0
          %2362 = vperm.xlu0 %2361, %v2224
          %v2363 = vpop.permute.xlu0 %2362
          %2366 = vset.pattern.permute.xlu0 0
          %2367 = vperm.xlu0 %2366, %v2225
          %v2368 = vpop.permute.xlu0 %2367
          %2371 = vset.pattern.permute.xlu0 0
          %2372 = vperm.xlu0 %2371, %v2226
          %v2373 = vpop.permute.xlu0 %2372
          %2376 = vset.pattern.permute.xlu0 0
          %2377 = vperm.xlu0 %2376, %v2227
          %v2378 = vpop.permute.xlu0 %2377
          %2381 = vset.pattern.permute.xlu0 0
          %2382 = vperm.xlu0 %2381, %v2228
          %v2383 = vpop.permute.xlu0 %2382
          %2386 = vset.pattern.permute.xlu0 0
          %2387 = vperm.xlu0 %2386, %v2229
          %v2388 = vpop.permute.xlu0 %2387
          %2391 = vset.pattern.permute.xlu0 0
          %2392 = vperm.xlu0 %2391, %v2230
          %v2393 = vpop.permute.xlu0 %2392
          %2396 = vset.pattern.permute.xlu0 0
          %2397 = vperm.xlu0 %2396, %v2231
          %v2398 = vpop.permute.xlu0 %2397
          %2401 = vset.pattern.permute.xlu0 0
          %2402 = vperm.xlu0 %2401, %v2232
          %v2403 = vpop.permute.xlu0 %2402
          %2406 = vset.pattern.permute.xlu0 0
          %2407 = vperm.xlu0 %2406, %v2233
          %v2408 = vpop.permute.xlu0 %2407
          %2411 = vset.pattern.permute.xlu0 0
          %2412 = vperm.xlu0 %2411, %v2234
          %v2413 = vpop.permute.xlu0 %2412
          %2416 = vset.pattern.permute.xlu0 0
          %2417 = vperm.xlu0 %2416, %v2235
          %v2418 = vpop.permute.xlu0 %2417
          %2421 = vset.pattern.permute.xlu0 0
          %2422 = vperm.xlu0 %2421, %v2236
          %v2423 = vpop.permute.xlu0 %2422
          %2426 = vset.pattern.permute.xlu0 0
          %2427 = vperm.xlu0 %2426, %v2237
          %v2428 = vpop.permute.xlu0 %2427
          %2431 = vset.pattern.permute.xlu0 0
          %2432 = vperm.xlu0 %2431, %v2238
          %v2433 = vpop.permute.xlu0 %2432
          %2436 = vset.pattern.permute.xlu0 0
          %2437 = vperm.xlu0 %2436, %v2239
          %v2438 = vpop.permute.xlu0 %2437
          %2441 = vset.pattern.permute.xlu0 0
          %2442 = vperm.xlu0 %2441, %v2240
          %v2443 = vpop.permute.xlu0 %2442
          %2446 = vset.pattern.permute.xlu0 0
          %2447 = vperm.xlu0 %2446, %v2241
          %v2448 = vpop.permute.xlu0 %2447
          %2451 = vset.pattern.permute.xlu0 0
          %2452 = vperm.xlu0 %2451, %v2242
          %v2453 = vpop.permute.xlu0 %2452
          %2456 = vset.pattern.permute.xlu0 0
          %2457 = vperm.xlu0 %2456, %v2243
          %v2458 = vpop.permute.xlu0 %2457
          %2461 = vset.pattern.permute.xlu0 0
          %2462 = vperm.xlu0 %2461, %v2244
          %v2463 = vpop.permute.xlu0 %2462
          %2466 = vset.pattern.permute.xlu0 0
          %2467 = vperm.xlu0 %2466, %v2245
          %v2468 = vpop.permute.xlu0 %2467
          %2471 = vset.pattern.permute.xlu0 0
          %2472 = vperm.xlu0 %2471, %v2246
          %v2473 = vpop.permute.xlu0 %2472
          %2476 = vset.pattern.permute.xlu0 0
          %2477 = vperm.xlu0 %2476, %v2247
          %v2478 = vpop.permute.xlu0 %2477
          %2481 = vset.pattern.permute.xlu0 0
          %2482 = vperm.xlu0 %2481, %v2248
          %v2483 = vpop.permute.xlu0 %2482
          %2486 = vset.pattern.permute.xlu0 0
          %2487 = vperm.xlu0 %2486, %v2249
          %v2488 = vpop.permute.xlu0 %2487
          %2491 = vset.pattern.permute.xlu0 0
          %2492 = vperm.xlu0 %2491, %v2250
          %v2493 = vpop.permute.xlu0 %2492
          %2496 = vset.pattern.permute.xlu0 0
          %2497 = vperm.xlu0 %2496, %v2251
          %v2498 = vpop.permute.xlu0 %2497
          %2501 = vset.pattern.permute.xlu0 0
          %2502 = vperm.xlu0 %2501, %v2252
          %v2503 = vpop.permute.xlu0 %2502
          %2506 = vset.pattern.permute.xlu0 0
          %2507 = vperm.xlu0 %2506, %v2253
          %v2508 = vpop.permute.xlu0 %2507
          %v2510 = vsub.f32 %v2030, %v2353
          %v2511 = vsub.f32 %v2031, %v2353
          %v2512 = vsub.f32 %v2032, %v2358
          %v2513 = vsub.f32 %v2033, %v2358
          %v2514 = vsub.f32 %v2034, %v2363
          %v2515 = vsub.f32 %v2035, %v2363
          %v2516 = vsub.f32 %v2036, %v2368
          %v2517 = vsub.f32 %v2037, %v2368
          %v2518 = vsub.f32 %v2038, %v2373
          %v2519 = vsub.f32 %v2039, %v2373
          %v2520 = vsub.f32 %v2040, %v2378
          %v2521 = vsub.f32 %v2041, %v2378
          %v2522 = vsub.f32 %v2042, %v2383
          %v2523 = vsub.f32 %v2043, %v2383
          %v2524 = vsub.f32 %v2044, %v2388
          %v2525 = vsub.f32 %v2045, %v2388
          %v2526 = vsub.f32 %v2046, %v2393
          %v2527 = vsub.f32 %v2047, %v2393
          %v2528 = vsub.f32 %v2048, %v2398
          %v2529 = vsub.f32 %v2049, %v2398
          %v2530 = vsub.f32 %v2050, %v2403
          %v2531 = vsub.f32 %v2051, %v2403
          %v2532 = vsub.f32 %v2052, %v2408
          %v2533 = vsub.f32 %v2053, %v2408
          %v2534 = vsub.f32 %v2054, %v2413
          %v2535 = vsub.f32 %v2055, %v2413
          %v2536 = vsub.f32 %v2056, %v2418
          %v2537 = vsub.f32 %v2057, %v2418
          %v2538 = vsub.f32 %v2058, %v2423
          %v2539 = vsub.f32 %v2059, %v2423
          %v2540 = vsub.f32 %v2060, %v2428
          %v2541 = vsub.f32 %v2061, %v2428
          %v2542 = vsub.f32 %v2062, %v2433
          %v2543 = vsub.f32 %v2063, %v2433
          %v2544 = vsub.f32 %v2064, %v2438
          %v2545 = vsub.f32 %v2065, %v2438
          %v2546 = vsub.f32 %v2066, %v2443
          %v2547 = vsub.f32 %v2067, %v2443
          %v2548 = vsub.f32 %v2068, %v2448
          %v2549 = vsub.f32 %v2069, %v2448
          %v2550 = vsub.f32 %v2070, %v2453
          %v2551 = vsub.f32 %v2071, %v2453
          %v2552 = vsub.f32 %v2072, %v2458
          %v2553 = vsub.f32 %v2073, %v2458
          %v2554 = vsub.f32 %v2074, %v2463
          %v2555 = vsub.f32 %v2075, %v2463
          %v2556 = vsub.f32 %v2076, %v2468
          %v2557 = vsub.f32 %v2077, %v2468
          %v2558 = vsub.f32 %v2078, %v2473
          %v2559 = vsub.f32 %v2079, %v2473
          %v2560 = vsub.f32 %v2080, %v2478
          %v2561 = vsub.f32 %v2081, %v2478
          %v2562 = vsub.f32 %v2082, %v2483
          %v2563 = vsub.f32 %v2083, %v2483
          %v2564 = vsub.f32 %v2084, %v2488
          %v2565 = vsub.f32 %v2085, %v2488
          %v2566 = vsub.f32 %v2086, %v2493
          %v2567 = vsub.f32 %v2087, %v2493
          %v2568 = vsub.f32 %v2088, %v2498
          %v2569 = vsub.f32 %v2089, %v2498
          %v2570 = vsub.f32 %v2090, %v2503
          %v2571 = vsub.f32 %v2091, %v2503
          %v2572 = vsub.f32 %v2092, %v2508
          %v2573 = vsub.f32 %v2093, %v2508
          %v2574 = vmul.f32 %v2510, 1.442695
          %v2575 = vpow.pop %v2574
          %v2576 = vmul.f32 %v2511, 1.442695
          %v2577 = vpow.pop %v2576
          %v2578 = vmul.f32 %v2512, 1.442695
          %v2579 = vpow.pop %v2578
          %v2580 = vmul.f32 %v2513, 1.442695
          %v2581 = vpow.pop %v2580
          %v2582 = vmul.f32 %v2514, 1.442695
          %v2583 = vpow.pop %v2582
          %v2584 = vmul.f32 %v2515, 1.442695
          %v2585 = vpow.pop %v2584
          %v2586 = vmul.f32 %v2516, 1.442695
          %v2587 = vpow.pop %v2586
          %v2588 = vmul.f32 %v2517, 1.442695
          %v2589 = vpow.pop %v2588
          %v2590 = vmul.f32 %v2518, 1.442695
          %v2591 = vpow.pop %v2590
          %v2592 = vmul.f32 %v2519, 1.442695
          %v2593 = vpow.pop %v2592
          %v2594 = vmul.f32 %v2520, 1.442695
          %v2595 = vpow.pop %v2594
          %v2596 = vmul.f32 %v2521, 1.442695
          %v2597 = vpow.pop %v2596
          %v2598 = vmul.f32 %v2522, 1.442695
          %v2599 = vpow.pop %v2598
          %v2600 = vmul.f32 %v2523, 1.442695
          %v2601 = vpow.pop %v2600
          %v2602 = vmul.f32 %v2524, 1.442695
          %v2603 = vpow.pop %v2602
          %v2604 = vmul.f32 %v2525, 1.442695
          %v2605 = vpow.pop %v2604
          %v2606 = vmul.f32 %v2526, 1.442695
          %v2607 = vpow.pop %v2606
          %v2608 = vmul.f32 %v2527, 1.442695
          %v2609 = vpow.pop %v2608
          %v2610 = vmul.f32 %v2528, 1.442695
          %v2611 = vpow.pop %v2610
          %v2612 = vmul.f32 %v2529, 1.442695
          %v2613 = vpow.pop %v2612
          %v2614 = vmul.f32 %v2530, 1.442695
          %v2615 = vpow.pop %v2614
          %v2616 = vmul.f32 %v2531, 1.442695
          %v2617 = vpow.pop %v2616
          %v2618 = vmul.f32 %v2532, 1.442695
          %v2619 = vpow.pop %v2618
          %v2620 = vmul.f32 %v2533, 1.442695
          %v2621 = vpow.pop %v2620
          %v2622 = vmul.f32 %v2534, 1.442695
          %v2623 = vpow.pop %v2622
          %v2624 = vmul.f32 %v2535, 1.442695
          %v2625 = vpow.pop %v2624
          %v2626 = vmul.f32 %v2536, 1.442695
          %v2627 = vpow.pop %v2626
          %v2628 = vmul.f32 %v2537, 1.442695
          %v2629 = vpow.pop %v2628
          %v2630 = vmul.f32 %v2538, 1.442695
          %v2631 = vpow.pop %v2630
          %v2632 = vmul.f32 %v2539, 1.442695
          %v2633 = vpow.pop %v2632
          %v2634 = vmul.f32 %v2540, 1.442695
          %v2635 = vpow.pop %v2634
          %v2636 = vmul.f32 %v2541, 1.442695
          %v2637 = vpow.pop %v2636
          %v2638 = vmul.f32 %v2542, 1.442695
          %v2639 = vpow.pop %v2638
          %v2640 = vmul.f32 %v2543, 1.442695
          %v2641 = vpow.pop %v2640
          %v2642 = vmul.f32 %v2544, 1.442695
          %v2643 = vpow.pop %v2642
          %v2644 = vmul.f32 %v2545, 1.442695
          %v2645 = vpow.pop %v2644
          %v2646 = vmul.f32 %v2546, 1.442695
          %v2647 = vpow.pop %v2646
          %v2648 = vmul.f32 %v2547, 1.442695
          %v2649 = vpow.pop %v2648
          %v2650 = vmul.f32 %v2548, 1.442695
          %v2651 = vpow.pop %v2650
          %v2652 = vmul.f32 %v2549, 1.442695
          %v2653 = vpow.pop %v2652
          %v2654 = vmul.f32 %v2550, 1.442695
          %v2655 = vpow.pop %v2654
          %v2656 = vmul.f32 %v2551, 1.442695
          %v2657 = vpow.pop %v2656
          %v2658 = vmul.f32 %v2552, 1.442695
          %v2659 = vpow.pop %v2658
          %v2660 = vmul.f32 %v2553, 1.442695
          %v2661 = vpow.pop %v2660
          %v2662 = vmul.f32 %v2554, 1.442695
          %v2663 = vpow.pop %v2662
          %v2664 = vmul.f32 %v2555, 1.442695
          %v2665 = vpow.pop %v2664
          %v2666 = vmul.f32 %v2556, 1.442695
          %v2667 = vpow.pop %v2666
          %v2668 = vmul.f32 %v2557, 1.442695
          %v2669 = vpow.pop %v2668
          %v2670 = vmul.f32 %v2558, 1.442695
          %v2671 = vpow.pop %v2670
          %v2672 = vmul.f32 %v2559, 1.442695
          %v2673 = vpow.pop %v2672
          %v2674 = vmul.f32 %v2560, 1.442695
          %v2675 = vpow.pop %v2674
          %v2676 = vmul.f32 %v2561, 1.442695
          %v2677 = vpow.pop %v2676
          %v2678 = vmul.f32 %v2562, 1.442695
          %v2679 = vpow.pop %v2678
          %v2680 = vmul.f32 %v2563, 1.442695
          %v2681 = vpow.pop %v2680
          %v2682 = vmul.f32 %v2564, 1.442695
          %v2683 = vpow.pop %v2682
          %v2684 = vmul.f32 %v2565, 1.442695
          %v2685 = vpow.pop %v2684
          %v2686 = vmul.f32 %v2566, 1.442695
          %v2687 = vpow.pop %v2686
          %v2688 = vmul.f32 %v2567, 1.442695
          %v2689 = vpow.pop %v2688
          %v2690 = vmul.f32 %v2568, 1.442695
          %v2691 = vpow.pop %v2690
          %v2692 = vmul.f32 %v2569, 1.442695
          %v2693 = vpow.pop %v2692
          %v2694 = vmul.f32 %v2570, 1.442695
          %v2695 = vpow.pop %v2694
          %v2696 = vmul.f32 %v2571, 1.442695
          %v2697 = vpow.pop %v2696
          %v2698 = vmul.f32 %v2572, 1.442695
          %v2699 = vpow.pop %v2698
          %v2700 = vmul.f32 %v2573, 1.442695
          %v2701 = vpow.pop %v2700
          %v2702 = vld [vmem:[#allocation4] sm:$0xff]
          %v2703 = vld [vmem:[#allocation4 + $0x8] sm:$0xff]
          %v2704 = vld [vmem:[#allocation4 + $0x10] sm:$0xff]
          %v2705 = vld [vmem:[#allocation4 + $0x18] sm:$0xff]
          %v2706 = vld [vmem:[#allocation4 + $0x20] sm:$0xff]
          %v2707 = vld [vmem:[#allocation4 + $0x28] sm:$0xff]
          %v2708 = vld [vmem:[#allocation4 + $0x30] sm:$0xff]
          %v2709 = vld [vmem:[#allocation4 + $0x38] sm:$0xff]
          %v2710 = vld [vmem:[#allocation4 + $0x40] sm:$0xff]
          %v2711 = vld [vmem:[#allocation4 + $0x48] sm:$0xff]
          %v2712 = vld [vmem:[#allocation4 + $0x50] sm:$0xff]
          %v2713 = vld [vmem:[#allocation4 + $0x58] sm:$0xff]
          %v2714 = vld [vmem:[#allocation4 + $0x60] sm:$0xff]
          %v2715 = vld [vmem:[#allocation4 + $0x68] sm:$0xff]
          %v2716 = vld [vmem:[#allocation4 + $0x70] sm:$0xff]
          %v2717 = vld [vmem:[#allocation4 + $0x78] sm:$0xff]
          %v2718 = vld [vmem:[#allocation4 + $0x80] sm:$0xff]
          %v2719 = vld [vmem:[#allocation4 + $0x88] sm:$0xff]
          %v2720 = vld [vmem:[#allocation4 + $0x90] sm:$0xff]
          %v2721 = vld [vmem:[#allocation4 + $0x98] sm:$0xff]
          %v2722 = vld [vmem:[#allocation4 + $0xa0] sm:$0xff]
          %v2723 = vld [vmem:[#allocation4 + $0xa8] sm:$0xff]
          %v2724 = vld [vmem:[#allocation4 + $0xb0] sm:$0xff]
          %v2725 = vld [vmem:[#allocation4 + $0xb8] sm:$0xff]
          %v2726 = vld [vmem:[#allocation4 + $0xc0] sm:$0xff]
          %v2727 = vld [vmem:[#allocation4 + $0xc8] sm:$0xff]
          %v2728 = vld [vmem:[#allocation4 + $0xd0] sm:$0xff]
          %v2729 = vld [vmem:[#allocation4 + $0xd8] sm:$0xff]
          %v2730 = vld [vmem:[#allocation4 + $0xe0] sm:$0xff]
          %v2731 = vld [vmem:[#allocation4 + $0xe8] sm:$0xff]
          %v2732 = vld [vmem:[#allocation4 + $0xf0] sm:$0xff]
          %v2733 = vld [vmem:[#allocation4 + $0xf8] sm:$0xff]
          %v2734 = vmul.f32 %v2287, %v2702
          %v2735 = vmul.f32 %v2289, %v2703
          %v2736 = vmul.f32 %v2291, %v2704
          %v2737 = vmul.f32 %v2293, %v2705
          %v2738 = vmul.f32 %v2295, %v2706
          %v2739 = vmul.f32 %v2297, %v2707
          %v2740 = vmul.f32 %v2299, %v2708
          %v2741 = vmul.f32 %v2301, %v2709
          %v2742 = vmul.f32 %v2303, %v2710
          %v2743 = vmul.f32 %v2305, %v2711
          %v2744 = vmul.f32 %v2307, %v2712
          %v2745 = vmul.f32 %v2309, %v2713
          %v2746 = vmul.f32 %v2311, %v2714
          %v2747 = vmul.f32 %v2313, %v2715
          %v2748 = vmul.f32 %v2315, %v2716
          %v2749 = vmul.f32 %v2317, %v2717
          %v2750 = vmul.f32 %v2319, %v2718
          %v2751 = vmul.f32 %v2321, %v2719
          %v2752 = vmul.f32 %v2323, %v2720
          %v2753 = vmul.f32 %v2325, %v2721
          %v2754 = vmul.f32 %v2327, %v2722
          %v2755 = vmul.f32 %v2329, %v2723
          %v2756 = vmul.f32 %v2331, %v2724
          %v2757 = vmul.f32 %v2333, %v2725
          %v2758 = vmul.f32 %v2335, %v2726
          %v2759 = vmul.f32 %v2337, %v2727
          %v2760 = vmul.f32 %v2339, %v2728
          %v2761 = vmul.f32 %v2341, %v2729
          %v2762 = vmul.f32 %v2343, %v2730
          %v2763 = vmul.f32 %v2345, %v2731
          %v2764 = vmul.f32 %v2347, %v2732
          %v2765 = vmul.f32 %v2349, %v2733
          %v2766 = vadd.f32 %v2575, %v2577
          %2767 = vadd.xlane.f32.xlu0 %v2766
          %v2768 = vpop.xlane.xlu0 %2767
          %v2769 = vadd.f32 %v2579, %v2581
          %2770 = vadd.xlane.f32.xlu0 %v2769
          %v2771 = vpop.xlane.xlu0 %2770
          %v2772 = vadd.f32 %v2583, %v2585
          %2773 = vadd.xlane.f32.xlu0 %v2772
          %v2774 = vpop.xlane.xlu0 %2773
          %v2775 = vadd.f32 %v2587, %v2589
          %2776 = vadd.xlane.f32.xlu0 %v2775
          %v2777 = vpop.xlane.xlu0 %2776
          %v2778 = vadd.f32 %v2591, %v2593
          %2779 = vadd.xlane.f32.xlu0 %v2778
          %v2780 = vpop.xlane.xlu0 %2779
          %v2781 = vadd.f32 %v2595, %v2597
          %2782 = vadd.xlane.f32.xlu0 %v2781
          %v2783 = vpop.xlane.xlu0 %2782
          %v2784 = vadd.f32 %v2599, %v2601
          %2785 = vadd.xlane.f32.xlu0 %v2784
          %v2786 = vpop.xlane.xlu0 %2785
          %v2787 = vadd.f32 %v2603, %v2605
          %2788 = vadd.xlane.f32.xlu0 %v2787
          %v2789 = vpop.xlane.xlu0 %2788
          %v2790 = vadd.f32 %v2607, %v2609
          %2791 = vadd.xlane.f32.xlu0 %v2790
          %v2792 = vpop.xlane.xlu0 %2791
          %v2793 = vadd.f32 %v2611, %v2613
          %2794 = vadd.xlane.f32.xlu0 %v2793
          %v2795 = vpop.xlane.xlu0 %2794
          %v2796 = vadd.f32 %v2615, %v2617
          %2797 = vadd.xlane.f32.xlu0 %v2796
          %v2798 = vpop.xlane.xlu0 %2797
          %v2799 = vadd.f32 %v2619, %v2621
          %2800 = vadd.xlane.f32.xlu0 %v2799
          %v2801 = vpop.xlane.xlu0 %2800
          %v2802 = vadd.f32 %v2623, %v2625
          %2803 = vadd.xlane.f32.xlu0 %v2802
          %v2804 = vpop.xlane.xlu0 %2803
          %v2805 = vadd.f32 %v2627, %v2629
          %2806 = vadd.xlane.f32.xlu0 %v2805
          %v2807 = vpop.xlane.xlu0 %2806
          %v2808 = vadd.f32 %v2631, %v2633
          %2809 = vadd.xlane.f32.xlu0 %v2808
          %v2810 = vpop.xlane.xlu0 %2809
          %v2811 = vadd.f32 %v2635, %v2637
          %2812 = vadd.xlane.f32.xlu0 %v2811
          %v2813 = vpop.xlane.xlu0 %2812
          %v2814 = vadd.f32 %v2639, %v2641
          %2815 = vadd.xlane.f32.xlu0 %v2814
          %v2816 = vpop.xlane.xlu0 %2815
          %v2817 = vadd.f32 %v2643, %v2645
          %2818 = vadd.xlane.f32.xlu0 %v2817
          %v2819 = vpop.xlane.xlu0 %2818
          %v2820 = vadd.f32 %v2647, %v2649
          %2821 = vadd.xlane.f32.xlu0 %v2820
          %v2822 = vpop.xlane.xlu0 %2821
          %v2823 = vadd.f32 %v2651, %v2653
          %2824 = vadd.xlane.f32.xlu0 %v2823
          %v2825 = vpop.xlane.xlu0 %2824
          %v2826 = vadd.f32 %v2655, %v2657
          %2827 = vadd.xlane.f32.xlu0 %v2826
          %v2828 = vpop.xlane.xlu0 %2827
          %v2829 = vadd.f32 %v2659, %v2661
          %2830 = vadd.xlane.f32.xlu0 %v2829
          %v2831 = vpop.xlane.xlu0 %2830
          %v2832 = vadd.f32 %v2663, %v2665
          %2833 = vadd.xlane.f32.xlu0 %v2832
          %v2834 = vpop.xlane.xlu0 %2833
          %v2835 = vadd.f32 %v2667, %v2669
          %2836 = vadd.xlane.f32.xlu0 %v2835
          %v2837 = vpop.xlane.xlu0 %2836
          %v2838 = vadd.f32 %v2671, %v2673
          %2839 = vadd.xlane.f32.xlu0 %v2838
          %v2840 = vpop.xlane.xlu0 %2839
          %v2841 = vadd.f32 %v2675, %v2677
          %2842 = vadd.xlane.f32.xlu0 %v2841
          %v2843 = vpop.xlane.xlu0 %2842
          %v2844 = vadd.f32 %v2679, %v2681
          %2845 = vadd.xlane.f32.xlu0 %v2844
          %v2846 = vpop.xlane.xlu0 %2845
          %v2847 = vadd.f32 %v2683, %v2685
          %2848 = vadd.xlane.f32.xlu0 %v2847
          %v2849 = vpop.xlane.xlu0 %2848
          %v2850 = vadd.f32 %v2687, %v2689
          %2851 = vadd.xlane.f32.xlu0 %v2850
          %v2852 = vpop.xlane.xlu0 %2851
          %v2853 = vadd.f32 %v2691, %v2693
          %2854 = vadd.xlane.f32.xlu0 %v2853
          %v2855 = vpop.xlane.xlu0 %2854
          %v2856 = vadd.f32 %v2695, %v2697
          %2857 = vadd.xlane.f32.xlu0 %v2856
          %v2858 = vpop.xlane.xlu0 %2857
          %v2859 = vadd.f32 %v2699, %v2701
          %2860 = vadd.xlane.f32.xlu0 %v2859
          %v2861 = vpop.xlane.xlu0 %2860
          %v2862 = vadd.f32 %v2734, %v2768
          %v2863 = vadd.f32 %v2735, %v2771
          %v2864 = vadd.f32 %v2736, %v2774
          %v2865 = vadd.f32 %v2737, %v2777
          %v2866 = vadd.f32 %v2738, %v2780
          %v2867 = vadd.f32 %v2739, %v2783
          %v2868 = vadd.f32 %v2740, %v2786
          %v2869 = vadd.f32 %v2741, %v2789
          %v2870 = vadd.f32 %v2742, %v2792
          %v2871 = vadd.f32 %v2743, %v2795
          %v2872 = vadd.f32 %v2744, %v2798
          %v2873 = vadd.f32 %v2745, %v2801
          %v2874 = vadd.f32 %v2746, %v2804
          %v2875 = vadd.f32 %v2747, %v2807
          %v2876 = vadd.f32 %v2748, %v2810
          %v2877 = vadd.f32 %v2749, %v2813
          %v2878 = vadd.f32 %v2750, %v2816
          %v2879 = vadd.f32 %v2751, %v2819
          %v2880 = vadd.f32 %v2752, %v2822
          %v2881 = vadd.f32 %v2753, %v2825
          %v2882 = vadd.f32 %v2754, %v2828
          %v2883 = vadd.f32 %v2755, %v2831
          %v2884 = vadd.f32 %v2756, %v2834
          %v2885 = vadd.f32 %v2757, %v2837
          %v2886 = vadd.f32 %v2758, %v2840
          %v2887 = vadd.f32 %v2759, %v2843
          %v2888 = vadd.f32 %v2760, %v2846
          %v2889 = vadd.f32 %v2761, %v2849
          %v2890 = vadd.f32 %v2762, %v2852
          %v2891 = vadd.f32 %v2763, %v2855
          %v2892 = vadd.f32 %v2764, %v2858
          %v2893 = vadd.f32 %v2765, %v2861
          %vm2894 = vcmask 7168
          %2895 = vst.msk [vmem:[#allocation4] sm:$0xff] %vm2894, %v2862
          %2896 = vst.msk [vmem:[#allocation4 + $0x8] sm:$0xff] %vm2894, %v2863
          %2897 = vst.msk [vmem:[#allocation4 + $0x10] sm:$0xff] %vm2894, %v2864
          %2898 = vst.msk [vmem:[#allocation4 + $0x18] sm:$0xff] %vm2894, %v2865
          %2899 = vst.msk [vmem:[#allocation4 + $0x20] sm:$0xff] %vm2894, %v2866
          %2900 = vst.msk [vmem:[#allocation4 + $0x28] sm:$0xff] %vm2894, %v2867
          %2901 = vst.msk [vmem:[#allocation4 + $0x30] sm:$0xff] %vm2894, %v2868
          %2902 = vst.msk [vmem:[#allocation4 + $0x38] sm:$0xff] %vm2894, %v2869
          %2903 = vst.msk [vmem:[#allocation4 + $0x40] sm:$0xff] %vm2894, %v2870
          %2904 = vst.msk [vmem:[#allocation4 + $0x48] sm:$0xff] %vm2894, %v2871
          %2905 = vst.msk [vmem:[#allocation4 + $0x50] sm:$0xff] %vm2894, %v2872
          %2906 = vst.msk [vmem:[#allocation4 + $0x58] sm:$0xff] %vm2894, %v2873
          %2907 = vst.msk [vmem:[#allocation4 + $0x60] sm:$0xff] %vm2894, %v2874
          %2908 = vst.msk [vmem:[#allocation4 + $0x68] sm:$0xff] %vm2894, %v2875
          %2909 = vst.msk [vmem:[#allocation4 + $0x70] sm:$0xff] %vm2894, %v2876
          %2910 = vst.msk [vmem:[#allocation4 + $0x78] sm:$0xff] %vm2894, %v2877
          %2911 = vst.msk [vmem:[#allocation4 + $0x80] sm:$0xff] %vm2894, %v2878
          %2912 = vst.msk [vmem:[#allocation4 + $0x88] sm:$0xff] %vm2894, %v2879
          %2913 = vst.msk [vmem:[#allocation4 + $0x90] sm:$0xff] %vm2894, %v2880
          %2914 = vst.msk [vmem:[#allocation4 + $0x98] sm:$0xff] %vm2894, %v2881
          %2915 = vst.msk [vmem:[#allocation4 + $0xa0] sm:$0xff] %vm2894, %v2882
          %2916 = vst.msk [vmem:[#allocation4 + $0xa8] sm:$0xff] %vm2894, %v2883
          %2917 = vst.msk [vmem:[#allocation4 + $0xb0] sm:$0xff] %vm2894, %v2884
          %2918 = vst.msk [vmem:[#allocation4 + $0xb8] sm:$0xff] %vm2894, %v2885
          %2919 = vst.msk [vmem:[#allocation4 + $0xc0] sm:$0xff] %vm2894, %v2886
          %2920 = vst.msk [vmem:[#allocation4 + $0xc8] sm:$0xff] %vm2894, %v2887
          %2921 = vst.msk [vmem:[#allocation4 + $0xd0] sm:$0xff] %vm2894, %v2888
          %2922 = vst.msk [vmem:[#allocation4 + $0xd8] sm:$0xff] %vm2894, %v2889
          %2923 = vst.msk [vmem:[#allocation4 + $0xe0] sm:$0xff] %vm2894, %v2890
          %2924 = vst.msk [vmem:[#allocation4 + $0xe8] sm:$0xff] %vm2894, %v2891
          %2925 = vst.msk [vmem:[#allocation4 + $0xf0] sm:$0xff] %vm2894, %v2892
          %2926 = vst.msk [vmem:[#allocation4 + $0xf8] sm:$0xff] %vm2894, %v2893
          %v2927 = vld [vmem:[#allocation5] sm:$0xff]
          %v2928 = vld [vmem:[#allocation5 + $0x8] sm:$0xff]
          %v2929 = vld [vmem:[#allocation5 + $0x10] sm:$0xff]
          %v2930 = vld [vmem:[#allocation5 + $0x18] sm:$0xff]
          %v2931 = vld [vmem:[#allocation5 + $0x20] sm:$0xff]
          %v2932 = vld [vmem:[#allocation5 + $0x28] sm:$0xff]
          %v2933 = vld [vmem:[#allocation5 + $0x30] sm:$0xff]
          %v2934 = vld [vmem:[#allocation5 + $0x38] sm:$0xff]
          %v2935 = vld [vmem:[#allocation5 + $0x40] sm:$0xff]
          %v2936 = vld [vmem:[#allocation5 + $0x48] sm:$0xff]
          %v2937 = vld [vmem:[#allocation5 + $0x50] sm:$0xff]
          %v2938 = vld [vmem:[#allocation5 + $0x58] sm:$0xff]
          %v2939 = vld [vmem:[#allocation5 + $0x60] sm:$0xff]
          %v2940 = vld [vmem:[#allocation5 + $0x68] sm:$0xff]
          %v2941 = vld [vmem:[#allocation5 + $0x70] sm:$0xff]
          %v2942 = vld [vmem:[#allocation5 + $0x78] sm:$0xff]
          %v2943 = vld [vmem:[#allocation5 + $0x80] sm:$0xff]
          %v2944 = vld [vmem:[#allocation5 + $0x88] sm:$0xff]
          %v2945 = vld [vmem:[#allocation5 + $0x90] sm:$0xff]
          %v2946 = vld [vmem:[#allocation5 + $0x98] sm:$0xff]
          %v2947 = vld [vmem:[#allocation5 + $0xa0] sm:$0xff]
          %v2948 = vld [vmem:[#allocation5 + $0xa8] sm:$0xff]
          %v2949 = vld [vmem:[#allocation5 + $0xb0] sm:$0xff]
          %v2950 = vld [vmem:[#allocation5 + $0xb8] sm:$0xff]
          %v2951 = vld [vmem:[#allocation5 + $0xc0] sm:$0xff]
          %v2952 = vld [vmem:[#allocation5 + $0xc8] sm:$0xff]
          %v2953 = vld [vmem:[#allocation5 + $0xd0] sm:$0xff]
          %v2954 = vld [vmem:[#allocation5 + $0xd8] sm:$0xff]
          %v2955 = vld [vmem:[#allocation5 + $0xe0] sm:$0xff]
          %v2956 = vld [vmem:[#allocation5 + $0xe8] sm:$0xff]
          %v2957 = vld [vmem:[#allocation5 + $0xf0] sm:$0xff]
          %v2958 = vld [vmem:[#allocation5 + $0xf8] sm:$0xff]
          %2960 = vset.pattern.permute.xlu0 0
          %2961 = vperm.xlu0 %2960, %v2287
          %v2962 = vpop.permute.xlu0 %2961
          %2965 = vset.pattern.permute.xlu0 0
          %2966 = vperm.xlu0 %2965, %v2289
          %v2967 = vpop.permute.xlu0 %2966
          %2970 = vset.pattern.permute.xlu0 0
          %2971 = vperm.xlu0 %2970, %v2291
          %v2972 = vpop.permute.xlu0 %2971
          %2975 = vset.pattern.permute.xlu0 0
          %2976 = vperm.xlu0 %2975, %v2293
          %v2977 = vpop.permute.xlu0 %2976
          %2980 = vset.pattern.permute.xlu0 0
          %2981 = vperm.xlu0 %2980, %v2295
          %v2982 = vpop.permute.xlu0 %2981
          %2985 = vset.pattern.permute.xlu0 0
          %2986 = vperm.xlu0 %2985, %v2297
          %v2987 = vpop.permute.xlu0 %2986
          %2990 = vset.pattern.permute.xlu0 0
          %2991 = vperm.xlu0 %2990, %v2299
          %v2992 = vpop.permute.xlu0 %2991
          %2995 = vset.pattern.permute.xlu0 0
          %2996 = vperm.xlu0 %2995, %v2301
          %v2997 = vpop.permute.xlu0 %2996
          %3000 = vset.pattern.permute.xlu0 0
          %3001 = vperm.xlu0 %3000, %v2303
          %v3002 = vpop.permute.xlu0 %3001
          %3005 = vset.pattern.permute.xlu0 0
          %3006 = vperm.xlu0 %3005, %v2305
          %v3007 = vpop.permute.xlu0 %3006
          %3010 = vset.pattern.permute.xlu0 0
          %3011 = vperm.xlu0 %3010, %v2307
          %v3012 = vpop.permute.xlu0 %3011
          %3015 = vset.pattern.permute.xlu0 0
          %3016 = vperm.xlu0 %3015, %v2309
          %v3017 = vpop.permute.xlu0 %3016
          %3020 = vset.pattern.permute.xlu0 0
          %3021 = vperm.xlu0 %3020, %v2311
          %v3022 = vpop.permute.xlu0 %3021
          %3025 = vset.pattern.permute.xlu0 0
          %3026 = vperm.xlu0 %3025, %v2313
          %v3027 = vpop.permute.xlu0 %3026
          %3030 = vset.pattern.permute.xlu0 0
          %3031 = vperm.xlu0 %3030, %v2315
          %v3032 = vpop.permute.xlu0 %3031
          %3035 = vset.pattern.permute.xlu0 0
          %3036 = vperm.xlu0 %3035, %v2317
          %v3037 = vpop.permute.xlu0 %3036
          %3040 = vset.pattern.permute.xlu0 0
          %3041 = vperm.xlu0 %3040, %v2319
          %v3042 = vpop.permute.xlu0 %3041
          %3045 = vset.pattern.permute.xlu0 0
          %3046 = vperm.xlu0 %3045, %v2321
          %v3047 = vpop.permute.xlu0 %3046
          %3050 = vset.pattern.permute.xlu0 0
          %3051 = vperm.xlu0 %3050, %v2323
          %v3052 = vpop.permute.xlu0 %3051
          %3055 = vset.pattern.permute.xlu0 0
          %3056 = vperm.xlu0 %3055, %v2325
          %v3057 = vpop.permute.xlu0 %3056
          %3060 = vset.pattern.permute.xlu0 0
          %3061 = vperm.xlu0 %3060, %v2327
          %v3062 = vpop.permute.xlu0 %3061
          %3065 = vset.pattern.permute.xlu0 0
          %3066 = vperm.xlu0 %3065, %v2329
          %v3067 = vpop.permute.xlu0 %3066
          %3070 = vset.pattern.permute.xlu0 0
          %3071 = vperm.xlu0 %3070, %v2331
          %v3072 = vpop.permute.xlu0 %3071
          %3075 = vset.pattern.permute.xlu0 0
          %3076 = vperm.xlu0 %3075, %v2333
          %v3077 = vpop.permute.xlu0 %3076
          %3080 = vset.pattern.permute.xlu0 0
          %3081 = vperm.xlu0 %3080, %v2335
          %v3082 = vpop.permute.xlu0 %3081
          %3085 = vset.pattern.permute.xlu0 0
          %3086 = vperm.xlu0 %3085, %v2337
          %v3087 = vpop.permute.xlu0 %3086
          %3090 = vset.pattern.permute.xlu0 0
          %3091 = vperm.xlu0 %3090, %v2339
          %v3092 = vpop.permute.xlu0 %3091
          %3095 = vset.pattern.permute.xlu0 0
          %3096 = vperm.xlu0 %3095, %v2341
          %v3097 = vpop.permute.xlu0 %3096
          %3100 = vset.pattern.permute.xlu0 0
          %3101 = vperm.xlu0 %3100, %v2343
          %v3102 = vpop.permute.xlu0 %3101
          %3105 = vset.pattern.permute.xlu0 0
          %3106 = vperm.xlu0 %3105, %v2345
          %v3107 = vpop.permute.xlu0 %3106
          %3110 = vset.pattern.permute.xlu0 0
          %3111 = vperm.xlu0 %3110, %v2347
          %v3112 = vpop.permute.xlu0 %3111
          %3115 = vset.pattern.permute.xlu0 0
          %3116 = vperm.xlu0 %3115, %v2349
          %v3117 = vpop.permute.xlu0 %3116
          %v3119 = vmul.f32 %v2962, %v2927
          %v3120 = vmul.f32 %v2967, %v2928
          %v3121 = vmul.f32 %v2972, %v2929
          %v3122 = vmul.f32 %v2977, %v2930
          %v3123 = vmul.f32 %v2982, %v2931
          %v3124 = vmul.f32 %v2987, %v2932
          %v3125 = vmul.f32 %v2992, %v2933
          %v3126 = vmul.f32 %v2997, %v2934
          %v3127 = vmul.f32 %v3002, %v2935
          %v3128 = vmul.f32 %v3007, %v2936
          %v3129 = vmul.f32 %v3012, %v2937
          %v3130 = vmul.f32 %v3017, %v2938
          %v3131 = vmul.f32 %v3022, %v2939
          %v3132 = vmul.f32 %v3027, %v2940
          %v3133 = vmul.f32 %v3032, %v2941
          %v3134 = vmul.f32 %v3037, %v2942
          %v3135 = vmul.f32 %v3042, %v2943
          %v3136 = vmul.f32 %v3047, %v2944
          %v3137 = vmul.f32 %v3052, %v2945
          %v3138 = vmul.f32 %v3057, %v2946
          %v3139 = vmul.f32 %v3062, %v2947
          %v3140 = vmul.f32 %v3067, %v2948
          %v3141 = vmul.f32 %v3072, %v2949
          %v3142 = vmul.f32 %v3077, %v2950
          %v3143 = vmul.f32 %v3082, %v2951
          %v3144 = vmul.f32 %v3087, %v2952
          %v3145 = vmul.f32 %v3092, %v2953
          %v3146 = vmul.f32 %v3097, %v2954
          %v3147 = vmul.f32 %v3102, %v2955
          %v3148 = vmul.f32 %v3107, %v2956
          %v3149 = vmul.f32 %v3112, %v2957
          %v3150 = vmul.f32 %v3117, %v2958
          %3151 = vrot.lane.b32.xlu0 %v1348, 64
          %v3152 = vpop.permute.xlu0 %3151
          %3153 = vrot.lane.b32.xlu0 %v1351, 64
          %v3154 = vpop.permute.xlu0 %3153
          %3155 = vrot.lane.b32.xlu0 %v1354, 64
          %v3156 = vpop.permute.xlu0 %3155
          %3157 = vrot.lane.b32.xlu0 %v1357, 64
          %v3158 = vpop.permute.xlu0 %3157
          %3159 = vrot.lane.b32.xlu0 %v1360, 64
          %v3160 = vpop.permute.xlu0 %3159
          %3161 = vrot.lane.b32.xlu0 %v1363, 64
          %v3162 = vpop.permute.xlu0 %3161
          %3163 = vrot.lane.b32.xlu0 %v1366, 64
          %v3164 = vpop.permute.xlu0 %3163
          %3165 = vrot.lane.b32.xlu0 %v1369, 64
          %v3166 = vpop.permute.xlu0 %3165
          %3167 = vrot.lane.b32.xlu0 %v1372, 64
          %v3168 = vpop.permute.xlu0 %3167
          %3169 = vrot.lane.b32.xlu0 %v1375, 64
          %v3170 = vpop.permute.xlu0 %3169
          %3171 = vrot.lane.b32.xlu0 %v1378, 64
          %v3172 = vpop.permute.xlu0 %3171
          %3173 = vrot.lane.b32.xlu0 %v1381, 64
          %v3174 = vpop.permute.xlu0 %3173
          %3175 = vrot.lane.b32.xlu0 %v1384, 64
          %v3176 = vpop.permute.xlu0 %3175
          %3177 = vrot.lane.b32.xlu0 %v1387, 64
          %v3178 = vpop.permute.xlu0 %3177
          %3179 = vrot.lane.b32.xlu0 %v1390, 64
          %v3180 = vpop.permute.xlu0 %3179
          %3181 = vrot.lane.b32.xlu0 %v1393, 64
          %v3182 = vpop.permute.xlu0 %3181
          %3183 = vrot.lane.b32.xlu0 %v1396, 64
          %v3184 = vpop.permute.xlu0 %3183
          %3185 = vrot.lane.b32.xlu0 %v1399, 64
          %v3186 = vpop.permute.xlu0 %3185
          %3187 = vrot.lane.b32.xlu0 %v1402, 64
          %v3188 = vpop.permute.xlu0 %3187
          %3189 = vrot.lane.b32.xlu0 %v1405, 64
          %v3190 = vpop.permute.xlu0 %3189
          %3191 = vrot.lane.b32.xlu0 %v1408, 64
          %v3192 = vpop.permute.xlu0 %3191
          %3193 = vrot.lane.b32.xlu0 %v1411, 64
          %v3194 = vpop.permute.xlu0 %3193
          %3195 = vrot.lane.b32.xlu0 %v1414, 64
          %v3196 = vpop.permute.xlu0 %3195
          %3197 = vrot.lane.b32.xlu0 %v1417, 64
          %v3198 = vpop.permute.xlu0 %3197
          %3199 = vrot.lane.b32.xlu0 %v1420, 64
          %v3200 = vpop.permute.xlu0 %3199
          %3201 = vrot.lane.b32.xlu0 %v1423, 64
          %v3202 = vpop.permute.xlu0 %3201
          %3203 = vrot.lane.b32.xlu0 %v1426, 64
          %v3204 = vpop.permute.xlu0 %3203
          %3205 = vrot.lane.b32.xlu0 %v1429, 64
          %v3206 = vpop.permute.xlu0 %3205
          %3207 = vrot.lane.b32.xlu0 %v1432, 64
          %v3208 = vpop.permute.xlu0 %3207
          %3209 = vrot.lane.b32.xlu0 %v1435, 64
          %v3210 = vpop.permute.xlu0 %3209
          %3211 = vrot.lane.b32.xlu0 %v1438, 64
          %v3212 = vpop.permute.xlu0 %3211
          %3213 = vrot.lane.b32.xlu0 %v1441, 64
          %v3214 = vpop.permute.xlu0 %3213
          %3247 = vmatpush.msra.mxu0 %v3182
          %3248 = vmatpush.msra.mxu0 %v3180
          %3249 = vmatpush.msra.mxu0 %v3178
          %3250 = vmatpush.msra.mxu0 %v3176
          %3251 = vmatpush.msra.mxu0 %v3174
          %3252 = vmatpush.msra.mxu0 %v3172
          %3253 = vmatpush.msra.mxu0 %v3170
          %3254 = vmatpush.msra.mxu0 %v3168
          %3255 = vmatpush.msra.mxu0 %v3166
          %3256 = vmatpush.msra.mxu0 %v3164
          %3257 = vmatpush.msra.mxu0 %v3162
          %3258 = vmatpush.msra.mxu0 %v3160
          %3259 = vmatpush.msra.mxu0 %v3158
          %3260 = vmatpush.msra.mxu0 %v3156
          %3261 = vmatpush.msra.mxu0 %v3154
          %3262 = vmatpush.msra.mxu0 %v3152
          %3263 = vmatmul.f32.gmra.mxu0 %v2575
          %v3264 = vpop.f32.mrf.mxu0
          %v3265 = vadd.f32 0.0, %v3264
          %3266 = vmatmul.f32.gmra.mxu0 %v2579
          %v3267 = vpop.f32.mrf.mxu0
          %v3268 = vadd.f32 0.0, %v3267
          %3269 = vmatmul.f32.gmra.mxu0 %v2583
          %v3270 = vpop.f32.mrf.mxu0
          %v3271 = vadd.f32 0.0, %v3270
          %3272 = vmatmul.f32.gmra.mxu0 %v2587
          %v3273 = vpop.f32.mrf.mxu0
          %v3274 = vadd.f32 0.0, %v3273
          %3275 = vmatmul.f32.gmra.mxu0 %v2591
          %v3276 = vpop.f32.mrf.mxu0
          %v3277 = vadd.f32 0.0, %v3276
          %3278 = vmatmul.f32.gmra.mxu0 %v2595
          %v3279 = vpop.f32.mrf.mxu0
          %v3280 = vadd.f32 0.0, %v3279
          %3281 = vmatmul.f32.gmra.mxu0 %v2599
          %v3282 = vpop.f32.mrf.mxu0
          %v3283 = vadd.f32 0.0, %v3282
          %3284 = vmatmul.f32.gmra.mxu0 %v2603
          %v3285 = vpop.f32.mrf.mxu0
          %v3286 = vadd.f32 0.0, %v3285
          %3287 = vmatmul.f32.gmra.mxu0 %v2607
          %v3288 = vpop.f32.mrf.mxu0
          %v3289 = vadd.f32 0.0, %v3288
          %3290 = vmatmul.f32.gmra.mxu0 %v2611
          %v3291 = vpop.f32.mrf.mxu0
          %v3292 = vadd.f32 0.0, %v3291
          %3293 = vmatmul.f32.gmra.mxu0 %v2615
          %v3294 = vpop.f32.mrf.mxu0
          %v3295 = vadd.f32 0.0, %v3294
          %3296 = vmatmul.f32.gmra.mxu0 %v2619
          %v3297 = vpop.f32.mrf.mxu0
          %v3298 = vadd.f32 0.0, %v3297
          %3299 = vmatmul.f32.gmra.mxu0 %v2623
          %v3300 = vpop.f32.mrf.mxu0
          %v3301 = vadd.f32 0.0, %v3300
          %3302 = vmatmul.f32.gmra.mxu0 %v2627
          %v3303 = vpop.f32.mrf.mxu0
          %v3304 = vadd.f32 0.0, %v3303
          %3305 = vmatmul.f32.gmra.mxu0 %v2631
          %v3306 = vpop.f32.mrf.mxu0
          %v3307 = vadd.f32 0.0, %v3306
          %3308 = vmatmul.f32.gmra.mxu0 %v2635
          %v3309 = vpop.f32.mrf.mxu0
          %v3310 = vadd.f32 0.0, %v3309
          %3311 = vmatmul.f32.gmra.mxu0 %v2639
          %v3312 = vpop.f32.mrf.mxu0
          %v3313 = vadd.f32 0.0, %v3312
          %3314 = vmatmul.f32.gmra.mxu0 %v2643
          %v3315 = vpop.f32.mrf.mxu0
          %v3316 = vadd.f32 0.0, %v3315
          %3317 = vmatmul.f32.gmra.mxu0 %v2647
          %v3318 = vpop.f32.mrf.mxu0
          %v3319 = vadd.f32 0.0, %v3318
          %3320 = vmatmul.f32.gmra.mxu0 %v2651
          %v3321 = vpop.f32.mrf.mxu0
          %v3322 = vadd.f32 0.0, %v3321
          %3323 = vmatmul.f32.gmra.mxu0 %v2655
          %v3324 = vpop.f32.mrf.mxu0
          %v3325 = vadd.f32 0.0, %v3324
          %3326 = vmatmul.f32.gmra.mxu0 %v2659
          %v3327 = vpop.f32.mrf.mxu0
          %v3328 = vadd.f32 0.0, %v3327
          %3329 = vmatmul.f32.gmra.mxu0 %v2663
          %v3330 = vpop.f32.mrf.mxu0
          %v3331 = vadd.f32 0.0, %v3330
          %3332 = vmatmul.f32.gmra.mxu0 %v2667
          %v3333 = vpop.f32.mrf.mxu0
          %v3334 = vadd.f32 0.0, %v3333
          %3335 = vmatmul.f32.gmra.mxu0 %v2671
          %v3336 = vpop.f32.mrf.mxu0
          %v3337 = vadd.f32 0.0, %v3336
          %3338 = vmatmul.f32.gmra.mxu0 %v2675
          %v3339 = vpop.f32.mrf.mxu0
          %v3340 = vadd.f32 0.0, %v3339
          %3341 = vmatmul.f32.gmra.mxu0 %v2679
          %v3342 = vpop.f32.mrf.mxu0
          %v3343 = vadd.f32 0.0, %v3342
          %3344 = vmatmul.f32.gmra.mxu0 %v2683
          %v3345 = vpop.f32.mrf.mxu0
          %v3346 = vadd.f32 0.0, %v3345
          %3347 = vmatmul.f32.gmra.mxu0 %v2687
          %v3348 = vpop.f32.mrf.mxu0
          %v3349 = vadd.f32 0.0, %v3348
          %3350 = vmatmul.f32.gmra.mxu0 %v2691
          %v3351 = vpop.f32.mrf.mxu0
          %v3352 = vadd.f32 0.0, %v3351
          %3353 = vmatmul.f32.gmra.mxu0 %v2695
          %v3354 = vpop.f32.mrf.mxu0
          %v3355 = vadd.f32 0.0, %v3354
          %3356 = vmatmul.f32.gmra.mxu0 %v2699
          %v3357 = vpop.f32.mrf.mxu0
          %v3358 = vadd.f32 0.0, %v3357
          %3359 = vdwg.mxu0
          %3360 = vmatpush.msra.mxu0 %v3214
          %3361 = vmatpush.msra.mxu0 %v3212
          %3362 = vmatpush.msra.mxu0 %v3210
          %3363 = vmatpush.msra.mxu0 %v3208
          %3364 = vmatpush.msra.mxu0 %v3206
          %3365 = vmatpush.msra.mxu0 %v3204
          %3366 = vmatpush.msra.mxu0 %v3202
          %3367 = vmatpush.msra.mxu0 %v3200
          %3368 = vmatpush.msra.mxu0 %v3198
          %3369 = vmatpush.msra.mxu0 %v3196
          %3370 = vmatpush.msra.mxu0 %v3194
          %3371 = vmatpush.msra.mxu0 %v3192
          %3372 = vmatpush.msra.mxu0 %v3190
          %3373 = vmatpush.msra.mxu0 %v3188
          %3374 = vmatpush.msra.mxu0 %v3186
          %3375 = vmatpush.msra.mxu0 %v3184
          %3376 = vmatmul.f32.gmra.mxu0 %v2577
          %v3377 = vpop.f32.mrf.mxu0
          %v3378 = vadd.f32 %v3265, %v3377
          %3379 = vmatmul.f32.gmra.mxu0 %v2581
          %v3380 = vpop.f32.mrf.mxu0
          %v3381 = vadd.f32 %v3268, %v3380
          %3382 = vmatmul.f32.gmra.mxu0 %v2585
          %v3383 = vpop.f32.mrf.mxu0
          %v3384 = vadd.f32 %v3271, %v3383
          %3385 = vmatmul.f32.gmra.mxu0 %v2589
          %v3386 = vpop.f32.mrf.mxu0
          %v3387 = vadd.f32 %v3274, %v3386
          %3388 = vmatmul.f32.gmra.mxu0 %v2593
          %v3389 = vpop.f32.mrf.mxu0
          %v3390 = vadd.f32 %v3277, %v3389
          %3391 = vmatmul.f32.gmra.mxu0 %v2597
          %v3392 = vpop.f32.mrf.mxu0
          %v3393 = vadd.f32 %v3280, %v3392
          %3394 = vmatmul.f32.gmra.mxu0 %v2601
          %v3395 = vpop.f32.mrf.mxu0
          %v3396 = vadd.f32 %v3283, %v3395
          %3397 = vmatmul.f32.gmra.mxu0 %v2605
          %v3398 = vpop.f32.mrf.mxu0
          %v3399 = vadd.f32 %v3286, %v3398
          %3400 = vmatmul.f32.gmra.mxu0 %v2609
          %v3401 = vpop.f32.mrf.mxu0
          %v3402 = vadd.f32 %v3289, %v3401
          %3403 = vmatmul.f32.gmra.mxu0 %v2613
          %v3404 = vpop.f32.mrf.mxu0
          %v3405 = vadd.f32 %v3292, %v3404
          %3406 = vmatmul.f32.gmra.mxu0 %v2617
          %v3407 = vpop.f32.mrf.mxu0
          %v3408 = vadd.f32 %v3295, %v3407
          %3409 = vmatmul.f32.gmra.mxu0 %v2621
          %v3410 = vpop.f32.mrf.mxu0
          %v3411 = vadd.f32 %v3298, %v3410
          %3412 = vmatmul.f32.gmra.mxu0 %v2625
          %v3413 = vpop.f32.mrf.mxu0
          %v3414 = vadd.f32 %v3301, %v3413
          %3415 = vmatmul.f32.gmra.mxu0 %v2629
          %v3416 = vpop.f32.mrf.mxu0
          %v3417 = vadd.f32 %v3304, %v3416
          %3418 = vmatmul.f32.gmra.mxu0 %v2633
          %v3419 = vpop.f32.mrf.mxu0
          %v3420 = vadd.f32 %v3307, %v3419
          %3421 = vmatmul.f32.gmra.mxu0 %v2637
          %v3422 = vpop.f32.mrf.mxu0
          %v3423 = vadd.f32 %v3310, %v3422
          %3424 = vmatmul.f32.gmra.mxu0 %v2641
          %v3425 = vpop.f32.mrf.mxu0
          %v3426 = vadd.f32 %v3313, %v3425
          %3427 = vmatmul.f32.gmra.mxu0 %v2645
          %v3428 = vpop.f32.mrf.mxu0
          %v3429 = vadd.f32 %v3316, %v3428
          %3430 = vmatmul.f32.gmra.mxu0 %v2649
          %v3431 = vpop.f32.mrf.mxu0
          %v3432 = vadd.f32 %v3319, %v3431
          %3433 = vmatmul.f32.gmra.mxu0 %v2653
          %v3434 = vpop.f32.mrf.mxu0
          %v3435 = vadd.f32 %v3322, %v3434
          %3436 = vmatmul.f32.gmra.mxu0 %v2657
          %v3437 = vpop.f32.mrf.mxu0
          %v3438 = vadd.f32 %v3325, %v3437
          %3439 = vmatmul.f32.gmra.mxu0 %v2661
          %v3440 = vpop.f32.mrf.mxu0
          %v3441 = vadd.f32 %v3328, %v3440
          %3442 = vmatmul.f32.gmra.mxu0 %v2665
          %v3443 = vpop.f32.mrf.mxu0
          %v3444 = vadd.f32 %v3331, %v3443
          %3445 = vmatmul.f32.gmra.mxu0 %v2669
          %v3446 = vpop.f32.mrf.mxu0
          %v3447 = vadd.f32 %v3334, %v3446
          %3448 = vmatmul.f32.gmra.mxu0 %v2673
          %v3449 = vpop.f32.mrf.mxu0
          %v3450 = vadd.f32 %v3337, %v3449
          %3451 = vmatmul.f32.gmra.mxu0 %v2677
          %v3452 = vpop.f32.mrf.mxu0
          %v3453 = vadd.f32 %v3340, %v3452
          %3454 = vmatmul.f32.gmra.mxu0 %v2681
          %v3455 = vpop.f32.mrf.mxu0
          %v3456 = vadd.f32 %v3343, %v3455
          %3457 = vmatmul.f32.gmra.mxu0 %v2685
          %v3458 = vpop.f32.mrf.mxu0
          %v3459 = vadd.f32 %v3346, %v3458
          %3460 = vmatmul.f32.gmra.mxu0 %v2689
          %v3461 = vpop.f32.mrf.mxu0
          %v3462 = vadd.f32 %v3349, %v3461
          %3463 = vmatmul.f32.gmra.mxu0 %v2693
          %v3464 = vpop.f32.mrf.mxu0
          %v3465 = vadd.f32 %v3352, %v3464
          %3466 = vmatmul.f32.gmra.mxu0 %v2697
          %v3467 = vpop.f32.mrf.mxu0
          %v3468 = vadd.f32 %v3355, %v3467
          %3469 = vmatmul.f32.gmra.mxu0 %v2701
          %v3470 = vpop.f32.mrf.mxu0
          %v3471 = vadd.f32 %v3358, %v3470
          %3472 = vdwg.mxu0
          %v3473 = vadd.f32 %v3119, %v3378
          %v3474 = vadd.f32 %v3120, %v3381
          %v3475 = vadd.f32 %v3121, %v3384
          %v3476 = vadd.f32 %v3122, %v3387
          %v3477 = vadd.f32 %v3123, %v3390
          %v3478 = vadd.f32 %v3124, %v3393
          %v3479 = vadd.f32 %v3125, %v3396
          %v3480 = vadd.f32 %v3126, %v3399
          %v3481 = vadd.f32 %v3127, %v3402
          %v3482 = vadd.f32 %v3128, %v3405
          %v3483 = vadd.f32 %v3129, %v3408
          %v3484 = vadd.f32 %v3130, %v3411
          %v3485 = vadd.f32 %v3131, %v3414
          %v3486 = vadd.f32 %v3132, %v3417
          %v3487 = vadd.f32 %v3133, %v3420
          %v3488 = vadd.f32 %v3134, %v3423
          %v3489 = vadd.f32 %v3135, %v3426
          %v3490 = vadd.f32 %v3136, %v3429
          %v3491 = vadd.f32 %v3137, %v3432
          %v3492 = vadd.f32 %v3138, %v3435
          %v3493 = vadd.f32 %v3139, %v3438
          %v3494 = vadd.f32 %v3140, %v3441
          %v3495 = vadd.f32 %v3141, %v3444
          %v3496 = vadd.f32 %v3142, %v3447
          %v3497 = vadd.f32 %v3143, %v3450
          %v3498 = vadd.f32 %v3144, %v3453
          %v3499 = vadd.f32 %v3145, %v3456
          %v3500 = vadd.f32 %v3146, %v3459
          %v3501 = vadd.f32 %v3147, %v3462
          %v3502 = vadd.f32 %v3148, %v3465
          %v3503 = vadd.f32 %v3149, %v3468
          %v3504 = vadd.f32 %v3150, %v3471
          %3505 = vst.msk [vmem:[#allocation5] sm:$0xff] %vm1475, %v3473
          %3506 = vst.msk [vmem:[#allocation5 + $0x8] sm:$0xff] %vm1475, %v3474
          %3507 = vst.msk [vmem:[#allocation5 + $0x10] sm:$0xff] %vm1475, %v3475
          %3508 = vst.msk [vmem:[#allocation5 + $0x18] sm:$0xff] %vm1475, %v3476
          %3509 = vst.msk [vmem:[#allocation5 + $0x20] sm:$0xff] %vm1475, %v3477
          %3510 = vst.msk [vmem:[#allocation5 + $0x28] sm:$0xff] %vm1475, %v3478
          %3511 = vst.msk [vmem:[#allocation5 + $0x30] sm:$0xff] %vm1475, %v3479
          %3512 = vst.msk [vmem:[#allocation5 + $0x38] sm:$0xff] %vm1475, %v3480
          %3513 = vst.msk [vmem:[#allocation5 + $0x40] sm:$0xff] %vm1475, %v3481
          %3514 = vst.msk [vmem:[#allocation5 + $0x48] sm:$0xff] %vm1475, %v3482
          %3515 = vst.msk [vmem:[#allocation5 + $0x50] sm:$0xff] %vm1475, %v3483
          %3516 = vst.msk [vmem:[#allocation5 + $0x58] sm:$0xff] %vm1475, %v3484
          %3517 = vst.msk [vmem:[#allocation5 + $0x60] sm:$0xff] %vm1475, %v3485
          %3518 = vst.msk [vmem:[#allocation5 + $0x68] sm:$0xff] %vm1475, %v3486
          %3519 = vst.msk [vmem:[#allocation5 + $0x70] sm:$0xff] %vm1475, %v3487
          %3520 = vst.msk [vmem:[#allocation5 + $0x78] sm:$0xff] %vm1475, %v3488
          %3521 = vst.msk [vmem:[#allocation5 + $0x80] sm:$0xff] %vm1475, %v3489
          %3522 = vst.msk [vmem:[#allocation5 + $0x88] sm:$0xff] %vm1475, %v3490
          %3523 = vst.msk [vmem:[#allocation5 + $0x90] sm:$0xff] %vm1475, %v3491
          %3524 = vst.msk [vmem:[#allocation5 + $0x98] sm:$0xff] %vm1475, %v3492
          %3525 = vst.msk [vmem:[#allocation5 + $0xa0] sm:$0xff] %vm1475, %v3493
          %3526 = vst.msk [vmem:[#allocation5 + $0xa8] sm:$0xff] %vm1475, %v3494
          %3527 = vst.msk [vmem:[#allocation5 + $0xb0] sm:$0xff] %vm1475, %v3495
          %3528 = vst.msk [vmem:[#allocation5 + $0xb8] sm:$0xff] %vm1475, %v3496
          %3529 = vst.msk [vmem:[#allocation5 + $0xc0] sm:$0xff] %vm1475, %v3497
          %3530 = vst.msk [vmem:[#allocation5 + $0xc8] sm:$0xff] %vm1475, %v3498
          %3531 = vst.msk [vmem:[#allocation5 + $0xd0] sm:$0xff] %vm1475, %v3499
          %3532 = vst.msk [vmem:[#allocation5 + $0xd8] sm:$0xff] %vm1475, %v3500
          %3533 = vst.msk [vmem:[#allocation5 + $0xe0] sm:$0xff] %vm1475, %v3501
          %3534 = vst.msk [vmem:[#allocation5 + $0xe8] sm:$0xff] %vm1475, %v3502
          %3535 = vst.msk [vmem:[#allocation5 + $0xf0] sm:$0xff] %vm1475, %v3503
          %3536 = vst.msk [vmem:[#allocation5 + $0xf8] sm:$0xff] %vm1475, %v3504
          %3537 = vst.msk [vmem:[#allocation3] sm:$0xff] %vm2894, %v2222
          %3538 = vst.msk [vmem:[#allocation3 + $0x8] sm:$0xff] %vm2894, %v2223
          %3539 = vst.msk [vmem:[#allocation3 + $0x10] sm:$0xff] %vm2894, %v2224
          %3540 = vst.msk [vmem:[#allocation3 + $0x18] sm:$0xff] %vm2894, %v2225
          %3541 = vst.msk [vmem:[#allocation3 + $0x20] sm:$0xff] %vm2894, %v2226
          %3542 = vst.msk [vmem:[#allocation3 + $0x28] sm:$0xff] %vm2894, %v2227
          %3543 = vst.msk [vmem:[#allocation3 + $0x30] sm:$0xff] %vm2894, %v2228
          %3544 = vst.msk [vmem:[#allocation3 + $0x38] sm:$0xff] %vm2894, %v2229
          %3545 = vst.msk [vmem:[#allocation3 + $0x40] sm:$0xff] %vm2894, %v2230
          %3546 = vst.msk [vmem:[#allocation3 + $0x48] sm:$0xff] %vm2894, %v2231
          %3547 = vst.msk [vmem:[#allocation3 + $0x50] sm:$0xff] %vm2894, %v2232
          %3548 = vst.msk [vmem:[#allocation3 + $0x58] sm:$0xff] %vm2894, %v2233
          %3549 = vst.msk [vmem:[#allocation3 + $0x60] sm:$0xff] %vm2894, %v2234
          %3550 = vst.msk [vmem:[#allocation3 + $0x68] sm:$0xff] %vm2894, %v2235
          %3551 = vst.msk [vmem:[#allocation3 + $0x70] sm:$0xff] %vm2894, %v2236
          %3552 = vst.msk [vmem:[#allocation3 + $0x78] sm:$0xff] %vm2894, %v2237
          %3553 = vst.msk [vmem:[#allocation3 + $0x80] sm:$0xff] %vm2894, %v2238
          %3554 = vst.msk [vmem:[#allocation3 + $0x88] sm:$0xff] %vm2894, %v2239
          %3555 = vst.msk [vmem:[#allocation3 + $0x90] sm:$0xff] %vm2894, %v2240
          %3556 = vst.msk [vmem:[#allocation3 + $0x98] sm:$0xff] %vm2894, %v2241
          %3557 = vst.msk [vmem:[#allocation3 + $0xa0] sm:$0xff] %vm2894, %v2242
          %3558 = vst.msk [vmem:[#allocation3 + $0xa8] sm:$0xff] %vm2894, %v2243
          %3559 = vst.msk [vmem:[#allocation3 + $0xb0] sm:$0xff] %vm2894, %v2244
          %3560 = vst.msk [vmem:[#allocation3 + $0xb8] sm:$0xff] %vm2894, %v2245
          %3561 = vst.msk [vmem:[#allocation3 + $0xc0] sm:$0xff] %vm2894, %v2246
          %3562 = vst.msk [vmem:[#allocation3 + $0xc8] sm:$0xff] %vm2894, %v2247
          %3563 = vst.msk [vmem:[#allocation3 + $0xd0] sm:$0xff] %vm2894, %v2248
          %3564 = vst.msk [vmem:[#allocation3 + $0xd8] sm:$0xff] %vm2894, %v2249
          %3565 = vst.msk [vmem:[#allocation3 + $0xe0] sm:$0xff] %vm2894, %v2250
          %3566 = vst.msk [vmem:[#allocation3 + $0xe8] sm:$0xff] %vm2894, %v2251
          %3567 = vst.msk [vmem:[#allocation3 + $0xf0] sm:$0xff] %vm2894, %v2252
          %3568 = vst.msk [vmem:[#allocation3 + $0xf8] sm:$0xff] %vm2894, %v2253
        $region52: #{tpu_custom_call.1} parent=35 // pred_fallthru
          _
        // Predicated region
        $region53: #{tpu_custom_call.1} parent=35 // pred_check
          %p3569 = pneg %p306
        $region54: #{tpu_custom_call.1} parent=35 // pred_check_branch
          %3571 = sbr.rel (%p3569) target = $region56
        $region55: #{tpu_custom_call.1} parent=35 // pred_region
          %v3572 = vld [vmem:[#allocation5] sm:$0xff]
          %v3573 = vld [vmem:[#allocation5 + $0x8] sm:$0xff]
          %v3574 = vld [vmem:[#allocation5 + $0x10] sm:$0xff]
          %v3575 = vld [vmem:[#allocation5 + $0x18] sm:$0xff]
          %v3576 = vld [vmem:[#allocation5 + $0x20] sm:$0xff]
          %v3577 = vld [vmem:[#allocation5 + $0x28] sm:$0xff]
          %v3578 = vld [vmem:[#allocation5 + $0x30] sm:$0xff]
          %v3579 = vld [vmem:[#allocation5 + $0x38] sm:$0xff]
          %v3580 = vld [vmem:[#allocation5 + $0x40] sm:$0xff]
          %v3581 = vld [vmem:[#allocation5 + $0x48] sm:$0xff]
          %v3582 = vld [vmem:[#allocation5 + $0x50] sm:$0xff]
          %v3583 = vld [vmem:[#allocation5 + $0x58] sm:$0xff]
          %v3584 = vld [vmem:[#allocation5 + $0x60] sm:$0xff]
          %v3585 = vld [vmem:[#allocation5 + $0x68] sm:$0xff]
          %v3586 = vld [vmem:[#allocation5 + $0x70] sm:$0xff]
          %v3587 = vld [vmem:[#allocation5 + $0x78] sm:$0xff]
          %v3588 = vld [vmem:[#allocation5 + $0x80] sm:$0xff]
          %v3589 = vld [vmem:[#allocation5 + $0x88] sm:$0xff]
          %v3590 = vld [vmem:[#allocation5 + $0x90] sm:$0xff]
          %v3591 = vld [vmem:[#allocation5 + $0x98] sm:$0xff]
          %v3592 = vld [vmem:[#allocation5 + $0xa0] sm:$0xff]
          %v3593 = vld [vmem:[#allocation5 + $0xa8] sm:$0xff]
          %v3594 = vld [vmem:[#allocation5 + $0xb0] sm:$0xff]
          %v3595 = vld [vmem:[#allocation5 + $0xb8] sm:$0xff]
          %v3596 = vld [vmem:[#allocation5 + $0xc0] sm:$0xff]
          %v3597 = vld [vmem:[#allocation5 + $0xc8] sm:$0xff]
          %v3598 = vld [vmem:[#allocation5 + $0xd0] sm:$0xff]
          %v3599 = vld [vmem:[#allocation5 + $0xd8] sm:$0xff]
          %v3600 = vld [vmem:[#allocation5 + $0xe0] sm:$0xff]
          %v3601 = vld [vmem:[#allocation5 + $0xe8] sm:$0xff]
          %v3602 = vld [vmem:[#allocation5 + $0xf0] sm:$0xff]
          %v3603 = vld [vmem:[#allocation5 + $0xf8] sm:$0xff]
          %v3604 = vld [vmem:[#allocation4] sm:$0xff]
          %v3605 = vld [vmem:[#allocation4 + $0x8] sm:$0xff]
          %v3606 = vld [vmem:[#allocation4 + $0x10] sm:$0xff]
          %v3607 = vld [vmem:[#allocation4 + $0x18] sm:$0xff]
          %v3608 = vld [vmem:[#allocation4 + $0x20] sm:$0xff]
          %v3609 = vld [vmem:[#allocation4 + $0x28] sm:$0xff]
          %v3610 = vld [vmem:[#allocation4 + $0x30] sm:$0xff]
          %v3611 = vld [vmem:[#allocation4 + $0x38] sm:$0xff]
          %v3612 = vld [vmem:[#allocation4 + $0x40] sm:$0xff]
          %v3613 = vld [vmem:[#allocation4 + $0x48] sm:$0xff]
          %v3614 = vld [vmem:[#allocation4 + $0x50] sm:$0xff]
          %v3615 = vld [vmem:[#allocation4 + $0x58] sm:$0xff]
          %v3616 = vld [vmem:[#allocation4 + $0x60] sm:$0xff]
          %v3617 = vld [vmem:[#allocation4 + $0x68] sm:$0xff]
          %v3618 = vld [vmem:[#allocation4 + $0x70] sm:$0xff]
          %v3619 = vld [vmem:[#allocation4 + $0x78] sm:$0xff]
          %v3620 = vld [vmem:[#allocation4 + $0x80] sm:$0xff]
          %v3621 = vld [vmem:[#allocation4 + $0x88] sm:$0xff]
          %v3622 = vld [vmem:[#allocation4 + $0x90] sm:$0xff]
          %v3623 = vld [vmem:[#allocation4 + $0x98] sm:$0xff]
          %v3624 = vld [vmem:[#allocation4 + $0xa0] sm:$0xff]
          %v3625 = vld [vmem:[#allocation4 + $0xa8] sm:$0xff]
          %v3626 = vld [vmem:[#allocation4 + $0xb0] sm:$0xff]
          %v3627 = vld [vmem:[#allocation4 + $0xb8] sm:$0xff]
          %v3628 = vld [vmem:[#allocation4 + $0xc0] sm:$0xff]
          %v3629 = vld [vmem:[#allocation4 + $0xc8] sm:$0xff]
          %v3630 = vld [vmem:[#allocation4 + $0xd0] sm:$0xff]
          %v3631 = vld [vmem:[#allocation4 + $0xd8] sm:$0xff]
          %v3632 = vld [vmem:[#allocation4 + $0xe0] sm:$0xff]
          %v3633 = vld [vmem:[#allocation4 + $0xe8] sm:$0xff]
          %v3634 = vld [vmem:[#allocation4 + $0xf0] sm:$0xff]
          %v3635 = vld [vmem:[#allocation4 + $0xf8] sm:$0xff]
          %v3636 = vrcp.pop %v3604
          %v3637 = vmul.f32 %v3604, %v3636
          %v3638 = vsub.f32 1.0, %v3637
          %v3639 = vmul.f32 %v3636, %v3638
          %v3640 = vadd.f32 %v3636, %v3639
          %vm3641 = vweird.f32 %v3604
          %vm3642 = vweird.f32 %v3636
          %vm3643 = vmor %vm3641, %vm3642
          %v3644 = vsel %vm3643, %v3636, %v3640
          %v3645 = vand.u32 2147483647, %v3604
          %vm3646 = vcmp.eq.f32.partialorder %v3645, 8.507059e+37
          %v3647 = vand.u32 %v3604, 2147483648
          %v3648 = vor.u32 1.1754944e-38, %v3647
          %v3649 = vsel %vm3646, %v3648, %v3644
          %v3650 = vrcp.pop %v3605
          %v3651 = vmul.f32 %v3605, %v3650
          %v3652 = vsub.f32 1.0, %v3651
          %v3653 = vmul.f32 %v3650, %v3652
          %v3654 = vadd.f32 %v3650, %v3653
          %vm3655 = vweird.f32 %v3605
          %vm3656 = vweird.f32 %v3650
          %vm3657 = vmor %vm3655, %vm3656
          %v3658 = vsel %vm3657, %v3650, %v3654
          %v3659 = vand.u32 2147483647, %v3605
          %vm3660 = vcmp.eq.f32.partialorder %v3659, 8.507059e+37
          %v3661 = vand.u32 %v3605, 2147483648
          %v3662 = vor.u32 1.1754944e-38, %v3661
          %v3663 = vsel %vm3660, %v3662, %v3658
          %v3664 = vrcp.pop %v3606
          %v3665 = vmul.f32 %v3606, %v3664
          %v3666 = vsub.f32 1.0, %v3665
          %v3667 = vmul.f32 %v3664, %v3666
          %v3668 = vadd.f32 %v3664, %v3667
          %vm3669 = vweird.f32 %v3606
          %vm3670 = vweird.f32 %v3664
          %vm3671 = vmor %vm3669, %vm3670
          %v3672 = vsel %vm3671, %v3664, %v3668
          %v3673 = vand.u32 2147483647, %v3606
          %vm3674 = vcmp.eq.f32.partialorder %v3673, 8.507059e+37
          %v3675 = vand.u32 %v3606, 2147483648
          %v3676 = vor.u32 1.1754944e-38, %v3675
          %v3677 = vsel %vm3674, %v3676, %v3672
          %v3678 = vrcp.pop %v3607
          %v3679 = vmul.f32 %v3607, %v3678
          %v3680 = vsub.f32 1.0, %v3679
          %v3681 = vmul.f32 %v3678, %v3680
          %v3682 = vadd.f32 %v3678, %v3681
          %vm3683 = vweird.f32 %v3607
          %vm3684 = vweird.f32 %v3678
          %vm3685 = vmor %vm3683, %vm3684
          %v3686 = vsel %vm3685, %v3678, %v3682
          %v3687 = vand.u32 2147483647, %v3607
          %vm3688 = vcmp.eq.f32.partialorder %v3687, 8.507059e+37
          %v3689 = vand.u32 %v3607, 2147483648
          %v3690 = vor.u32 1.1754944e-38, %v3689
          %v3691 = vsel %vm3688, %v3690, %v3686
          %v3692 = vrcp.pop %v3608
          %v3693 = vmul.f32 %v3608, %v3692
          %v3694 = vsub.f32 1.0, %v3693
          %v3695 = vmul.f32 %v3692, %v3694
          %v3696 = vadd.f32 %v3692, %v3695
          %vm3697 = vweird.f32 %v3608
          %vm3698 = vweird.f32 %v3692
          %vm3699 = vmor %vm3697, %vm3698
          %v3700 = vsel %vm3699, %v3692, %v3696
          %v3701 = vand.u32 2147483647, %v3608
          %vm3702 = vcmp.eq.f32.partialorder %v3701, 8.507059e+37
          %v3703 = vand.u32 %v3608, 2147483648
          %v3704 = vor.u32 1.1754944e-38, %v3703
          %v3705 = vsel %vm3702, %v3704, %v3700
          %v3706 = vrcp.pop %v3609
          %v3707 = vmul.f32 %v3609, %v3706
          %v3708 = vsub.f32 1.0, %v3707
          %v3709 = vmul.f32 %v3706, %v3708
          %v3710 = vadd.f32 %v3706, %v3709
          %vm3711 = vweird.f32 %v3609
          %vm3712 = vweird.f32 %v3706
          %vm3713 = vmor %vm3711, %vm3712
          %v3714 = vsel %vm3713, %v3706, %v3710
          %v3715 = vand.u32 2147483647, %v3609
          %vm3716 = vcmp.eq.f32.partialorder %v3715, 8.507059e+37
          %v3717 = vand.u32 %v3609, 2147483648
          %v3718 = vor.u32 1.1754944e-38, %v3717
          %v3719 = vsel %vm3716, %v3718, %v3714
          %v3720 = vrcp.pop %v3610
          %v3721 = vmul.f32 %v3610, %v3720
          %v3722 = vsub.f32 1.0, %v3721
          %v3723 = vmul.f32 %v3720, %v3722
          %v3724 = vadd.f32 %v3720, %v3723
          %vm3725 = vweird.f32 %v3610
          %vm3726 = vweird.f32 %v3720
          %vm3727 = vmor %vm3725, %vm3726
          %v3728 = vsel %vm3727, %v3720, %v3724
          %v3729 = vand.u32 2147483647, %v3610
          %vm3730 = vcmp.eq.f32.partialorder %v3729, 8.507059e+37
          %v3731 = vand.u32 %v3610, 2147483648
          %v3732 = vor.u32 1.1754944e-38, %v3731
          %v3733 = vsel %vm3730, %v3732, %v3728
          %v3734 = vrcp.pop %v3611
          %v3735 = vmul.f32 %v3611, %v3734
          %v3736 = vsub.f32 1.0, %v3735
          %v3737 = vmul.f32 %v3734, %v3736
          %v3738 = vadd.f32 %v3734, %v3737
          %vm3739 = vweird.f32 %v3611
          %vm3740 = vweird.f32 %v3734
          %vm3741 = vmor %vm3739, %vm3740
          %v3742 = vsel %vm3741, %v3734, %v3738
          %v3743 = vand.u32 2147483647, %v3611
          %vm3744 = vcmp.eq.f32.partialorder %v3743, 8.507059e+37
          %v3745 = vand.u32 %v3611, 2147483648
          %v3746 = vor.u32 1.1754944e-38, %v3745
          %v3747 = vsel %vm3744, %v3746, %v3742
          %v3748 = vrcp.pop %v3612
          %v3749 = vmul.f32 %v3612, %v3748
          %v3750 = vsub.f32 1.0, %v3749
          %v3751 = vmul.f32 %v3748, %v3750
          %v3752 = vadd.f32 %v3748, %v3751
          %vm3753 = vweird.f32 %v3612
          %vm3754 = vweird.f32 %v3748
          %vm3755 = vmor %vm3753, %vm3754
          %v3756 = vsel %vm3755, %v3748, %v3752
          %v3757 = vand.u32 2147483647, %v3612
          %vm3758 = vcmp.eq.f32.partialorder %v3757, 8.507059e+37
          %v3759 = vand.u32 %v3612, 2147483648
          %v3760 = vor.u32 1.1754944e-38, %v3759
          %v3761 = vsel %vm3758, %v3760, %v3756
          %v3762 = vrcp.pop %v3613
          %v3763 = vmul.f32 %v3613, %v3762
          %v3764 = vsub.f32 1.0, %v3763
          %v3765 = vmul.f32 %v3762, %v3764
          %v3766 = vadd.f32 %v3762, %v3765
          %vm3767 = vweird.f32 %v3613
          %vm3768 = vweird.f32 %v3762
          %vm3769 = vmor %vm3767, %vm3768
          %v3770 = vsel %vm3769, %v3762, %v3766
          %v3771 = vand.u32 2147483647, %v3613
          %vm3772 = vcmp.eq.f32.partialorder %v3771, 8.507059e+37
          %v3773 = vand.u32 %v3613, 2147483648
          %v3774 = vor.u32 1.1754944e-38, %v3773
          %v3775 = vsel %vm3772, %v3774, %v3770
          %v3776 = vrcp.pop %v3614
          %v3777 = vmul.f32 %v3614, %v3776
          %v3778 = vsub.f32 1.0, %v3777
          %v3779 = vmul.f32 %v3776, %v3778
          %v3780 = vadd.f32 %v3776, %v3779
          %vm3781 = vweird.f32 %v3614
          %vm3782 = vweird.f32 %v3776
          %vm3783 = vmor %vm3781, %vm3782
          %v3784 = vsel %vm3783, %v3776, %v3780
          %v3785 = vand.u32 2147483647, %v3614
          %vm3786 = vcmp.eq.f32.partialorder %v3785, 8.507059e+37
          %v3787 = vand.u32 %v3614, 2147483648
          %v3788 = vor.u32 1.1754944e-38, %v3787
          %v3789 = vsel %vm3786, %v3788, %v3784
          %v3790 = vrcp.pop %v3615
          %v3791 = vmul.f32 %v3615, %v3790
          %v3792 = vsub.f32 1.0, %v3791
          %v3793 = vmul.f32 %v3790, %v3792
          %v3794 = vadd.f32 %v3790, %v3793
          %vm3795 = vweird.f32 %v3615
          %vm3796 = vweird.f32 %v3790
          %vm3797 = vmor %vm3795, %vm3796
          %v3798 = vsel %vm3797, %v3790, %v3794
          %v3799 = vand.u32 2147483647, %v3615
          %vm3800 = vcmp.eq.f32.partialorder %v3799, 8.507059e+37
          %v3801 = vand.u32 %v3615, 2147483648
          %v3802 = vor.u32 1.1754944e-38, %v3801
          %v3803 = vsel %vm3800, %v3802, %v3798
          %v3804 = vrcp.pop %v3616
          %v3805 = vmul.f32 %v3616, %v3804
          %v3806 = vsub.f32 1.0, %v3805
          %v3807 = vmul.f32 %v3804, %v3806
          %v3808 = vadd.f32 %v3804, %v3807
          %vm3809 = vweird.f32 %v3616
          %vm3810 = vweird.f32 %v3804
          %vm3811 = vmor %vm3809, %vm3810
          %v3812 = vsel %vm3811, %v3804, %v3808
          %v3813 = vand.u32 2147483647, %v3616
          %vm3814 = vcmp.eq.f32.partialorder %v3813, 8.507059e+37
          %v3815 = vand.u32 %v3616, 2147483648
          %v3816 = vor.u32 1.1754944e-38, %v3815
          %v3817 = vsel %vm3814, %v3816, %v3812
          %v3818 = vrcp.pop %v3617
          %v3819 = vmul.f32 %v3617, %v3818
          %v3820 = vsub.f32 1.0, %v3819
          %v3821 = vmul.f32 %v3818, %v3820
          %v3822 = vadd.f32 %v3818, %v3821
          %vm3823 = vweird.f32 %v3617
          %vm3824 = vweird.f32 %v3818
          %vm3825 = vmor %vm3823, %vm3824
          %v3826 = vsel %vm3825, %v3818, %v3822
          %v3827 = vand.u32 2147483647, %v3617
          %vm3828 = vcmp.eq.f32.partialorder %v3827, 8.507059e+37
          %v3829 = vand.u32 %v3617, 2147483648
          %v3830 = vor.u32 1.1754944e-38, %v3829
          %v3831 = vsel %vm3828, %v3830, %v3826
          %v3832 = vrcp.pop %v3618
          %v3833 = vmul.f32 %v3618, %v3832
          %v3834 = vsub.f32 1.0, %v3833
          %v3835 = vmul.f32 %v3832, %v3834
          %v3836 = vadd.f32 %v3832, %v3835
          %vm3837 = vweird.f32 %v3618
          %vm3838 = vweird.f32 %v3832
          %vm3839 = vmor %vm3837, %vm3838
          %v3840 = vsel %vm3839, %v3832, %v3836
          %v3841 = vand.u32 2147483647, %v3618
          %vm3842 = vcmp.eq.f32.partialorder %v3841, 8.507059e+37
          %v3843 = vand.u32 %v3618, 2147483648
          %v3844 = vor.u32 1.1754944e-38, %v3843
          %v3845 = vsel %vm3842, %v3844, %v3840
          %v3846 = vrcp.pop %v3619
          %v3847 = vmul.f32 %v3619, %v3846
          %v3848 = vsub.f32 1.0, %v3847
          %v3849 = vmul.f32 %v3846, %v3848
          %v3850 = vadd.f32 %v3846, %v3849
          %vm3851 = vweird.f32 %v3619
          %vm3852 = vweird.f32 %v3846
          %vm3853 = vmor %vm3851, %vm3852
          %v3854 = vsel %vm3853, %v3846, %v3850
          %v3855 = vand.u32 2147483647, %v3619
          %vm3856 = vcmp.eq.f32.partialorder %v3855, 8.507059e+37
          %v3857 = vand.u32 %v3619, 2147483648
          %v3858 = vor.u32 1.1754944e-38, %v3857
          %v3859 = vsel %vm3856, %v3858, %v3854
          %v3860 = vrcp.pop %v3620
          %v3861 = vmul.f32 %v3620, %v3860
          %v3862 = vsub.f32 1.0, %v3861
          %v3863 = vmul.f32 %v3860, %v3862
          %v3864 = vadd.f32 %v3860, %v3863
          %vm3865 = vweird.f32 %v3620
          %vm3866 = vweird.f32 %v3860
          %vm3867 = vmor %vm3865, %vm3866
          %v3868 = vsel %vm3867, %v3860, %v3864
          %v3869 = vand.u32 2147483647, %v3620
          %vm3870 = vcmp.eq.f32.partialorder %v3869, 8.507059e+37
          %v3871 = vand.u32 %v3620, 2147483648
          %v3872 = vor.u32 1.1754944e-38, %v3871
          %v3873 = vsel %vm3870, %v3872, %v3868
          %v3874 = vrcp.pop %v3621
          %v3875 = vmul.f32 %v3621, %v3874
          %v3876 = vsub.f32 1.0, %v3875
          %v3877 = vmul.f32 %v3874, %v3876
          %v3878 = vadd.f32 %v3874, %v3877
          %vm3879 = vweird.f32 %v3621
          %vm3880 = vweird.f32 %v3874
          %vm3881 = vmor %vm3879, %vm3880
          %v3882 = vsel %vm3881, %v3874, %v3878
          %v3883 = vand.u32 2147483647, %v3621
          %vm3884 = vcmp.eq.f32.partialorder %v3883, 8.507059e+37
          %v3885 = vand.u32 %v3621, 2147483648
          %v3886 = vor.u32 1.1754944e-38, %v3885
          %v3887 = vsel %vm3884, %v3886, %v3882
          %v3888 = vrcp.pop %v3622
          %v3889 = vmul.f32 %v3622, %v3888
          %v3890 = vsub.f32 1.0, %v3889
          %v3891 = vmul.f32 %v3888, %v3890
          %v3892 = vadd.f32 %v3888, %v3891
          %vm3893 = vweird.f32 %v3622
          %vm3894 = vweird.f32 %v3888
          %vm3895 = vmor %vm3893, %vm3894
          %v3896 = vsel %vm3895, %v3888, %v3892
          %v3897 = vand.u32 2147483647, %v3622
          %vm3898 = vcmp.eq.f32.partialorder %v3897, 8.507059e+37
          %v3899 = vand.u32 %v3622, 2147483648
          %v3900 = vor.u32 1.1754944e-38, %v3899
          %v3901 = vsel %vm3898, %v3900, %v3896
          %v3902 = vrcp.pop %v3623
          %v3903 = vmul.f32 %v3623, %v3902
          %v3904 = vsub.f32 1.0, %v3903
          %v3905 = vmul.f32 %v3902, %v3904
          %v3906 = vadd.f32 %v3902, %v3905
          %vm3907 = vweird.f32 %v3623
          %vm3908 = vweird.f32 %v3902
          %vm3909 = vmor %vm3907, %vm3908
          %v3910 = vsel %vm3909, %v3902, %v3906
          %v3911 = vand.u32 2147483647, %v3623
          %vm3912 = vcmp.eq.f32.partialorder %v3911, 8.507059e+37
          %v3913 = vand.u32 %v3623, 2147483648
          %v3914 = vor.u32 1.1754944e-38, %v3913
          %v3915 = vsel %vm3912, %v3914, %v3910
          %v3916 = vrcp.pop %v3624
          %v3917 = vmul.f32 %v3624, %v3916
          %v3918 = vsub.f32 1.0, %v3917
          %v3919 = vmul.f32 %v3916, %v3918
          %v3920 = vadd.f32 %v3916, %v3919
          %vm3921 = vweird.f32 %v3624
          %vm3922 = vweird.f32 %v3916
          %vm3923 = vmor %vm3921, %vm3922
          %v3924 = vsel %vm3923, %v3916, %v3920
          %v3925 = vand.u32 2147483647, %v3624
          %vm3926 = vcmp.eq.f32.partialorder %v3925, 8.507059e+37
          %v3927 = vand.u32 %v3624, 2147483648
          %v3928 = vor.u32 1.1754944e-38, %v3927
          %v3929 = vsel %vm3926, %v3928, %v3924
          %v3930 = vrcp.pop %v3625
          %v3931 = vmul.f32 %v3625, %v3930
          %v3932 = vsub.f32 1.0, %v3931
          %v3933 = vmul.f32 %v3930, %v3932
          %v3934 = vadd.f32 %v3930, %v3933
          %vm3935 = vweird.f32 %v3625
          %vm3936 = vweird.f32 %v3930
          %vm3937 = vmor %vm3935, %vm3936
          %v3938 = vsel %vm3937, %v3930, %v3934
          %v3939 = vand.u32 2147483647, %v3625
          %vm3940 = vcmp.eq.f32.partialorder %v3939, 8.507059e+37
          %v3941 = vand.u32 %v3625, 2147483648
          %v3942 = vor.u32 1.1754944e-38, %v3941
          %v3943 = vsel %vm3940, %v3942, %v3938
          %v3944 = vrcp.pop %v3626
          %v3945 = vmul.f32 %v3626, %v3944
          %v3946 = vsub.f32 1.0, %v3945
          %v3947 = vmul.f32 %v3944, %v3946
          %v3948 = vadd.f32 %v3944, %v3947
          %vm3949 = vweird.f32 %v3626
          %vm3950 = vweird.f32 %v3944
          %vm3951 = vmor %vm3949, %vm3950
          %v3952 = vsel %vm3951, %v3944, %v3948
          %v3953 = vand.u32 2147483647, %v3626
          %vm3954 = vcmp.eq.f32.partialorder %v3953, 8.507059e+37
          %v3955 = vand.u32 %v3626, 2147483648
          %v3956 = vor.u32 1.1754944e-38, %v3955
          %v3957 = vsel %vm3954, %v3956, %v3952
          %v3958 = vrcp.pop %v3627
          %v3959 = vmul.f32 %v3627, %v3958
          %v3960 = vsub.f32 1.0, %v3959
          %v3961 = vmul.f32 %v3958, %v3960
          %v3962 = vadd.f32 %v3958, %v3961
          %vm3963 = vweird.f32 %v3627
          %vm3964 = vweird.f32 %v3958
          %vm3965 = vmor %vm3963, %vm3964
          %v3966 = vsel %vm3965, %v3958, %v3962
          %v3967 = vand.u32 2147483647, %v3627
          %vm3968 = vcmp.eq.f32.partialorder %v3967, 8.507059e+37
          %v3969 = vand.u32 %v3627, 2147483648
          %v3970 = vor.u32 1.1754944e-38, %v3969
          %v3971 = vsel %vm3968, %v3970, %v3966
          %v3972 = vrcp.pop %v3628
          %v3973 = vmul.f32 %v3628, %v3972
          %v3974 = vsub.f32 1.0, %v3973
          %v3975 = vmul.f32 %v3972, %v3974
          %v3976 = vadd.f32 %v3972, %v3975
          %vm3977 = vweird.f32 %v3628
          %vm3978 = vweird.f32 %v3972
          %vm3979 = vmor %vm3977, %vm3978
          %v3980 = vsel %vm3979, %v3972, %v3976
          %v3981 = vand.u32 2147483647, %v3628
          %vm3982 = vcmp.eq.f32.partialorder %v3981, 8.507059e+37
          %v3983 = vand.u32 %v3628, 2147483648
          %v3984 = vor.u32 1.1754944e-38, %v3983
          %v3985 = vsel %vm3982, %v3984, %v3980
          %v3986 = vrcp.pop %v3629
          %v3987 = vmul.f32 %v3629, %v3986
          %v3988 = vsub.f32 1.0, %v3987
          %v3989 = vmul.f32 %v3986, %v3988
          %v3990 = vadd.f32 %v3986, %v3989
          %vm3991 = vweird.f32 %v3629
          %vm3992 = vweird.f32 %v3986
          %vm3993 = vmor %vm3991, %vm3992
          %v3994 = vsel %vm3993, %v3986, %v3990
          %v3995 = vand.u32 2147483647, %v3629
          %vm3996 = vcmp.eq.f32.partialorder %v3995, 8.507059e+37
          %v3997 = vand.u32 %v3629, 2147483648
          %v3998 = vor.u32 1.1754944e-38, %v3997
          %v3999 = vsel %vm3996, %v3998, %v3994
          %v4000 = vrcp.pop %v3630
          %v4001 = vmul.f32 %v3630, %v4000
          %v4002 = vsub.f32 1.0, %v4001
          %v4003 = vmul.f32 %v4000, %v4002
          %v4004 = vadd.f32 %v4000, %v4003
          %vm4005 = vweird.f32 %v3630
          %vm4006 = vweird.f32 %v4000
          %vm4007 = vmor %vm4005, %vm4006
          %v4008 = vsel %vm4007, %v4000, %v4004
          %v4009 = vand.u32 2147483647, %v3630
          %vm4010 = vcmp.eq.f32.partialorder %v4009, 8.507059e+37
          %v4011 = vand.u32 %v3630, 2147483648
          %v4012 = vor.u32 1.1754944e-38, %v4011
          %v4013 = vsel %vm4010, %v4012, %v4008
          %v4014 = vrcp.pop %v3631
          %v4015 = vmul.f32 %v3631, %v4014
          %v4016 = vsub.f32 1.0, %v4015
          %v4017 = vmul.f32 %v4014, %v4016
          %v4018 = vadd.f32 %v4014, %v4017
          %vm4019 = vweird.f32 %v3631
          %vm4020 = vweird.f32 %v4014
          %vm4021 = vmor %vm4019, %vm4020
          %v4022 = vsel %vm4021, %v4014, %v4018
          %v4023 = vand.u32 2147483647, %v3631
          %vm4024 = vcmp.eq.f32.partialorder %v4023, 8.507059e+37
          %v4025 = vand.u32 %v3631, 2147483648
          %v4026 = vor.u32 1.1754944e-38, %v4025
          %v4027 = vsel %vm4024, %v4026, %v4022
          %v4028 = vrcp.pop %v3632
          %v4029 = vmul.f32 %v3632, %v4028
          %v4030 = vsub.f32 1.0, %v4029
          %v4031 = vmul.f32 %v4028, %v4030
          %v4032 = vadd.f32 %v4028, %v4031
          %vm4033 = vweird.f32 %v3632
          %vm4034 = vweird.f32 %v4028
          %vm4035 = vmor %vm4033, %vm4034
          %v4036 = vsel %vm4035, %v4028, %v4032
          %v4037 = vand.u32 2147483647, %v3632
          %vm4038 = vcmp.eq.f32.partialorder %v4037, 8.507059e+37
          %v4039 = vand.u32 %v3632, 2147483648
          %v4040 = vor.u32 1.1754944e-38, %v4039
          %v4041 = vsel %vm4038, %v4040, %v4036
          %v4042 = vrcp.pop %v3633
          %v4043 = vmul.f32 %v3633, %v4042
          %v4044 = vsub.f32 1.0, %v4043
          %v4045 = vmul.f32 %v4042, %v4044
          %v4046 = vadd.f32 %v4042, %v4045
          %vm4047 = vweird.f32 %v3633
          %vm4048 = vweird.f32 %v4042
          %vm4049 = vmor %vm4047, %vm4048
          %v4050 = vsel %vm4049, %v4042, %v4046
          %v4051 = vand.u32 2147483647, %v3633
          %vm4052 = vcmp.eq.f32.partialorder %v4051, 8.507059e+37
          %v4053 = vand.u32 %v3633, 2147483648
          %v4054 = vor.u32 1.1754944e-38, %v4053
          %v4055 = vsel %vm4052, %v4054, %v4050
          %v4056 = vrcp.pop %v3634
          %v4057 = vmul.f32 %v3634, %v4056
          %v4058 = vsub.f32 1.0, %v4057
          %v4059 = vmul.f32 %v4056, %v4058
          %v4060 = vadd.f32 %v4056, %v4059
          %vm4061 = vweird.f32 %v3634
          %vm4062 = vweird.f32 %v4056
          %vm4063 = vmor %vm4061, %vm4062
          %v4064 = vsel %vm4063, %v4056, %v4060
          %v4065 = vand.u32 2147483647, %v3634
          %vm4066 = vcmp.eq.f32.partialorder %v4065, 8.507059e+37
          %v4067 = vand.u32 %v3634, 2147483648
          %v4068 = vor.u32 1.1754944e-38, %v4067
          %v4069 = vsel %vm4066, %v4068, %v4064
          %v4070 = vrcp.pop %v3635
          %v4071 = vmul.f32 %v3635, %v4070
          %v4072 = vsub.f32 1.0, %v4071
          %v4073 = vmul.f32 %v4070, %v4072
          %v4074 = vadd.f32 %v4070, %v4073
          %vm4075 = vweird.f32 %v3635
          %vm4076 = vweird.f32 %v4070
          %vm4077 = vmor %vm4075, %vm4076
          %v4078 = vsel %vm4077, %v4070, %v4074
          %v4079 = vand.u32 2147483647, %v3635
          %vm4080 = vcmp.eq.f32.partialorder %v4079, 8.507059e+37
          %v4081 = vand.u32 %v3635, 2147483648
          %v4082 = vor.u32 1.1754944e-38, %v4081
          %v4083 = vsel %vm4080, %v4082, %v4078
          %4085 = vset.pattern.permute.xlu0 0
          %4086 = vperm.xlu0 %4085, %v3649
          %v4087 = vpop.permute.xlu0 %4086
          %4090 = vset.pattern.permute.xlu0 0
          %4091 = vperm.xlu0 %4090, %v3663
          %v4092 = vpop.permute.xlu0 %4091
          %4095 = vset.pattern.permute.xlu0 0
          %4096 = vperm.xlu0 %4095, %v3677
          %v4097 = vpop.permute.xlu0 %4096
          %4100 = vset.pattern.permute.xlu0 0
          %4101 = vperm.xlu0 %4100, %v3691
          %v4102 = vpop.permute.xlu0 %4101
          %4105 = vset.pattern.permute.xlu0 0
          %4106 = vperm.xlu0 %4105, %v3705
          %v4107 = vpop.permute.xlu0 %4106
          %4110 = vset.pattern.permute.xlu0 0
          %4111 = vperm.xlu0 %4110, %v3719
          %v4112 = vpop.permute.xlu0 %4111
          %4115 = vset.pattern.permute.xlu0 0
          %4116 = vperm.xlu0 %4115, %v3733
          %v4117 = vpop.permute.xlu0 %4116
          %4120 = vset.pattern.permute.xlu0 0
          %4121 = vperm.xlu0 %4120, %v3747
          %v4122 = vpop.permute.xlu0 %4121
          %4125 = vset.pattern.permute.xlu0 0
          %4126 = vperm.xlu0 %4125, %v3761
          %v4127 = vpop.permute.xlu0 %4126
          %4130 = vset.pattern.permute.xlu0 0
          %4131 = vperm.xlu0 %4130, %v3775
          %v4132 = vpop.permute.xlu0 %4131
          %4135 = vset.pattern.permute.xlu0 0
          %4136 = vperm.xlu0 %4135, %v3789
          %v4137 = vpop.permute.xlu0 %4136
          %4140 = vset.pattern.permute.xlu0 0
          %4141 = vperm.xlu0 %4140, %v3803
          %v4142 = vpop.permute.xlu0 %4141
          %4145 = vset.pattern.permute.xlu0 0
          %4146 = vperm.xlu0 %4145, %v3817
          %v4147 = vpop.permute.xlu0 %4146
          %4150 = vset.pattern.permute.xlu0 0
          %4151 = vperm.xlu0 %4150, %v3831
          %v4152 = vpop.permute.xlu0 %4151
          %4155 = vset.pattern.permute.xlu0 0
          %4156 = vperm.xlu0 %4155, %v3845
          %v4157 = vpop.permute.xlu0 %4156
          %4160 = vset.pattern.permute.xlu0 0
          %4161 = vperm.xlu0 %4160, %v3859
          %v4162 = vpop.permute.xlu0 %4161
          %4165 = vset.pattern.permute.xlu0 0
          %4166 = vperm.xlu0 %4165, %v3873
          %v4167 = vpop.permute.xlu0 %4166
          %4170 = vset.pattern.permute.xlu0 0
          %4171 = vperm.xlu0 %4170, %v3887
          %v4172 = vpop.permute.xlu0 %4171
          %4175 = vset.pattern.permute.xlu0 0
          %4176 = vperm.xlu0 %4175, %v3901
          %v4177 = vpop.permute.xlu0 %4176
          %4180 = vset.pattern.permute.xlu0 0
          %4181 = vperm.xlu0 %4180, %v3915
          %v4182 = vpop.permute.xlu0 %4181
          %4185 = vset.pattern.permute.xlu0 0
          %4186 = vperm.xlu0 %4185, %v3929
          %v4187 = vpop.permute.xlu0 %4186
          %4190 = vset.pattern.permute.xlu0 0
          %4191 = vperm.xlu0 %4190, %v3943
          %v4192 = vpop.permute.xlu0 %4191
          %4195 = vset.pattern.permute.xlu0 0
          %4196 = vperm.xlu0 %4195, %v3957
          %v4197 = vpop.permute.xlu0 %4196
          %4200 = vset.pattern.permute.xlu0 0
          %4201 = vperm.xlu0 %4200, %v3971
          %v4202 = vpop.permute.xlu0 %4201
          %4205 = vset.pattern.permute.xlu0 0
          %4206 = vperm.xlu0 %4205, %v3985
          %v4207 = vpop.permute.xlu0 %4206
          %4210 = vset.pattern.permute.xlu0 0
          %4211 = vperm.xlu0 %4210, %v3999
          %v4212 = vpop.permute.xlu0 %4211
          %4215 = vset.pattern.permute.xlu0 0
          %4216 = vperm.xlu0 %4215, %v4013
          %v4217 = vpop.permute.xlu0 %4216
          %4220 = vset.pattern.permute.xlu0 0
          %4221 = vperm.xlu0 %4220, %v4027
          %v4222 = vpop.permute.xlu0 %4221
          %4225 = vset.pattern.permute.xlu0 0
          %4226 = vperm.xlu0 %4225, %v4041
          %v4227 = vpop.permute.xlu0 %4226
          %4230 = vset.pattern.permute.xlu0 0
          %4231 = vperm.xlu0 %4230, %v4055
          %v4232 = vpop.permute.xlu0 %4231
          %4235 = vset.pattern.permute.xlu0 0
          %4236 = vperm.xlu0 %4235, %v4069
          %v4237 = vpop.permute.xlu0 %4236
          %4240 = vset.pattern.permute.xlu0 0
          %4241 = vperm.xlu0 %4240, %v4083
          %v4242 = vpop.permute.xlu0 %4241
          %v4244 = vmul.f32 %v3572, %v4087
          %v4245 = vmul.f32 %v3573, %v4092
          %v4246 = vmul.f32 %v3574, %v4097
          %v4247 = vmul.f32 %v3575, %v4102
          %v4248 = vmul.f32 %v3576, %v4107
          %v4249 = vmul.f32 %v3577, %v4112
          %v4250 = vmul.f32 %v3578, %v4117
          %v4251 = vmul.f32 %v3579, %v4122
          %v4252 = vmul.f32 %v3580, %v4127
          %v4253 = vmul.f32 %v3581, %v4132
          %v4254 = vmul.f32 %v3582, %v4137
          %v4255 = vmul.f32 %v3583, %v4142
          %v4256 = vmul.f32 %v3584, %v4147
          %v4257 = vmul.f32 %v3585, %v4152
          %v4258 = vmul.f32 %v3586, %v4157
          %v4259 = vmul.f32 %v3587, %v4162
          %v4260 = vmul.f32 %v3588, %v4167
          %v4261 = vmul.f32 %v3589, %v4172
          %v4262 = vmul.f32 %v3590, %v4177
          %v4263 = vmul.f32 %v3591, %v4182
          %v4264 = vmul.f32 %v3592, %v4187
          %v4265 = vmul.f32 %v3593, %v4192
          %v4266 = vmul.f32 %v3594, %v4197
          %v4267 = vmul.f32 %v3595, %v4202
          %v4268 = vmul.f32 %v3596, %v4207
          %v4269 = vmul.f32 %v3597, %v4212
          %v4270 = vmul.f32 %v3598, %v4217
          %v4271 = vmul.f32 %v3599, %v4222
          %v4272 = vmul.f32 %v3600, %v4227
          %v4273 = vmul.f32 %v3601, %v4232
          %v4274 = vmul.f32 %v3602, %v4237
          %v4275 = vmul.f32 %v3603, %v4242
          %vm4276 = vcmask 523264
          %4277 = vst.msk [vmem:[%s302] sm:$0xff] %vm4276, %v4244
          %4278 = vst.msk [vmem:[%s302 + $0x8] sm:$0xff] %vm4276, %v4245
          %4279 = vst.msk [vmem:[%s302 + $0x10] sm:$0xff] %vm4276, %v4246
          %4280 = vst.msk [vmem:[%s302 + $0x18] sm:$0xff] %vm4276, %v4247
          %4281 = vst.msk [vmem:[%s302 + $0x20] sm:$0xff] %vm4276, %v4248
          %4282 = vst.msk [vmem:[%s302 + $0x28] sm:$0xff] %vm4276, %v4249
          %4283 = vst.msk [vmem:[%s302 + $0x30] sm:$0xff] %vm4276, %v4250
          %4284 = vst.msk [vmem:[%s302 + $0x38] sm:$0xff] %vm4276, %v4251
          %4285 = vst.msk [vmem:[%s302 + $0x40] sm:$0xff] %vm4276, %v4252
          %4286 = vst.msk [vmem:[%s302 + $0x48] sm:$0xff] %vm4276, %v4253
          %4287 = vst.msk [vmem:[%s302 + $0x50] sm:$0xff] %vm4276, %v4254
          %4288 = vst.msk [vmem:[%s302 + $0x58] sm:$0xff] %vm4276, %v4255
          %4289 = vst.msk [vmem:[%s302 + $0x60] sm:$0xff] %vm4276, %v4256
          %4290 = vst.msk [vmem:[%s302 + $0x68] sm:$0xff] %vm4276, %v4257
          %4291 = vst.msk [vmem:[%s302 + $0x70] sm:$0xff] %vm4276, %v4258
          %4292 = vst.msk [vmem:[%s302 + $0x78] sm:$0xff] %vm4276, %v4259
          %4293 = vst.msk [vmem:[%s302 + $0x80] sm:$0xff] %vm4276, %v4260
          %4294 = vst.msk [vmem:[%s302 + $0x88] sm:$0xff] %vm4276, %v4261
          %4295 = vst.msk [vmem:[%s302 + $0x90] sm:$0xff] %vm4276, %v4262
          %4296 = vst.msk [vmem:[%s302 + $0x98] sm:$0xff] %vm4276, %v4263
          %4297 = vst.msk [vmem:[%s302 + $0xa0] sm:$0xff] %vm4276, %v4264
          %4298 = vst.msk [vmem:[%s302 + $0xa8] sm:$0xff] %vm4276, %v4265
          %4299 = vst.msk [vmem:[%s302 + $0xb0] sm:$0xff] %vm4276, %v4266
          %4300 = vst.msk [vmem:[%s302 + $0xb8] sm:$0xff] %vm4276, %v4267
          %4301 = vst.msk [vmem:[%s302 + $0xc0] sm:$0xff] %vm4276, %v4268
          %4302 = vst.msk [vmem:[%s302 + $0xc8] sm:$0xff] %vm4276, %v4269
          %4303 = vst.msk [vmem:[%s302 + $0xd0] sm:$0xff] %vm4276, %v4270
          %4304 = vst.msk [vmem:[%s302 + $0xd8] sm:$0xff] %vm4276, %v4271
          %4305 = vst.msk [vmem:[%s302 + $0xe0] sm:$0xff] %vm4276, %v4272
          %4306 = vst.msk [vmem:[%s302 + $0xe8] sm:$0xff] %vm4276, %v4273
          %4307 = vst.msk [vmem:[%s302 + $0xf0] sm:$0xff] %vm4276, %v4274
          %4308 = vst.msk [vmem:[%s302 + $0xf8] sm:$0xff] %vm4276, %v4275
        $region56: #{tpu_custom_call.1} parent=35 // pred_fallthru
          _
        %s4309 = smul.u32 32, %s27
        %p4310 = scmp.lt.s32.totalorder %s26, 1
        %s4311 = scalar_select %p4310, %s26, 1
        %p4312 = scmp.lt.s32.totalorder %s4309, 31
        %s4313 = scalar_select %p4312, %s4309, 31
        %s4314 = smul.addr %s4311, 32
        %s4315 = sadd.s32 %s4313, %s4314
        %s4316 = smul.addr %s4315, 8
        %s4317 = scalar_lea.vmem %s4, %s4316
        // Predicated region
        $region57: #{tpu_custom_call.1} parent=35 // pred_check
          %p4318 = pneg %p158
        $region58: #{tpu_custom_call.1} parent=35 // pred_check_branch
          %4320 = sbr.rel (%p4318) target = $region60
        $region59: #{tpu_custom_call.1} parent=35 // pred_region
          %s4321 = smul.u32 32, %s27
        $region60: #{tpu_custom_call.1} parent=35 // pred_fallthru
          _
      $region36: #{tpu_custom_call.1} parent=5 // pred_fallthru
        _
      %p4322 = scmp.le.s32.totalorder 2, %s16
      // Predicated region
      $region61: #{tpu_custom_call.1} parent=5 // pred_check
        %p4323 = pneg %p4322
      $region62: #{tpu_custom_call.1} parent=5 // pred_check_branch
        %4325 = sbr.rel (%p4323) target = $region64
      $region63: #{tpu_custom_call.1} parent=5 // pred_region
        %s4326 = ssub.s32 %s16, 2
        // Predicated region
        $region65: #{tpu_custom_call.1} parent=63 // pred_check
          %p4327 = pneg %p164
        $region66: #{tpu_custom_call.1} parent=63 // pred_check_branch
          %4329 = sbr.rel (%p4327) target = $region68
        $region67: #{tpu_custom_call.1} parent=63 // pred_region
          %s4330 = smul.u32 32, %s30
          %p4331 = scmp.lt.s32.totalorder %s29, 1
          %s4332 = scalar_select %p4331, %s29, 1
          %p4333 = scmp.lt.s32.totalorder %s4330, 31
          %s4334 = scalar_select %p4333, %s4330, 31
          %s4335 = smul.addr %s4332, 32
          %s4336 = sadd.s32 %s4334, %s4335
          %s4337 = smul.addr %s4336, 8
          %s4338 = scalar_lea.vmem %s4, %s4337
        $region68: #{tpu_custom_call.1} parent=63 // pred_fallthru
          _
      $region64: #{tpu_custom_call.1} parent=5 // pred_fallthru
        _
    $region6: #{tpu_custom_call.1} parent=1 // loop_footer
      %s20 = sadd.s32 1, %s16
    $region7: #{tpu_custom_call.1} parent=1 // loop_footer_branch
      %15 = sbr.rel target = $region3
    $region8: #{tpu_custom_call.1} parent=1 // loop_exit
      _
    %4339 = vsyncpa [#allocation7], 1
    %s4340 = scalar_lea.sflag [#allocation7], 1
    %4341 = vsyncpa %s4340, 1
    %4342 = vsyncpa [#allocation9], 1
    %s4343 = scalar_lea.sflag [#allocation9], 1
    %4344 = vsyncpa %s4343, 1

</llo_original>
